<compile_context>
chip_gen: v7x
topology: tpu7x:2x2x1
jax: 0.10.0
libtpu: 0.0.40
codegen_flags: <defaults>
</compile_context>

<pallas_src>
import math
from functools import partial

import jax
import jax.numpy as jnp
from jax.experimental import pallas as pl
from jax.experimental.pallas import tpu as pltpu

EPS = 1e-5
_SQRT_2_OVER_PI = math.sqrt(2.0 / math.pi)

# Row layout of the merged per-layer "small" f32 slab.
ROW_LN1_W, ROW_LN1_B = 0, 1
ROW_LN2_W, ROW_LN2_B = 2, 3
ROW_LN3_W, ROW_LN3_B = 4, 5
ROW_QKV_B_SA, ROW_QKV_B_CA = 6, 7
ROW_OUT_B_SA, ROW_OUT_B_CA = 8, 9
ROW_FF_B1, ROW_FF_B2 = 10, 11
N_SMALL_ROWS = 12

PACKED_ORDER = ["small", "qkv_w", "out_w", "ff_w1", "ff_w2"]


# ------------- shared math (used by both the kernel and the JAX reference) -----------


def _mm(a, w):
    # bf16 operands, f32 accumulation on the MXU (single pass).
    return jnp.dot(a.astype(jnp.bfloat16), w.astype(jnp.bfloat16),
                   preferred_element_type=jnp.float32)


def _layernorm(x, w, b):
    # Fused stats: two independent reductions, var = E[x^2] - mu^2.
    n = x.shape[-1]
    inv_n = 1.0 / n
    s1 = jnp.sum(x, axis=-1, keepdims=True)
    s2 = jnp.sum(x * x, axis=-1, keepdims=True)
    mu = s1 * inv_n
    var = s2 * inv_n - mu * mu
    return (x - mu) * jax.lax.rsqrt(var + EPS) * w + b


def _gelu(x):
    # tanh-approx GELU; |err| vs erf-exact GELU << test tolerance.
    return 0.5 * x * (1.0 + jnp.tanh(_SQRT_2_OVER_PI * (x + 0.044715 * x * x * x)))


def _softmax(s, in_kernel):
    m = jnp.max(s, axis=-1, keepdims=True)
    e = jnp.exp(s - m)
    d = jnp.sum(e, axis=-1, keepdims=True)
    if in_kernel:
        return e * pl.reciprocal(d, approx=True)   # EUP slot, otherwise idle here
    return e / d


def _attn(xn_flat, kv_src, B, T, S, E, num_heads, qkv_w, qkv_b, out_w, out_b,
          self_attn, scratch, in_kernel):
    """Multi-head attention.  xn_flat:(B*T,E) normalized queries; kv_src:(B,S,E)
    for cross-attention (None for self-attention).  qkv_w:(E,3E) with
    [Wq*scale | Wk | Wv] columns (y = x @ W layout); scale pre-folded into Wq/bq."""
    dh = E // num_heads
    if self_attn:
        qkv = (_mm(xn_flat, qkv_w) + qkv_b).reshape(B, T, 3 * E)     # one (B*T,E)@(E,3E)
        q, k, v = qkv[..., :E], qkv[..., E:2 * E], qkv[..., 2 * E:]
    else:
        q = (_mm(xn_flat, qkv_w[:, :E]) + qkv_b[:, :E]).reshape(B, T, E)
        kv = (_mm(kv_src.reshape(B * S, E), qkv_w[:, E:]) + qkv_b[:, E:]
              ).reshape(B, S, 2 * E)                                 # fused K/V proj
        k, v = kv[..., :E], kv[..., E:]

    # bf16 operands for the score / PV matmuls (f32 accumulation).
    q16 = q.astype(jnp.bfloat16)
    k16 = k.astype(jnp.bfloat16)
    v16 = v.astype(jnp.bfloat16)

    heads = []
    for h in range(num_heads):                       # static head loop (tiny matmuls)
        lo, hi = h * dh, (h + 1) * dh
        s = jnp.einsum('btd,bsd->bts', q16[..., lo:hi], k16[..., lo:hi],
                       preferred_element_type=jnp.float32)
        p = _softmax(s, in_kernel)
        pv = jnp.einsum('bts,bsd->btd', p.astype(jnp.bfloat16), v16[..., lo:hi],
                        preferred_element_type=jnp.float32)          # (B,T,dh) f32
        if scratch is None:                          # pure-JAX reference path
            heads.append(pv)
        else:                                        # kernel path: no lane-concat
            scratch[:, :, lo:hi] = pv

    if scratch is None:
        o = jnp.concatenate(heads, axis=-1).reshape(B * T, E)
    else:
        o = scratch[...].reshape(B * T, E)
    return _mm(o, out_w) + out_b                     # single (B*T,E)@(E,E) out proj


def _layer_forward(x, enc, small, qkv_w, out_w, ff_w1, ff_w2, num_heads,
                   scratch, in_kernel):
    """One pre-norm decoder layer.  x:(B,T,E), enc:(B,S,E)."""
    B, T, E = x.shape
    S = enc.shape[1]
    F = ff_w1.shape[-1]
    xf = x.reshape(B * T, E)

    ln1_w = small[ROW_LN1_W:ROW_LN1_W + 1, :E]
    ln1_b = small[ROW_LN1_B:ROW_LN1_B + 1, :E]
    ln2_w = small[ROW_LN2_W:ROW_LN2_W + 1, :E]
    ln2_b = small[ROW_LN2_B:ROW_LN2_B + 1, :E]
    ln3_w = small[ROW_LN3_W:ROW_LN3_W + 1, :E]
    ln3_b = small[ROW_LN3_B:ROW_LN3_B + 1, :E]
    qkv_b_sa = small[ROW_QKV_B_SA:ROW_QKV_B_SA + 1, :3 * E]
    qkv_b_ca = small[ROW_QKV_B_CA:ROW_QKV_B_CA + 1, :3 * E]
    out_b_sa = small[ROW_OUT_B_SA:ROW_OUT_B_SA + 1, :E]
    out_b_ca = small[ROW_OUT_B_CA:ROW_OUT_B_CA + 1, :E]
    ff_b1 = small[ROW_FF_B1:ROW_FF_B1 + 1, :F]
    ff_b2 = small[ROW_FF_B2:ROW_FF_B2 + 1, :E]

    # --- self-attention (pre-norm, residual; dropout1 == identity in eval) ---
    xn = _layernorm(xf, ln1_w, ln1_b)
    sa = _attn(xn, None, B, T, T, E, num_heads, qkv_w[0], qkv_b_sa,
               out_w[0], out_b_sa, self_attn=True, scratch=scratch,
               in_kernel=in_kernel)
    xf = xf + sa

    # --- cross-attention ---
    xn = _layernorm(xf, ln2_w, ln2_b)
    ca = _attn(xn, enc, B, T, S, E, num_heads, qkv_w[1], qkv_b_ca,
               out_w[1], out_b_ca, self_attn=False, scratch=scratch,
               in_kernel=in_kernel)
    xf = xf + ca

    # --- feed-forward (dropout2 == identity in eval) ---
    xn = _layernorm(xf, ln3_w, ln3_b)
    h = _gelu(_mm(xn, ff_w1) + ff_b1)
    xf = xf + _mm(h, ff_w2) + ff_b2
    return xf.reshape(B, T, E)


# ---------------- Pallas kernel & wrapper ----------------


def decoder_block_kernel(x_ref, enc_ref, small_ref, qkv_w_ref, out_w_ref,
                         ff_w1_ref, ff_w2_ref, out_ref, attn_scratch,
                         *, num_heads):
    layer = pl.program_id(0)

    # out_ref is the carried activation: constant output block index for every
    # layer step (layer axis is the only, "arbitrary", grid axis), so it stays
    # resident in VMEM across layers.
    @pl.when(layer == 0)
    def _():
        out_ref[...] = x_ref[...]

    small = small_ref[0]      # (12, Wmax)  f32  (LN w/b + all biases)
    qkv_w = qkv_w_ref[0]      # (2, E, 3E)  bf16 [self, cross]
    out_w = out_w_ref[0]      # (2, E, E)   bf16
    ff_w1 = ff_w1_ref[0]      # (E, F)      bf16
    ff_w2 = ff_w2_ref[0]      # (F, E)      bf16

    out_ref[...] = _layer_forward(out_ref[...], enc_ref[...], small, qkv_w,
                                  out_w, ff_w1, ff_w2, num_heads,
                                  scratch=attn_scratch, in_kernel=True)


def decoder_block_pallas(x, enc, packed, num_heads):
    B, T, E = x.shape
    S = enc.shape[1]
    L = packed["small"].shape[0]
    Wsmall = packed["small"].shape[-1]
    F = packed["ff_w1"].shape[-1]
    assert E % num_heads == 0

    in_specs = [
        pl.BlockSpec((B, T, E), lambda l: (0, 0, 0)),                 # x (layer 0 only)
        pl.BlockSpec((B, S, E), lambda l: (0, 0, 0)),                 # encoder output
        pl.BlockSpec((1, N_SMALL_ROWS, Wsmall), lambda l: (l, 0, 0)),  # merged f32 slab
        pl.BlockSpec((1, 2, E, 3 * E), lambda l: (l, 0, 0, 0)),       # QKV weights
        pl.BlockSpec((1, 2, E, E), lambda l: (l, 0, 0, 0)),           # out-proj weights
        pl.BlockSpec((1, E, F), lambda l: (l, 0, 0)),                 # FFN W1
        pl.BlockSpec((1, F, E), lambda l: (l, 0, 0)),                 # FFN W2
    ]
    args = [packed[k] for k in PACKED_ORDER]

    return pl.pallas_call(
        partial(decoder_block_kernel, num_heads=num_heads),
        out_shape=jax.ShapeDtypeStruct((B, T, E), jnp.float32),
        grid=(L,),
        in_specs=in_specs,
        out_specs=pl.BlockSpec((B, T, E), lambda l: (0, 0, 0)),
        scratch_shapes=[pltpu.VMEM((B, T, E), jnp.float32)],          # head PV scratch
        compiler_params=pltpu.CompilerParams(
            dimension_semantics=("arbitrary",),
            vmem_limit_bytes=48 * 1024 * 1024),   # safe on v7x (64 MiB physical)
    )(x, enc, *args)


# ---------------- pure-JAX reference (same math helpers, outside Pallas) --------------


def decoder_block_ref(x, enc, packed, num_heads):
    L = packed["small"].shape[0]
    out = x
    for l in range(L):
        out = _layer_forward(out, enc, packed["small"][l], packed["qkv_w"][l],
                             packed["out_w"][l], packed["ff_w1"][l],
                             packed["ff_w2"][l], num_heads,
                             scratch=None, in_kernel=False)
    return out


# ---------------- parameter init & packing ----------------


def init_layer_params(key, embed_dim, ff_dim):
    ks = iter(jax.random.split(key, 32))

    def rnd(shape, scale=0.05):
        return jax.random.normal(next(ks), shape, jnp.float32) * scale

    p = {}
    for name in ("ln1", "ln2", "ln3"):
        p[f"{name}_w"] = jnp.ones((1, embed_dim), jnp.float32)
        p[f"{name}_b"] = jnp.zeros((1, embed_dim), jnp.float32)
    for name in ("sa", "ca"):
        for proj in ("q", "k", "v", "o"):
            p[f"{name}_w{proj}"] = rnd((embed_dim, embed_dim))   # y = x @ W layout
            p[f"{name}_b{proj}"] = rnd((1, embed_dim), 0.02)
    p["ff_w1"] = rnd((embed_dim, ff_dim))
    p["ff_b1"] = rnd((1, ff_dim), 0.02)
    p["ff_w2"] = rnd((ff_dim, embed_dim))
    p["ff_b2"] = rnd((1, embed_dim), 0.02)
    return p


def pack_layer_params(layer_params, num_heads):
    """Stack per-layer params into lane-dense slabs with a leading layer axis.
    Big weights -> bf16; all small f32 params merged into one (12, Wmax) slab;
    the 1/sqrt(head_dim) attention scale is folded into Wq / bq."""
    E = layer_params[0]["sa_wq"].shape[0]
    F = layer_params[0]["ff_w1"].shape[1]
    Wmax = max(3 * E, F)
    scale = 1.0 / math.sqrt(E // num_heads)

    def row(vec):
        vec = vec.reshape(-1)
        return jnp.pad(vec, (0, Wmax - vec.shape[0]))

    def one(p):
        small = jnp.stack([
            row(p["ln1_w"]), row(p["ln1_b"]),
            row(p["ln2_w"]), row(p["ln2_b"]),
            row(p["ln3_w"]), row(p["ln3_b"]),
            row(jnp.concatenate([p["sa_bq"][0] * scale, p["sa_bk"][0], p["sa_bv"][0]])),
            row(jnp.concatenate([p["ca_bq"][0] * scale, p["ca_bk"][0], p["ca_bv"][0]])),
            row(p["sa_bo"]), row(p["ca_bo"]),
            row(p["ff_b1"]), row(p["ff_b2"]),
        ])                                                        # (12, Wmax) f32
        qkv_w = jnp.stack([
            jnp.concatenate([p["sa_wq"] * scale, p["sa_wk"], p["sa_wv"]], axis=1),
            jnp.concatenate([p["ca_wq"] * scale, p["ca_wk"], p["ca_wv"]], axis=1),
        ])                                                        # (2, E, 3E)
        out_w = jnp.stack([p["sa_wo"], p["ca_wo"]])               # (2, E, E)
        return small, qkv_w, out_w, p["ff_w1"], p["ff_w2"]

    cols = list(zip(*[one(p) for p in layer_params]))
    packed = dict(zip(PACKED_ORDER, (jnp.stack(c) for c in cols)))
    for k in ("qkv_w", "out_w", "ff_w1", "ff_w2"):
        packed[k] = packed[k].astype(jnp.bfloat16)
    return packed


if __name__ == "__main__":
    B, T, S, E, H, F, L = 2, 8, 8, 32, 4, 64, 2

    key = jax.random.PRNGKey(0)
    kx, ke, *klayers = jax.random.split(key, 2 + L)
    x = jax.random.normal(kx, (B, T, E), jnp.float32)
    encoder_output = jax.random.normal(ke, (B, S, E), jnp.float32)
    layer_params = [init_layer_params(k, E, F) for k in klayers]
    packed = pack_layer_params(layer_params, H)

    out = decoder_block_pallas(x, encoder_output, packed, H)
    out = jax.block_until_ready(out)

    assert out.shape == (B, T, E)
    assert bool(jnp.all(jnp.isfinite(out)))

    ref = decoder_block_ref(x, encoder_output, packed, H)
    max_err = float(jnp.max(jnp.abs(out - ref)))
    assert max_err < 1e-2, f"mismatch vs JAX reference: {max_err}"

    print("KERNEL_OK")
</pallas_src>

<mosaic_0001>
module attributes {stable_mosaic.version = 11 : i64} {
  func.func @decoder_block_kernel(%arg0: i32, %arg1: memref<2x8x32xf32, #tpu.memory_space<vmem>>, %arg2: memref<2x8x32xf32, #tpu.memory_space<vmem>>, %arg3: memref<1x12x96xf32, #tpu.memory_space<vmem>>, %arg4: memref<1x2x32x96xbf16, #tpu.memory_space<vmem>>, %arg5: memref<1x2x32x32xbf16, #tpu.memory_space<vmem>>, %arg6: memref<1x32x64xbf16, #tpu.memory_space<vmem>>, %arg7: memref<1x64x32xbf16, #tpu.memory_space<vmem>>, %arg8: memref<2x8x32xf32, #tpu.memory_space<vmem>>, %arg9: memref<2x8x32xf32, #tpu.memory_space<vmem>>) attributes {dimension_semantics = [#tpu.dimension_semantics<arbitrary>], iteration_bounds = array<i64: 2>, scalar_prefetch = 0 : i64, scratch_operands = 1 : i64, tpu.core_type = #tpu.core_type<tc>, window_params = [{pipeline_mode = #tpu.pipeline_mode<synchronous>, transform_indices = @transform_0, window_bounds = array<i64: 2, 8, 32>}, {pipeline_mode = #tpu.pipeline_mode<synchronous>, transform_indices = @transform_1, window_bounds = array<i64: 2, 8, 32>}, {transform_indices = @transform_2, window_bounds = array<i64: 1, 12, 96>}, {transform_indices = @transform_3, window_bounds = array<i64: 1, 2, 32, 96>}, {transform_indices = @transform_4, window_bounds = array<i64: 1, 2, 32, 32>}, {transform_indices = @transform_5, window_bounds = array<i64: 1, 32, 64>}, {transform_indices = @transform_6, window_bounds = array<i64: 1, 64, 32>}, {pipeline_mode = #tpu.pipeline_mode<synchronous>, transform_indices = @transform_7, window_bounds = array<i64: 2, 8, 32>}]} {
    %c0_i32 = arith.constant 0 : i32
    %0 = arith.cmpi eq, %arg0, %c0_i32 : i32
    %1 = arith.extui %0 : i1 to i32
    %c0_i32_0 = arith.constant 0 : i32
    %2 = arith.cmpi ne, %1, %c0_i32_0 : i32
    scf.if %2 {
      %c0_110 = arith.constant 0 : index
      %c0_111 = arith.constant 0 : index
      %c0_112 = arith.constant 0 : index
      %307 = vector.load %arg1[%c0_110, %c0_111, %c0_112] : memref<2x8x32xf32, #tpu.memory_space<vmem>>, vector<2x8x32xf32>
      %c0_113 = arith.constant 0 : index
      %c0_114 = arith.constant 0 : index
      %c0_115 = arith.constant 0 : index
      %308 = vector.load %arg8[%c0_113, %c0_114, %c0_115] : memref<2x8x32xf32, #tpu.memory_space<vmem>>, vector<2x8x32xf32>
      tpu.vector_store %arg8[%c0_113, %c0_114, %c0_115], %307 {strides = array<i32>} : memref<2x8x32xf32, #tpu.memory_space<vmem>>, vector<2x8x32xf32>,
    } else {
    }
    %c0 = arith.constant 0 : index
    %c0_1 = arith.constant 0 : index
    %c0_2 = arith.constant 0 : index
    %3 = vector.load %arg3[%c0, %c0_1, %c0_2] : memref<1x12x96xf32, #tpu.memory_space<vmem>>, vector<1x12x96xf32>
    %4 = vector.shape_cast %3 : vector<1x12x96xf32> to vector<12x96xf32>
    %c0_3 = arith.constant 0 : index
    %c0_4 = arith.constant 0 : index
    %c0_5 = arith.constant 0 : index
    %c0_6 = arith.constant 0 : index
    %5 = vector.load %arg4[%c0_3, %c0_4, %c0_5, %c0_6] : memref<1x2x32x96xbf16, #tpu.memory_space<vmem>>, vector<1x2x32x96xbf16>
    %6 = vector.shape_cast %5 : vector<1x2x32x96xbf16> to vector<2x32x96xbf16>
    %c0_7 = arith.constant 0 : index
    %c0_8 = arith.constant 0 : index
    %c0_9 = arith.constant 0 : index
    %c0_10 = arith.constant 0 : index
    %7 = vector.load %arg5[%c0_7, %c0_8, %c0_9, %c0_10] : memref<1x2x32x32xbf16, #tpu.memory_space<vmem>>, vector<1x2x32x32xbf16>
    %8 = vector.shape_cast %7 : vector<1x2x32x32xbf16> to vector<2x32x32xbf16>
    %c0_11 = arith.constant 0 : index
    %c0_12 = arith.constant 0 : index
    %c0_13 = arith.constant 0 : index
    %9 = vector.load %arg6[%c0_11, %c0_12, %c0_13] : memref<1x32x64xbf16, #tpu.memory_space<vmem>>, vector<1x32x64xbf16>
    %10 = vector.shape_cast %9 : vector<1x32x64xbf16> to vector<32x64xbf16>
    %c0_14 = arith.constant 0 : index
    %c0_15 = arith.constant 0 : index
    %c0_16 = arith.constant 0 : index
    %11 = vector.load %arg7[%c0_14, %c0_15, %c0_16] : memref<1x64x32xbf16, #tpu.memory_space<vmem>>, vector<1x64x32xbf16>
    %12 = vector.shape_cast %11 : vector<1x64x32xbf16> to vector<64x32xbf16>
    %c0_17 = arith.constant 0 : index
    %c0_18 = arith.constant 0 : index
    %c0_19 = arith.constant 0 : index
    %13 = vector.load %arg8[%c0_17, %c0_18, %c0_19] : memref<2x8x32xf32, #tpu.memory_space<vmem>>, vector<2x8x32xf32>
    %c0_20 = arith.constant 0 : index
    %c0_21 = arith.constant 0 : index
    %c0_22 = arith.constant 0 : index
    %14 = vector.load %arg2[%c0_20, %c0_21, %c0_22] : memref<2x8x32xf32, #tpu.memory_space<vmem>>, vector<2x8x32xf32>
    %15 = vector.shape_cast %13 : vector<2x8x32xf32> to vector<16x32xf32>
    %16 = vector.extract_strided_slice %4 {offsets = [0, 0], sizes = [1, 32], strides = [1, 1]} : vector<12x96xf32> to vector<1x32xf32>
    %17 = vector.extract_strided_slice %4 {offsets = [1, 0], sizes = [1, 32], strides = [1, 1]} : vector<12x96xf32> to vector<1x32xf32>
    %18 = vector.extract_strided_slice %4 {offsets = [2, 0], sizes = [1, 32], strides = [1, 1]} : vector<12x96xf32> to vector<1x32xf32>
    %19 = vector.extract_strided_slice %4 {offsets = [3, 0], sizes = [1, 32], strides = [1, 1]} : vector<12x96xf32> to vector<1x32xf32>
    %20 = vector.extract_strided_slice %4 {offsets = [4, 0], sizes = [1, 32], strides = [1, 1]} : vector<12x96xf32> to vector<1x32xf32>
    %21 = vector.extract_strided_slice %4 {offsets = [5, 0], sizes = [1, 32], strides = [1, 1]} : vector<12x96xf32> to vector<1x32xf32>
    %22 = vector.extract_strided_slice %4 {offsets = [6, 0], sizes = [1, 96], strides = [1, 1]} : vector<12x96xf32> to vector<1x96xf32>
    %23 = vector.extract_strided_slice %4 {offsets = [7, 0], sizes = [1, 96], strides = [1, 1]} : vector<12x96xf32> to vector<1x96xf32>
    %24 = vector.extract_strided_slice %4 {offsets = [8, 0], sizes = [1, 32], strides = [1, 1]} : vector<12x96xf32> to vector<1x32xf32>
    %25 = vector.extract_strided_slice %4 {offsets = [9, 0], sizes = [1, 32], strides = [1, 1]} : vector<12x96xf32> to vector<1x32xf32>
    %26 = vector.extract_strided_slice %4 {offsets = [10, 0], sizes = [1, 64], strides = [1, 1]} : vector<12x96xf32> to vector<1x64xf32>
    %27 = vector.extract_strided_slice %4 {offsets = [11, 0], sizes = [1, 32], strides = [1, 1]} : vector<12x96xf32> to vector<1x32xf32>
    %cst = arith.constant dense<0.000000e+00> : vector<16xf32>
    %28 = vector.multi_reduction <add>, %15, %cst [1] : vector<16x32xf32> to vector<16xf32>
    %29 = vector.shape_cast %28 : vector<16xf32> to vector<16x1xf32>
    %30 = arith.mulf %15, %15 : vector<16x32xf32>
    %cst_23 = arith.constant dense<0.000000e+00> : vector<16xf32>
    %31 = vector.multi_reduction <add>, %30, %cst_23 [1] : vector<16x32xf32> to vector<16xf32>
    %32 = vector.shape_cast %31 : vector<16xf32> to vector<16x1xf32>
    %cst_24 = arith.constant 3.125000e-02 : f32
    %33 = vector.broadcast %cst_24 : f32 to vector<16x1xf32>
    %34 = arith.mulf %29, %33 : vector<16x1xf32>
    %cst_25 = arith.constant 3.125000e-02 : f32
    %35 = vector.broadcast %cst_25 : f32 to vector<16x1xf32>
    %36 = arith.mulf %32, %35 : vector<16x1xf32>
    %37 = arith.mulf %34, %34 : vector<16x1xf32>
    %38 = arith.subf %36, %37 : vector<16x1xf32>
    %39 = vector.broadcast %34 : vector<16x1xf32> to vector<16x32xf32>
    %40 = arith.subf %15, %39 : vector<16x32xf32>
    %cst_26 = arith.constant 9.99999974E-6 : f32
    %41 = vector.broadcast %cst_26 : f32 to vector<16x1xf32>
    %42 = arith.addf %38, %41 : vector<16x1xf32>
    %43 = math.rsqrt %42 : vector<16x1xf32>
    %44 = vector.broadcast %43 : vector<16x1xf32> to vector<16x32xf32>
    %45 = arith.mulf %40, %44 : vector<16x32xf32>
    %46 = vector.broadcast %16 : vector<1x32xf32> to vector<16x32xf32>
    %47 = arith.mulf %45, %46 : vector<16x32xf32>
    %48 = vector.broadcast %17 : vector<1x32xf32> to vector<16x32xf32>
    %49 = arith.addf %47, %48 : vector<16x32xf32>
    %50 = vector.extract_strided_slice %6 {offsets = [0, 0, 0], sizes = [1, 32, 96], strides = [1, 1, 1]} : vector<2x32x96xbf16> to vector<1x32x96xbf16>
    %51 = vector.shape_cast %50 : vector<1x32x96xbf16> to vector<32x96xbf16>
    %52 = vector.extract_strided_slice %8 {offsets = [0, 0, 0], sizes = [1, 32, 32], strides = [1, 1, 1]} : vector<2x32x32xbf16> to vector<1x32x32xbf16>
    %53 = vector.shape_cast %52 : vector<1x32x32xbf16> to vector<32x32xbf16>
    %54 = arith.truncf %49 : vector<16x32xf32> to vector<16x32xbf16>
    %cst_27 = arith.constant dense<0.000000e+00> : vector<16x96xf32>
    %55 = tpu.matmul %54, %51, %cst_27 {dimension_numbers = #tpu.dot_dimension_numbers<[1], [0], [0], [1], [0, 0, 1, 1], [], []>} : vector<16x32xbf16>, vector<32x96xbf16>, vector<16x96xf32> -> vector<16x96xf32>
    %56 = vector.broadcast %22 : vector<1x96xf32> to vector<16x96xf32>
    %57 = arith.addf %55, %56 : vector<16x96xf32>
    %58 = vector.shape_cast %57 : vector<16x96xf32> to vector<2x8x96xf32>
    %59 = vector.extract_strided_slice %58 {offsets = [0, 0, 0], sizes = [2, 8, 32], strides = [1, 1, 1]} : vector<2x8x96xf32> to vector<2x8x32xf32>
    %60 = vector.extract_strided_slice %58 {offsets = [0, 0, 32], sizes = [2, 8, 32], strides = [1, 1, 1]} : vector<2x8x96xf32> to vector<2x8x32xf32>
    %61 = vector.extract_strided_slice %58 {offsets = [0, 0, 64], sizes = [2, 8, 32], strides = [1, 1, 1]} : vector<2x8x96xf32> to vector<2x8x32xf32>
    %62 = arith.truncf %59 : vector<2x8x32xf32> to vector<2x8x32xbf16>
    %63 = arith.truncf %60 : vector<2x8x32xf32> to vector<2x8x32xbf16>
    %64 = arith.truncf %61 : vector<2x8x32xf32> to vector<2x8x32xbf16>
    %65 = vector.extract_strided_slice %62 {offsets = [0, 0, 0], sizes = [2, 8, 8], strides = [1, 1, 1]} : vector<2x8x32xbf16> to vector<2x8x8xbf16>
    %66 = vector.extract_strided_slice %63 {offsets = [0, 0, 0], sizes = [2, 8, 8], strides = [1, 1, 1]} : vector<2x8x32xbf16> to vector<2x8x8xbf16>
    "tpu.trace_start"() <{level = 10 : i32, message = "btd,bsd->bts"}> : () -> ()
    %cst_28 = arith.constant dense<0.000000e+00> : vector<2x8x8xf32>
    %67 = tpu.matmul %65, %66, %cst_28 {dimension_numbers = #tpu.dot_dimension_numbers<[2], [2], [1], [1], [0, 0, 0, 1, 1, 1], [0], [0]>} : vector<2x8x8xbf16>, vector<2x8x8xbf16>, vector<2x8x8xf32> -> vector<2x8x8xf32>
    "tpu.trace_stop"() : () -> ()
    %cst_29 = arith.constant dense<0xFF800000> : vector<2x8xf32>
    %68 = vector.multi_reduction <maximumf>, %67, %cst_29 [2] : vector<2x8x8xf32> to vector<2x8xf32>
    %69 = vector.shape_cast %68 : vector<2x8xf32> to vector<2x8x1xf32>
    %70 = vector.broadcast %69 : vector<2x8x1xf32> to vector<2x8x8xf32>
    %71 = arith.subf %67, %70 : vector<2x8x8xf32>
    %72 = math.exp %71 : vector<2x8x8xf32>
    %cst_30 = arith.constant dense<0.000000e+00> : vector<2x8xf32>
    %73 = vector.multi_reduction <add>, %72, %cst_30 [2] : vector<2x8x8xf32> to vector<2x8xf32>
    %74 = vector.shape_cast %73 : vector<2x8xf32> to vector<2x8x1xf32>
    %75 = tpu.reciprocal %74 {approx = true} : vector<2x8x1xf32> -> vector<2x8x1xf32>
    %76 = vector.broadcast %75 : vector<2x8x1xf32> to vector<2x8x8xf32>
    %77 = arith.mulf %72, %76 : vector<2x8x8xf32>
    %78 = arith.truncf %77 : vector<2x8x8xf32> to vector<2x8x8xbf16>
    %79 = vector.extract_strided_slice %64 {offsets = [0, 0, 0], sizes = [2, 8, 8], strides = [1, 1, 1]} : vector<2x8x32xbf16> to vector<2x8x8xbf16>
    "tpu.trace_start"() <{level = 10 : i32, message = "bts,bsd->btd"}> : () -> ()
    %cst_31 = arith.constant dense<0.000000e+00> : vector<2x8x8xf32>
    %80 = tpu.matmul %78, %79, %cst_31 {dimension_numbers = #tpu.dot_dimension_numbers<[2], [1], [1], [2], [0, 0, 0, 1, 1, 2], [0], [0]>} : vector<2x8x8xbf16>, vector<2x8x8xbf16>, vector<2x8x8xf32> -> vector<2x8x8xf32>
    "tpu.trace_stop"() : () -> ()
    %c0_32 = arith.constant 0 : index
    %c0_33 = arith.constant 0 : index
    %c0_34 = arith.constant 0 : index
    %81 = vector.load %arg9[%c0_32, %c0_33, %c0_34] : memref<2x8x32xf32, #tpu.memory_space<vmem>>, vector<2x8x8xf32>
    tpu.vector_store %arg9[%c0_32, %c0_33, %c0_34], %80 {strides = array<i32>} : memref<2x8x32xf32, #tpu.memory_space<vmem>>, vector<2x8x8xf32>,
    %82 = vector.extract_strided_slice %62 {offsets = [0, 0, 8], sizes = [2, 8, 8], strides = [1, 1, 1]} : vector<2x8x32xbf16> to vector<2x8x8xbf16>
    %83 = vector.extract_strided_slice %63 {offsets = [0, 0, 8], sizes = [2, 8, 8], strides = [1, 1, 1]} : vector<2x8x32xbf16> to vector<2x8x8xbf16>
    "tpu.trace_start"() <{level = 10 : i32, message = "btd,bsd->bts"}> : () -> ()
    %cst_35 = arith.constant dense<0.000000e+00> : vector<2x8x8xf32>
    %84 = tpu.matmul %82, %83, %cst_35 {dimension_numbers = #tpu.dot_dimension_numbers<[2], [2], [1], [1], [0, 0, 0, 1, 1, 1], [0], [0]>} : vector<2x8x8xbf16>, vector<2x8x8xbf16>, vector<2x8x8xf32> -> vector<2x8x8xf32>
    "tpu.trace_stop"() : () -> ()
    %cst_36 = arith.constant dense<0xFF800000> : vector<2x8xf32>
    %85 = vector.multi_reduction <maximumf>, %84, %cst_36 [2] : vector<2x8x8xf32> to vector<2x8xf32>
    %86 = vector.shape_cast %85 : vector<2x8xf32> to vector<2x8x1xf32>
    %87 = vector.broadcast %86 : vector<2x8x1xf32> to vector<2x8x8xf32>
    %88 = arith.subf %84, %87 : vector<2x8x8xf32>
    %89 = math.exp %88 : vector<2x8x8xf32>
    %cst_37 = arith.constant dense<0.000000e+00> : vector<2x8xf32>
    %90 = vector.multi_reduction <add>, %89, %cst_37 [2] : vector<2x8x8xf32> to vector<2x8xf32>
    %91 = vector.shape_cast %90 : vector<2x8xf32> to vector<2x8x1xf32>
    %92 = tpu.reciprocal %91 {approx = true} : vector<2x8x1xf32> -> vector<2x8x1xf32>
    %93 = vector.broadcast %92 : vector<2x8x1xf32> to vector<2x8x8xf32>
    %94 = arith.mulf %89, %93 : vector<2x8x8xf32>
    %95 = arith.truncf %94 : vector<2x8x8xf32> to vector<2x8x8xbf16>
    %96 = vector.extract_strided_slice %64 {offsets = [0, 0, 8], sizes = [2, 8, 8], strides = [1, 1, 1]} : vector<2x8x32xbf16> to vector<2x8x8xbf16>
    "tpu.trace_start"() <{level = 10 : i32, message = "bts,bsd->btd"}> : () -> ()
    %cst_38 = arith.constant dense<0.000000e+00> : vector<2x8x8xf32>
    %97 = tpu.matmul %95, %96, %cst_38 {dimension_numbers = #tpu.dot_dimension_numbers<[2], [1], [1], [2], [0, 0, 0, 1, 1, 2], [0], [0]>} : vector<2x8x8xbf16>, vector<2x8x8xbf16>, vector<2x8x8xf32> -> vector<2x8x8xf32>
    "tpu.trace_stop"() : () -> ()
    %c0_39 = arith.constant 0 : index
    %c0_40 = arith.constant 0 : index
    %c8 = arith.constant 8 : index
    %98 = vector.load %arg9[%c0_39, %c0_40, %c8] : memref<2x8x32xf32, #tpu.memory_space<vmem>>, vector<2x8x8xf32>
    tpu.vector_store %arg9[%c0_39, %c0_40, %c8], %97 {strides = array<i32>} : memref<2x8x32xf32, #tpu.memory_space<vmem>>, vector<2x8x8xf32>,
    %99 = vector.extract_strided_slice %62 {offsets = [0, 0, 16], sizes = [2, 8, 8], strides = [1, 1, 1]} : vector<2x8x32xbf16> to vector<2x8x8xbf16>
    %100 = vector.extract_strided_slice %63 {offsets = [0, 0, 16], sizes = [2, 8, 8], strides = [1, 1, 1]} : vector<2x8x32xbf16> to vector<2x8x8xbf16>
    "tpu.trace_start"() <{level = 10 : i32, message = "btd,bsd->bts"}> : () -> ()
    %cst_41 = arith.constant dense<0.000000e+00> : vector<2x8x8xf32>
    %101 = tpu.matmul %99, %100, %cst_41 {dimension_numbers = #tpu.dot_dimension_numbers<[2], [2], [1], [1], [0, 0, 0, 1, 1, 1], [0], [0]>} : vector<2x8x8xbf16>, vector<2x8x8xbf16>, vector<2x8x8xf32> -> vector<2x8x8xf32>
    "tpu.trace_stop"() : () -> ()
    %cst_42 = arith.constant dense<0xFF800000> : vector<2x8xf32>
    %102 = vector.multi_reduction <maximumf>, %101, %cst_42 [2] : vector<2x8x8xf32> to vector<2x8xf32>
    %103 = vector.shape_cast %102 : vector<2x8xf32> to vector<2x8x1xf32>
    %104 = vector.broadcast %103 : vector<2x8x1xf32> to vector<2x8x8xf32>
    %105 = arith.subf %101, %104 : vector<2x8x8xf32>
    %106 = math.exp %105 : vector<2x8x8xf32>
    %cst_43 = arith.constant dense<0.000000e+00> : vector<2x8xf32>
    %107 = vector.multi_reduction <add>, %106, %cst_43 [2] : vector<2x8x8xf32> to vector<2x8xf32>
    %108 = vector.shape_cast %107 : vector<2x8xf32> to vector<2x8x1xf32>
    %109 = tpu.reciprocal %108 {approx = true} : vector<2x8x1xf32> -> vector<2x8x1xf32>
    %110 = vector.broadcast %109 : vector<2x8x1xf32> to vector<2x8x8xf32>
    %111 = arith.mulf %106, %110 : vector<2x8x8xf32>
    %112 = arith.truncf %111 : vector<2x8x8xf32> to vector<2x8x8xbf16>
    %113 = vector.extract_strided_slice %64 {offsets = [0, 0, 16], sizes = [2, 8, 8], strides = [1, 1, 1]} : vector<2x8x32xbf16> to vector<2x8x8xbf16>
    "tpu.trace_start"() <{level = 10 : i32, message = "bts,bsd->btd"}> : () -> ()
    %cst_44 = arith.constant dense<0.000000e+00> : vector<2x8x8xf32>
    %114 = tpu.matmul %112, %113, %cst_44 {dimension_numbers = #tpu.dot_dimension_numbers<[2], [1], [1], [2], [0, 0, 0, 1, 1, 2], [0], [0]>} : vector<2x8x8xbf16>, vector<2x8x8xbf16>, vector<2x8x8xf32> -> vector<2x8x8xf32>
    "tpu.trace_stop"() : () -> ()
    %c0_45 = arith.constant 0 : index
    %c0_46 = arith.constant 0 : index
    %c16 = arith.constant 16 : index
    %115 = vector.load %arg9[%c0_45, %c0_46, %c16] : memref<2x8x32xf32, #tpu.memory_space<vmem>>, vector<2x8x8xf32>
    tpu.vector_store %arg9[%c0_45, %c0_46, %c16], %114 {strides = array<i32>} : memref<2x8x32xf32, #tpu.memory_space<vmem>>, vector<2x8x8xf32>,
    %116 = vector.extract_strided_slice %62 {offsets = [0, 0, 24], sizes = [2, 8, 8], strides = [1, 1, 1]} : vector<2x8x32xbf16> to vector<2x8x8xbf16>
    %117 = vector.extract_strided_slice %63 {offsets = [0, 0, 24], sizes = [2, 8, 8], strides = [1, 1, 1]} : vector<2x8x32xbf16> to vector<2x8x8xbf16>
    "tpu.trace_start"() <{level = 10 : i32, message = "btd,bsd->bts"}> : () -> ()
    %cst_47 = arith.constant dense<0.000000e+00> : vector<2x8x8xf32>
    %118 = tpu.matmul %116, %117, %cst_47 {dimension_numbers = #tpu.dot_dimension_numbers<[2], [2], [1], [1], [0, 0, 0, 1, 1, 1], [0], [0]>} : vector<2x8x8xbf16>, vector<2x8x8xbf16>, vector<2x8x8xf32> -> vector<2x8x8xf32>
    "tpu.trace_stop"() : () -> ()
    %cst_48 = arith.constant dense<0xFF800000> : vector<2x8xf32>
    %119 = vector.multi_reduction <maximumf>, %118, %cst_48 [2] : vector<2x8x8xf32> to vector<2x8xf32>
    %120 = vector.shape_cast %119 : vector<2x8xf32> to vector<2x8x1xf32>
    %121 = vector.broadcast %120 : vector<2x8x1xf32> to vector<2x8x8xf32>
    %122 = arith.subf %118, %121 : vector<2x8x8xf32>
    %123 = math.exp %122 : vector<2x8x8xf32>
    %cst_49 = arith.constant dense<0.000000e+00> : vector<2x8xf32>
    %124 = vector.multi_reduction <add>, %123, %cst_49 [2] : vector<2x8x8xf32> to vector<2x8xf32>
    %125 = vector.shape_cast %124 : vector<2x8xf32> to vector<2x8x1xf32>
    %126 = tpu.reciprocal %125 {approx = true} : vector<2x8x1xf32> -> vector<2x8x1xf32>
    %127 = vector.broadcast %126 : vector<2x8x1xf32> to vector<2x8x8xf32>
    %128 = arith.mulf %123, %127 : vector<2x8x8xf32>
    %129 = arith.truncf %128 : vector<2x8x8xf32> to vector<2x8x8xbf16>
    %130 = vector.extract_strided_slice %64 {offsets = [0, 0, 24], sizes = [2, 8, 8], strides = [1, 1, 1]} : vector<2x8x32xbf16> to vector<2x8x8xbf16>
    "tpu.trace_start"() <{level = 10 : i32, message = "bts,bsd->btd"}> : () -> ()
    %cst_50 = arith.constant dense<0.000000e+00> : vector<2x8x8xf32>
    %131 = tpu.matmul %129, %130, %cst_50 {dimension_numbers = #tpu.dot_dimension_numbers<[2], [1], [1], [2], [0, 0, 0, 1, 1, 2], [0], [0]>} : vector<2x8x8xbf16>, vector<2x8x8xbf16>, vector<2x8x8xf32> -> vector<2x8x8xf32>
    "tpu.trace_stop"() : () -> ()
    %c0_51 = arith.constant 0 : index
    %c0_52 = arith.constant 0 : index
    %c24 = arith.constant 24 : index
    %132 = vector.load %arg9[%c0_51, %c0_52, %c24] : memref<2x8x32xf32, #tpu.memory_space<vmem>>, vector<2x8x8xf32>
    tpu.vector_store %arg9[%c0_51, %c0_52, %c24], %131 {strides = array<i32>} : memref<2x8x32xf32, #tpu.memory_space<vmem>>, vector<2x8x8xf32>,
    %c0_53 = arith.constant 0 : index
    %c0_54 = arith.constant 0 : index
    %c0_55 = arith.constant 0 : index
    %133 = vector.load %arg9[%c0_53, %c0_54, %c0_55] : memref<2x8x32xf32, #tpu.memory_space<vmem>>, vector<2x8x32xf32>
    %134 = vector.shape_cast %133 : vector<2x8x32xf32> to vector<16x32xf32>
    %135 = arith.truncf %134 : vector<16x32xf32> to vector<16x32xbf16>
    %cst_56 = arith.constant dense<0.000000e+00> : vector<16x32xf32>
    %136 = tpu.matmul %135, %53, %cst_56 {dimension_numbers = #tpu.dot_dimension_numbers<[1], [0], [0], [1], [0, 0, 1, 1], [], []>} : vector<16x32xbf16>, vector<32x32xbf16>, vector<16x32xf32> -> vector<16x32xf32>
    %137 = vector.broadcast %24 : vector<1x32xf32> to vector<16x32xf32>
    %138 = arith.addf %136, %137 : vector<16x32xf32>
    %139 = arith.addf %15, %138 : vector<16x32xf32>
    %cst_57 = arith.constant dense<0.000000e+00> : vector<16xf32>
    %140 = vector.multi_reduction <add>, %139, %cst_57 [1] : vector<16x32xf32> to vector<16xf32>
    %141 = vector.shape_cast %140 : vector<16xf32> to vector<16x1xf32>
    %142 = arith.mulf %139, %139 : vector<16x32xf32>
    %cst_58 = arith.constant dense<0.000000e+00> : vector<16xf32>
    %143 = vector.multi_reduction <add>, %142, %cst_58 [1] : vector<16x32xf32> to vector<16xf32>
    %144 = vector.shape_cast %143 : vector<16xf32> to vector<16x1xf32>
    %cst_59 = arith.constant 3.125000e-02 : f32
    %145 = vector.broadcast %cst_59 : f32 to vector<16x1xf32>
    %146 = arith.mulf %141, %145 : vector<16x1xf32>
    %cst_60 = arith.constant 3.125000e-02 : f32
    %147 = vector.broadcast %cst_60 : f32 to vector<16x1xf32>
    %148 = arith.mulf %144, %147 : vector<16x1xf32>
    %149 = arith.mulf %146, %146 : vector<16x1xf32>
    %150 = arith.subf %148, %149 : vector<16x1xf32>
    %151 = vector.broadcast %146 : vector<16x1xf32> to vector<16x32xf32>
    %152 = arith.subf %139, %151 : vector<16x32xf32>
    %cst_61 = arith.constant 9.99999974E-6 : f32
    %153 = vector.broadcast %cst_61 : f32 to vector<16x1xf32>
    %154 = arith.addf %150, %153 : vector<16x1xf32>
    %155 = math.rsqrt %154 : vector<16x1xf32>
    %156 = vector.broadcast %155 : vector<16x1xf32> to vector<16x32xf32>
    %157 = arith.mulf %152, %156 : vector<16x32xf32>
    %158 = vector.broadcast %18 : vector<1x32xf32> to vector<16x32xf32>
    %159 = arith.mulf %157, %158 : vector<16x32xf32>
    %160 = vector.broadcast %19 : vector<1x32xf32> to vector<16x32xf32>
    %161 = arith.addf %159, %160 : vector<16x32xf32>
    %162 = vector.extract_strided_slice %6 {offsets = [1, 0, 0], sizes = [1, 32, 96], strides = [1, 1, 1]} : vector<2x32x96xbf16> to vector<1x32x96xbf16>
    %163 = vector.shape_cast %162 : vector<1x32x96xbf16> to vector<32x96xbf16>
    %164 = vector.extract_strided_slice %8 {offsets = [1, 0, 0], sizes = [1, 32, 32], strides = [1, 1, 1]} : vector<2x32x32xbf16> to vector<1x32x32xbf16>
    %165 = vector.shape_cast %164 : vector<1x32x32xbf16> to vector<32x32xbf16>
    %166 = vector.extract_strided_slice %163 {offsets = [0, 0], sizes = [32, 32], strides = [1, 1]} : vector<32x96xbf16> to vector<32x32xbf16>
    %167 = arith.truncf %161 : vector<16x32xf32> to vector<16x32xbf16>
    %cst_62 = arith.constant dense<0.000000e+00> : vector<16x32xf32>
    %168 = tpu.matmul %167, %166, %cst_62 {dimension_numbers = #tpu.dot_dimension_numbers<[1], [0], [0], [1], [0, 0, 1, 1], [], []>} : vector<16x32xbf16>, vector<32x32xbf16>, vector<16x32xf32> -> vector<16x32xf32>
    %169 = vector.extract_strided_slice %23 {offsets = [0, 0], sizes = [1, 32], strides = [1, 1]} : vector<1x96xf32> to vector<1x32xf32>
    %170 = vector.broadcast %169 : vector<1x32xf32> to vector<16x32xf32>
    %171 = arith.addf %168, %170 : vector<16x32xf32>
    %172 = vector.shape_cast %171 : vector<16x32xf32> to vector<2x8x32xf32>
    %173 = vector.shape_cast %14 : vector<2x8x32xf32> to vector<16x32xf32>
    %174 = vector.extract_strided_slice %163 {offsets = [0, 32], sizes = [32, 64], strides = [1, 1]} : vector<32x96xbf16> to vector<32x64xbf16>
    %175 = arith.truncf %173 : vector<16x32xf32> to vector<16x32xbf16>
    %cst_63 = arith.constant dense<0.000000e+00> : vector<16x64xf32>
    %176 = tpu.matmul %175, %174, %cst_63 {dimension_numbers = #tpu.dot_dimension_numbers<[1], [0], [0], [1], [0, 0, 1, 1], [], []>} : vector<16x32xbf16>, vector<32x64xbf16>, vector<16x64xf32> -> vector<16x64xf32>
    %177 = vector.extract_strided_slice %23 {offsets = [0, 32], sizes = [1, 64], strides = [1, 1]} : vector<1x96xf32> to vector<1x64xf32>
    %178 = vector.broadcast %177 : vector<1x64xf32> to vector<16x64xf32>
    %179 = arith.addf %176, %178 : vector<16x64xf32>
    %180 = vector.shape_cast %179 : vector<16x64xf32> to vector<2x8x64xf32>
    %181 = vector.extract_strided_slice %180 {offsets = [0, 0, 0], sizes = [2, 8, 32], strides = [1, 1, 1]} : vector<2x8x64xf32> to vector<2x8x32xf32>
    %182 = vector.extract_strided_slice %180 {offsets = [0, 0, 32], sizes = [2, 8, 32], strides = [1, 1, 1]} : vector<2x8x64xf32> to vector<2x8x32xf32>
    %183 = arith.truncf %172 : vector<2x8x32xf32> to vector<2x8x32xbf16>
    %184 = arith.truncf %181 : vector<2x8x32xf32> to vector<2x8x32xbf16>
    %185 = arith.truncf %182 : vector<2x8x32xf32> to vector<2x8x32xbf16>
    %186 = vector.extract_strided_slice %183 {offsets = [0, 0, 0], sizes = [2, 8, 8], strides = [1, 1, 1]} : vector<2x8x32xbf16> to vector<2x8x8xbf16>
    %187 = vector.extract_strided_slice %184 {offsets = [0, 0, 0], sizes = [2, 8, 8], strides = [1, 1, 1]} : vector<2x8x32xbf16> to vector<2x8x8xbf16>
    "tpu.trace_start"() <{level = 10 : i32, message = "btd,bsd->bts"}> : () -> ()
    %cst_64 = arith.constant dense<0.000000e+00> : vector<2x8x8xf32>
    %188 = tpu.matmul %186, %187, %cst_64 {dimension_numbers = #tpu.dot_dimension_numbers<[2], [2], [1], [1], [0, 0, 0, 1, 1, 1], [0], [0]>} : vector<2x8x8xbf16>, vector<2x8x8xbf16>, vector<2x8x8xf32> -> vector<2x8x8xf32>
    "tpu.trace_stop"() : () -> ()
    %cst_65 = arith.constant dense<0xFF800000> : vector<2x8xf32>
    %189 = vector.multi_reduction <maximumf>, %188, %cst_65 [2] : vector<2x8x8xf32> to vector<2x8xf32>
    %190 = vector.shape_cast %189 : vector<2x8xf32> to vector<2x8x1xf32>
    %191 = vector.broadcast %190 : vector<2x8x1xf32> to vector<2x8x8xf32>
    %192 = arith.subf %188, %191 : vector<2x8x8xf32>
    %193 = math.exp %192 : vector<2x8x8xf32>
    %cst_66 = arith.constant dense<0.000000e+00> : vector<2x8xf32>
    %194 = vector.multi_reduction <add>, %193, %cst_66 [2] : vector<2x8x8xf32> to vector<2x8xf32>
    %195 = vector.shape_cast %194 : vector<2x8xf32> to vector<2x8x1xf32>
    %196 = tpu.reciprocal %195 {approx = true} : vector<2x8x1xf32> -> vector<2x8x1xf32>
    %197 = vector.broadcast %196 : vector<2x8x1xf32> to vector<2x8x8xf32>
    %198 = arith.mulf %193, %197 : vector<2x8x8xf32>
    %199 = arith.truncf %198 : vector<2x8x8xf32> to vector<2x8x8xbf16>
    %200 = vector.extract_strided_slice %185 {offsets = [0, 0, 0], sizes = [2, 8, 8], strides = [1, 1, 1]} : vector<2x8x32xbf16> to vector<2x8x8xbf16>
    "tpu.trace_start"() <{level = 10 : i32, message = "bts,bsd->btd"}> : () -> ()
    %cst_67 = arith.constant dense<0.000000e+00> : vector<2x8x8xf32>
    %201 = tpu.matmul %199, %200, %cst_67 {dimension_numbers = #tpu.dot_dimension_numbers<[2], [1], [1], [2], [0, 0, 0, 1, 1, 2], [0], [0]>} : vector<2x8x8xbf16>, vector<2x8x8xbf16>, vector<2x8x8xf32> -> vector<2x8x8xf32>
    "tpu.trace_stop"() : () -> ()
    %c0_68 = arith.constant 0 : index
    %c0_69 = arith.constant 0 : index
    %c0_70 = arith.constant 0 : index
    %202 = vector.load %arg9[%c0_68, %c0_69, %c0_70] : memref<2x8x32xf32, #tpu.memory_space<vmem>>, vector<2x8x8xf32>
    tpu.vector_store %arg9[%c0_68, %c0_69, %c0_70], %201 {strides = array<i32>} : memref<2x8x32xf32, #tpu.memory_space<vmem>>, vector<2x8x8xf32>,
    %203 = vector.extract_strided_slice %183 {offsets = [0, 0, 8], sizes = [2, 8, 8], strides = [1, 1, 1]} : vector<2x8x32xbf16> to vector<2x8x8xbf16>
    %204 = vector.extract_strided_slice %184 {offsets = [0, 0, 8], sizes = [2, 8, 8], strides = [1, 1, 1]} : vector<2x8x32xbf16> to vector<2x8x8xbf16>
    "tpu.trace_start"() <{level = 10 : i32, message = "btd,bsd->bts"}> : () -> ()
    %cst_71 = arith.constant dense<0.000000e+00> : vector<2x8x8xf32>
    %205 = tpu.matmul %203, %204, %cst_71 {dimension_numbers = #tpu.dot_dimension_numbers<[2], [2], [1], [1], [0, 0, 0, 1, 1, 1], [0], [0]>} : vector<2x8x8xbf16>, vector<2x8x8xbf16>, vector<2x8x8xf32> -> vector<2x8x8xf32>
    "tpu.trace_stop"() : () -> ()
    %cst_72 = arith.constant dense<0xFF800000> : vector<2x8xf32>
    %206 = vector.multi_reduction <maximumf>, %205, %cst_72 [2] : vector<2x8x8xf32> to vector<2x8xf32>
    %207 = vector.shape_cast %206 : vector<2x8xf32> to vector<2x8x1xf32>
    %208 = vector.broadcast %207 : vector<2x8x1xf32> to vector<2x8x8xf32>
    %209 = arith.subf %205, %208 : vector<2x8x8xf32>
    %210 = math.exp %209 : vector<2x8x8xf32>
    %cst_73 = arith.constant dense<0.000000e+00> : vector<2x8xf32>
    %211 = vector.multi_reduction <add>, %210, %cst_73 [2] : vector<2x8x8xf32> to vector<2x8xf32>
    %212 = vector.shape_cast %211 : vector<2x8xf32> to vector<2x8x1xf32>
    %213 = tpu.reciprocal %212 {approx = true} : vector<2x8x1xf32> -> vector<2x8x1xf32>
    %214 = vector.broadcast %213 : vector<2x8x1xf32> to vector<2x8x8xf32>
    %215 = arith.mulf %210, %214 : vector<2x8x8xf32>
    %216 = arith.truncf %215 : vector<2x8x8xf32> to vector<2x8x8xbf16>
    %217 = vector.extract_strided_slice %185 {offsets = [0, 0, 8], sizes = [2, 8, 8], strides = [1, 1, 1]} : vector<2x8x32xbf16> to vector<2x8x8xbf16>
    "tpu.trace_start"() <{level = 10 : i32, message = "bts,bsd->btd"}> : () -> ()
    %cst_74 = arith.constant dense<0.000000e+00> : vector<2x8x8xf32>
    %218 = tpu.matmul %216, %217, %cst_74 {dimension_numbers = #tpu.dot_dimension_numbers<[2], [1], [1], [2], [0, 0, 0, 1, 1, 2], [0], [0]>} : vector<2x8x8xbf16>, vector<2x8x8xbf16>, vector<2x8x8xf32> -> vector<2x8x8xf32>
    "tpu.trace_stop"() : () -> ()
    %c0_75 = arith.constant 0 : index
    %c0_76 = arith.constant 0 : index
    %c8_77 = arith.constant 8 : index
    %219 = vector.load %arg9[%c0_75, %c0_76, %c8_77] : memref<2x8x32xf32, #tpu.memory_space<vmem>>, vector<2x8x8xf32>
    tpu.vector_store %arg9[%c0_75, %c0_76, %c8_77], %218 {strides = array<i32>} : memref<2x8x32xf32, #tpu.memory_space<vmem>>, vector<2x8x8xf32>,
    %220 = vector.extract_strided_slice %183 {offsets = [0, 0, 16], sizes = [2, 8, 8], strides = [1, 1, 1]} : vector<2x8x32xbf16> to vector<2x8x8xbf16>
    %221 = vector.extract_strided_slice %184 {offsets = [0, 0, 16], sizes = [2, 8, 8], strides = [1, 1, 1]} : vector<2x8x32xbf16> to vector<2x8x8xbf16>
    "tpu.trace_start"() <{level = 10 : i32, message = "btd,bsd->bts"}> : () -> ()
    %cst_78 = arith.constant dense<0.000000e+00> : vector<2x8x8xf32>
    %222 = tpu.matmul %220, %221, %cst_78 {dimension_numbers = #tpu.dot_dimension_numbers<[2], [2], [1], [1], [0, 0, 0, 1, 1, 1], [0], [0]>} : vector<2x8x8xbf16>, vector<2x8x8xbf16>, vector<2x8x8xf32> -> vector<2x8x8xf32>
    "tpu.trace_stop"() : () -> ()
    %cst_79 = arith.constant dense<0xFF800000> : vector<2x8xf32>
    %223 = vector.multi_reduction <maximumf>, %222, %cst_79 [2] : vector<2x8x8xf32> to vector<2x8xf32>
    %224 = vector.shape_cast %223 : vector<2x8xf32> to vector<2x8x1xf32>
    %225 = vector.broadcast %224 : vector<2x8x1xf32> to vector<2x8x8xf32>
    %226 = arith.subf %222, %225 : vector<2x8x8xf32>
    %227 = math.exp %226 : vector<2x8x8xf32>
    %cst_80 = arith.constant dense<0.000000e+00> : vector<2x8xf32>
    %228 = vector.multi_reduction <add>, %227, %cst_80 [2] : vector<2x8x8xf32> to vector<2x8xf32>
    %229 = vector.shape_cast %228 : vector<2x8xf32> to vector<2x8x1xf32>
    %230 = tpu.reciprocal %229 {approx = true} : vector<2x8x1xf32> -> vector<2x8x1xf32>
    %231 = vector.broadcast %230 : vector<2x8x1xf32> to vector<2x8x8xf32>
    %232 = arith.mulf %227, %231 : vector<2x8x8xf32>
    %233 = arith.truncf %232 : vector<2x8x8xf32> to vector<2x8x8xbf16>
    %234 = vector.extract_strided_slice %185 {offsets = [0, 0, 16], sizes = [2, 8, 8], strides = [1, 1, 1]} : vector<2x8x32xbf16> to vector<2x8x8xbf16>
    "tpu.trace_start"() <{level = 10 : i32, message = "bts,bsd->btd"}> : () -> ()
    %cst_81 = arith.constant dense<0.000000e+00> : vector<2x8x8xf32>
    %235 = tpu.matmul %233, %234, %cst_81 {dimension_numbers = #tpu.dot_dimension_numbers<[2], [1], [1], [2], [0, 0, 0, 1, 1, 2], [0], [0]>} : vector<2x8x8xbf16>, vector<2x8x8xbf16>, vector<2x8x8xf32> -> vector<2x8x8xf32>
    "tpu.trace_stop"() : () -> ()
    %c0_82 = arith.constant 0 : index
    %c0_83 = arith.constant 0 : index
    %c16_84 = arith.constant 16 : index
    %236 = vector.load %arg9[%c0_82, %c0_83, %c16_84] : memref<2x8x32xf32, #tpu.memory_space<vmem>>, vector<2x8x8xf32>
    tpu.vector_store %arg9[%c0_82, %c0_83, %c16_84], %235 {strides = array<i32>} : memref<2x8x32xf32, #tpu.memory_space<vmem>>, vector<2x8x8xf32>,
    %237 = vector.extract_strided_slice %183 {offsets = [0, 0, 24], sizes = [2, 8, 8], strides = [1, 1, 1]} : vector<2x8x32xbf16> to vector<2x8x8xbf16>
    %238 = vector.extract_strided_slice %184 {offsets = [0, 0, 24], sizes = [2, 8, 8], strides = [1, 1, 1]} : vector<2x8x32xbf16> to vector<2x8x8xbf16>
    "tpu.trace_start"() <{level = 10 : i32, message = "btd,bsd->bts"}> : () -> ()
    %cst_85 = arith.constant dense<0.000000e+00> : vector<2x8x8xf32>
    %239 = tpu.matmul %237, %238, %cst_85 {dimension_numbers = #tpu.dot_dimension_numbers<[2], [2], [1], [1], [0, 0, 0, 1, 1, 1], [0], [0]>} : vector<2x8x8xbf16>, vector<2x8x8xbf16>, vector<2x8x8xf32> -> vector<2x8x8xf32>
    "tpu.trace_stop"() : () -> ()
    %cst_86 = arith.constant dense<0xFF800000> : vector<2x8xf32>
    %240 = vector.multi_reduction <maximumf>, %239, %cst_86 [2] : vector<2x8x8xf32> to vector<2x8xf32>
    %241 = vector.shape_cast %240 : vector<2x8xf32> to vector<2x8x1xf32>
    %242 = vector.broadcast %241 : vector<2x8x1xf32> to vector<2x8x8xf32>
    %243 = arith.subf %239, %242 : vector<2x8x8xf32>
    %244 = math.exp %243 : vector<2x8x8xf32>
    %cst_87 = arith.constant dense<0.000000e+00> : vector<2x8xf32>
    %245 = vector.multi_reduction <add>, %244, %cst_87 [2] : vector<2x8x8xf32> to vector<2x8xf32>
    %246 = vector.shape_cast %245 : vector<2x8xf32> to vector<2x8x1xf32>
    %247 = tpu.reciprocal %246 {approx = true} : vector<2x8x1xf32> -> vector<2x8x1xf32>
    %248 = vector.broadcast %247 : vector<2x8x1xf32> to vector<2x8x8xf32>
    %249 = arith.mulf %244, %248 : vector<2x8x8xf32>
    %250 = arith.truncf %249 : vector<2x8x8xf32> to vector<2x8x8xbf16>
    %251 = vector.extract_strided_slice %185 {offsets = [0, 0, 24], sizes = [2, 8, 8], strides = [1, 1, 1]} : vector<2x8x32xbf16> to vector<2x8x8xbf16>
    "tpu.trace_start"() <{level = 10 : i32, message = "bts,bsd->btd"}> : () -> ()
    %cst_88 = arith.constant dense<0.000000e+00> : vector<2x8x8xf32>
    %252 = tpu.matmul %250, %251, %cst_88 {dimension_numbers = #tpu.dot_dimension_numbers<[2], [1], [1], [2], [0, 0, 0, 1, 1, 2], [0], [0]>} : vector<2x8x8xbf16>, vector<2x8x8xbf16>, vector<2x8x8xf32> -> vector<2x8x8xf32>
    "tpu.trace_stop"() : () -> ()
    %c0_89 = arith.constant 0 : index
    %c0_90 = arith.constant 0 : index
    %c24_91 = arith.constant 24 : index
    %253 = vector.load %arg9[%c0_89, %c0_90, %c24_91] : memref<2x8x32xf32, #tpu.memory_space<vmem>>, vector<2x8x8xf32>
    tpu.vector_store %arg9[%c0_89, %c0_90, %c24_91], %252 {strides = array<i32>} : memref<2x8x32xf32, #tpu.memory_space<vmem>>, vector<2x8x8xf32>,
    %c0_92 = arith.constant 0 : index
    %c0_93 = arith.constant 0 : index
    %c0_94 = arith.constant 0 : index
    %254 = vector.load %arg9[%c0_92, %c0_93, %c0_94] : memref<2x8x32xf32, #tpu.memory_space<vmem>>, vector<2x8x32xf32>
    %255 = vector.shape_cast %254 : vector<2x8x32xf32> to vector<16x32xf32>
    %256 = arith.truncf %255 : vector<16x32xf32> to vector<16x32xbf16>
    %cst_95 = arith.constant dense<0.000000e+00> : vector<16x32xf32>
    %257 = tpu.matmul %256, %165, %cst_95 {dimension_numbers = #tpu.dot_dimension_numbers<[1], [0], [0], [1], [0, 0, 1, 1], [], []>} : vector<16x32xbf16>, vector<32x32xbf16>, vector<16x32xf32> -> vector<16x32xf32>
    %258 = vector.broadcast %25 : vector<1x32xf32> to vector<16x32xf32>
    %259 = arith.addf %257, %258 : vector<16x32xf32>
    %260 = arith.addf %139, %259 : vector<16x32xf32>
    %cst_96 = arith.constant dense<0.000000e+00> : vector<16xf32>
    %261 = vector.multi_reduction <add>, %260, %cst_96 [1] : vector<16x32xf32> to vector<16xf32>
    %262 = vector.shape_cast %261 : vector<16xf32> to vector<16x1xf32>
    %263 = arith.mulf %260, %260 : vector<16x32xf32>
    %cst_97 = arith.constant dense<0.000000e+00> : vector<16xf32>
    %264 = vector.multi_reduction <add>, %263, %cst_97 [1] : vector<16x32xf32> to vector<16xf32>
    %265 = vector.shape_cast %264 : vector<16xf32> to vector<16x1xf32>
    %cst_98 = arith.constant 3.125000e-02 : f32
    %266 = vector.broadcast %cst_98 : f32 to vector<16x1xf32>
    %267 = arith.mulf %262, %266 : vector<16x1xf32>
    %cst_99 = arith.constant 3.125000e-02 : f32
    %268 = vector.broadcast %cst_99 : f32 to vector<16x1xf32>
    %269 = arith.mulf %265, %268 : vector<16x1xf32>
    %270 = arith.mulf %267, %267 : vector<16x1xf32>
    %271 = arith.subf %269, %270 : vector<16x1xf32>
    %272 = vector.broadcast %267 : vector<16x1xf32> to vector<16x32xf32>
    %273 = arith.subf %260, %272 : vector<16x32xf32>
    %cst_100 = arith.constant 9.99999974E-6 : f32
    %274 = vector.broadcast %cst_100 : f32 to vector<16x1xf32>
    %275 = arith.addf %271, %274 : vector<16x1xf32>
    %276 = math.rsqrt %275 : vector<16x1xf32>
    %277 = vector.broadcast %276 : vector<16x1xf32> to vector<16x32xf32>
    %278 = arith.mulf %273, %277 : vector<16x32xf32>
    %279 = vector.broadcast %20 : vector<1x32xf32> to vector<16x32xf32>
    %280 = arith.mulf %278, %279 : vector<16x32xf32>
    %281 = vector.broadcast %21 : vector<1x32xf32> to vector<16x32xf32>
    %282 = arith.addf %280, %281 : vector<16x32xf32>
    %283 = arith.truncf %282 : vector<16x32xf32> to vector<16x32xbf16>
    %cst_101 = arith.constant dense<0.000000e+00> : vector<16x64xf32>
    %284 = tpu.matmul %283, %10, %cst_101 {dimension_numbers = #tpu.dot_dimension_numbers<[1], [0], [0], [1], [0, 0, 1, 1], [], []>} : vector<16x32xbf16>, vector<32x64xbf16>, vector<16x64xf32> -> vector<16x64xf32>
    %285 = vector.broadcast %26 : vector<1x64xf32> to vector<16x64xf32>
    %286 = arith.addf %284, %285 : vector<16x64xf32>
    %cst_102 = arith.constant 5.000000e-01 : f32
    %287 = vector.broadcast %cst_102 : f32 to vector<16x64xf32>
    %288 = arith.mulf %287, %286 : vector<16x64xf32>
    %cst_103 = arith.constant 4.471500e-02 : f32
    %289 = vector.broadcast %cst_103 : f32 to vector<16x64xf32>
    %290 = arith.mulf %289, %286 : vector<16x64xf32>
    %291 = arith.mulf %290, %286 : vector<16x64xf32>
    %292 = arith.mulf %291, %286 : vector<16x64xf32>
    %293 = arith.addf %286, %292 : vector<16x64xf32>
    %cst_104 = arith.constant 0.797884583 : f32
    %294 = vector.broadcast %cst_104 : f32 to vector<16x64xf32>
    %295 = arith.mulf %294, %293 : vector<16x64xf32>
    %296 = math.tanh %295 : vector<16x64xf32>
    %cst_105 = arith.constant 1.000000e+00 : f32
    %297 = vector.broadcast %cst_105 : f32 to vector<16x64xf32>
    %298 = arith.addf %297, %296 : vector<16x64xf32>
    %299 = arith.mulf %288, %298 : vector<16x64xf32>
    %300 = arith.truncf %299 : vector<16x64xf32> to vector<16x64xbf16>
    %cst_106 = arith.constant dense<0.000000e+00> : vector<16x32xf32>
    %301 = tpu.matmul %300, %12, %cst_106 {dimension_numbers = #tpu.dot_dimension_numbers<[1], [0], [0], [1], [0, 0, 1, 1], [], []>} : vector<16x64xbf16>, vector<64x32xbf16>, vector<16x32xf32> -> vector<16x32xf32>
    %302 = arith.addf %260, %301 : vector<16x32xf32>
    %303 = vector.broadcast %27 : vector<1x32xf32> to vector<16x32xf32>
    %304 = arith.addf %302, %303 : vector<16x32xf32>
    %305 = vector.shape_cast %304 : vector<16x32xf32> to vector<2x8x32xf32>
    %c0_107 = arith.constant 0 : index
    %c0_108 = arith.constant 0 : index
    %c0_109 = arith.constant 0 : index
    %306 = vector.load %arg8[%c0_107, %c0_108, %c0_109] : memref<2x8x32xf32, #tpu.memory_space<vmem>>, vector<2x8x32xf32>
    tpu.vector_store %arg8[%c0_107, %c0_108, %c0_109], %305 {strides = array<i32>} : memref<2x8x32xf32, #tpu.memory_space<vmem>>, vector<2x8x32xf32>,
    return
  }
  func.func @transform_0(%arg0: i32) -> (i32, i32, i32) {
    %c0_i32 = arith.constant 0 : i32
    %c0_i32_0 = arith.constant 0 : i32
    %c0_i32_1 = arith.constant 0 : i32
    %c0_i32_2 = arith.constant 0 : i32
    return %c0_i32, %c0_i32_0, %c0_i32_1 : i32, i32, i32
  }
  func.func @transform_1(%arg0: i32) -> (i32, i32, i32) {
    %c0_i32 = arith.constant 0 : i32
    %c0_i32_0 = arith.constant 0 : i32
    %c0_i32_1 = arith.constant 0 : i32
    %c0_i32_2 = arith.constant 0 : i32
    return %c0_i32, %c0_i32_0, %c0_i32_1 : i32, i32, i32
  }
  func.func @transform_2(%arg0: i32) -> (i32, i32, i32) {
    %c0_i32 = arith.constant 0 : i32
    %c0_i32_0 = arith.constant 0 : i32
    %c0_i32_1 = arith.constant 0 : i32
    return %arg0, %c0_i32, %c0_i32_0 : i32, i32, i32
  }
  func.func @transform_3(%arg0: i32) -> (i32, i32, i32, i32) {
    %c0_i32 = arith.constant 0 : i32
    %c0_i32_0 = arith.constant 0 : i32
    %c0_i32_1 = arith.constant 0 : i32
    %c0_i32_2 = arith.constant 0 : i32
    return %arg0, %c0_i32, %c0_i32_0, %c0_i32_1 : i32, i32, i32, i32
  }
  func.func @transform_4(%arg0: i32) -> (i32, i32, i32, i32) {
    %c0_i32 = arith.constant 0 : i32
    %c0_i32_0 = arith.constant 0 : i32
    %c0_i32_1 = arith.constant 0 : i32
    %c0_i32_2 = arith.constant 0 : i32
    return %arg0, %c0_i32, %c0_i32_0, %c0_i32_1 : i32, i32, i32, i32
  }
  func.func @transform_5(%arg0: i32) -> (i32, i32, i32) {
    %c0_i32 = arith.constant 0 : i32
    %c0_i32_0 = arith.constant 0 : i32
    %c0_i32_1 = arith.constant 0 : i32
    return %arg0, %c0_i32, %c0_i32_0 : i32, i32, i32
  }
  func.func @transform_6(%arg0: i32) -> (i32, i32, i32) {
    %c0_i32 = arith.constant 0 : i32
    %c0_i32_0 = arith.constant 0 : i32
    %c0_i32_1 = arith.constant 0 : i32
    return %arg0, %c0_i32, %c0_i32_0 : i32, i32, i32
  }
  func.func @transform_7(%arg0: i32) -> (i32, i32, i32) {
    %c0_i32 = arith.constant 0 : i32
    %c0_i32_0 = arith.constant 0 : i32
    %c0_i32_1 = arith.constant 0 : i32
    %c0_i32_2 = arith.constant 0 : i32
    return %c0_i32, %c0_i32_0, %c0_i32_1 : i32, i32, i32
  }
}

</mosaic_0001>

<llo_original>
// kernel: tpu_custom_call.1
$region0: #{tpu_custom_call.1}
  #allocation0 [shape = 'u32[]', space=smem, size = 0x4, offset = 0x4, fixed_abs, tag = 'smem constant byte address 0x4 - core index']
  #allocation1 [shape = 'u32[144,128]{1,0:T(1,128)}', space=vmem, size = 0x12000, scoped, tag = 'internal scratch']
  #allocation2 [shape = 'f32[2,8,32]{2,1,0:T(8,128)}', space=vmem, size = 0x2000, scoped, tag = 'scratch operand']
  %s0 = inlined_call_operand.hbm [shape: f32[2,8,32], index: 0, kind: input, shape index: {}]
  %s1 = inlined_call_operand.hbm [shape: f32[2,8,32], index: 1, kind: input, shape index: {}]
  %s2 = inlined_call_operand.vmem [shape: f32[2,12,96], index: 2, kind: input, shape index: {}]
  %s3 = inlined_call_operand.vmem [shape: bf16[2,2,32,96], index: 3, kind: input, shape index: {}]
  %s4 = inlined_call_operand.vmem [shape: bf16[2,2,32,32], index: 4, kind: input, shape index: {}]
  %s5 = inlined_call_operand.hbm [shape: bf16[2,32,64], index: 5, kind: input, shape index: {}]
  %s6 = inlined_call_operand.vmem [shape: bf16[2,64,32], index: 6, kind: input, shape index: {}]
  %s7 = inlined_call_operand.hbm [shape: f32[2,8,32], index: 7, kind: output, shape index: {}]
  %s8 = sld [smem:[#allocation0]]
  $region77: #{tpu_custom_call.1} parent=0
    _
  %s10 = ssub.s32 1, %s8
  %s11 = scalar_select 0, %s10, %s8
  $region1: #{tpu_custom_call.1} parent=0
    #allocation3 [shape = 'u8[8192]{0}', space=vmem, size = 0x2000, scoped, tag = 'input window, operand 0, single buffered']
    #allocation4 [shape = 's32[2]{0}', space=sflag, size = 0x8, scoped, tag = 'scoped memory for tpu_custom_call.1']
    #allocation5 [shape = 's32[2]{0}', space=sflag, size = 0x8, scoped, tag = 'scoped memory for tpu_custom_call.1']
    #allocation6 [shape = 'u8[8192]{0}', space=vmem, size = 0x2000, scoped, tag = 'input window, operand 1, single buffered']
    #allocation7 [shape = 's32[1]{0}', space=sflag, size = 0x4, scoped, tag = 'scoped memory for tpu_custom_call.1']
    #allocation8 [shape = 'u8[16384]{0}', space=vmem, size = 0x4000, scoped, tag = 'input window, operand 5']
    #allocation9 [shape = 'u8[8192]{0}', space=vmem, size = 0x2000, scoped, tag = 'output window, operand 0, single buffered']
    %12 = vsyncpa [#allocation4], 0
    %13 = vsyncpa [#allocation7], 0
    %14 = vsyncpa [#allocation5], 0
    loop: start=0, step=1, limit=4
    $region2: #{tpu_custom_call.1} parent=1 // loop_pre_header
      _
    $region3: #{tpu_custom_call.1} parent=1 // loop_header
      %s16 = sphi 0, %s20
      %p17 = scmp.ge.s32.totalorder %s16, 4
      %s24 = sphi 0, %s24
      %s26 = sphi 0, %s24
      %s27 = sphi 0, %s26
      %s41 = sphi 0, %s27
      %s45 = sphi 0, %s45
      %s47 = sphi 0, %s45
      %s48 = sphi 0, %s47
      %s62 = sphi 0, %s48
      %s68 = sphi 0, %s70
      %s71 = sphi 0, %s68
      %s72 = sphi 0, %s71
      %s88 = sphi 0, %s72
      %s94 = sphi 0, %s96
      %s97 = sphi 0, %s94
      %s98 = sphi 0, %s97
      %s114 = sphi 0, %s98
      %s120 = sphi 0, %s122
      %s123 = sphi 0, %s120
      %s124 = sphi 0, %s123
      %s140 = sphi 0, %s124
      %s146 = sphi 0, %s148
      %s149 = sphi 0, %s146
      %s150 = sphi 0, %s149
      %s166 = sphi 0, %s150
      %s172 = sphi 0, %s174
      %s175 = sphi 0, %s172
      %s176 = sphi 0, %s175
      %s192 = sphi 0, %s176
      %s196 = sphi 0, %s196
      %s198 = sphi 0, %s196
      %s199 = sphi 0, %s198
      %s213 = sphi 0, %s199
    $region4: #{tpu_custom_call.1} parent=1 // loop_header_branch
      %19 = sbr.rel (%p17) target = $region8
    $region5: #{tpu_custom_call.1} parent=1 // loop_body
      %s21 = ssub.s32 %s16, 1
      %s22 = ssub.s32 %s16, 2
      %s23 = sadd.s32 %s16, 1
      %s25 = sadd.s32 %s24, 1
      %p28 = scmp.eq.s32.totalorder %s16, 1
      %p29 = scmp.ne.s32.totalorder %s24, %s26
      %p30 = scmp.eq.s32.totalorder %s16, 0
      %p31 = por %p29, %p30
      %p32 = scmp.ne.s32.totalorder %s24, %s26
      %p33 = scmp.eq.s32.totalorder %s21, 1
      %p34 = por %p32, %p33
      %p35 = scmp.ne.s32.totalorder %s26, %s27
      %p36 = scmp.eq.s32.totalorder %s21, 0
      %p37 = por %p35, %p36
      %p38 = scmp.ne.s32.totalorder %s26, %s27
      %p39 = scmp.eq.s32.totalorder %s22, 1
      %p40 = por %p38, %p39
      %p42 = scmp.ne.s32.totalorder %s27, %s41
      %p43 = scmp.eq.s32.totalorder %s22, 0
      %p44 = por %p42, %p43
      %s46 = sadd.s32 %s45, 1
      %p49 = scmp.eq.s32.totalorder %s16, 1
      %p50 = scmp.ne.s32.totalorder %s45, %s47
      %p51 = scmp.eq.s32.totalorder %s16, 0
      %p52 = por %p50, %p51
      %p53 = scmp.ne.s32.totalorder %s45, %s47
      %p54 = scmp.eq.s32.totalorder %s21, 1
      %p55 = por %p53, %p54
      %p56 = scmp.ne.s32.totalorder %s47, %s48
      %p57 = scmp.eq.s32.totalorder %s21, 0
      %p58 = por %p56, %p57
      %p59 = scmp.ne.s32.totalorder %s47, %s48
      %p60 = scmp.eq.s32.totalorder %s22, 1
      %p61 = por %p59, %p60
      %p63 = scmp.ne.s32.totalorder %s48, %s62
      %p64 = scmp.eq.s32.totalorder %s22, 0
      %p65 = por %p63, %p64
      %s66 = ssub.s32 %s16, %s23
      %p67 = scmp.eq.s32.totalorder %s66, 0
      %s69 = sadd.s32 %s68, 1
      %s70 = scalar_select %p67, %s68, %s69
      %p73 = pneg %p67
      %p74 = scmp.eq.s32.totalorder %s16, 1
      %p75 = por %p73, %p74
      %p76 = scmp.ne.s32.totalorder %s68, %s71
      %p77 = scmp.eq.s32.totalorder %s16, 0
      %p78 = por %p76, %p77
      %p79 = scmp.ne.s32.totalorder %s68, %s71
      %p80 = scmp.eq.s32.totalorder %s21, 1
      %p81 = por %p79, %p80
      %p82 = scmp.ne.s32.totalorder %s71, %s72
      %p83 = scmp.eq.s32.totalorder %s21, 0
      %p84 = por %p82, %p83
      %p85 = scmp.ne.s32.totalorder %s71, %s72
      %p86 = scmp.eq.s32.totalorder %s22, 1
      %p87 = por %p85, %p86
      %p89 = scmp.ne.s32.totalorder %s72, %s88
      %p90 = scmp.eq.s32.totalorder %s22, 0
      %p91 = por %p89, %p90
      %s92 = ssub.s32 %s16, %s23
      %p93 = scmp.eq.s32.totalorder %s92, 0
      %s95 = sadd.s32 %s94, 1
      %s96 = scalar_select %p93, %s94, %s95
      %p99 = pneg %p93
      %p100 = scmp.eq.s32.totalorder %s16, 1
      %p101 = por %p99, %p100
      %p102 = scmp.ne.s32.totalorder %s94, %s97
      %p103 = scmp.eq.s32.totalorder %s16, 0
      %p104 = por %p102, %p103
      %p105 = scmp.ne.s32.totalorder %s94, %s97
      %p106 = scmp.eq.s32.totalorder %s21, 1
      %p107 = por %p105, %p106
      %p108 = scmp.ne.s32.totalorder %s97, %s98
      %p109 = scmp.eq.s32.totalorder %s21, 0
      %p110 = por %p108, %p109
      %p111 = scmp.ne.s32.totalorder %s97, %s98
      %p112 = scmp.eq.s32.totalorder %s22, 1
      %p113 = por %p111, %p112
      %p115 = scmp.ne.s32.totalorder %s98, %s114
      %p116 = scmp.eq.s32.totalorder %s22, 0
      %p117 = por %p115, %p116
      %s118 = ssub.s32 %s16, %s23
      %p119 = scmp.eq.s32.totalorder %s118, 0
      %s121 = sadd.s32 %s120, 1
      %s122 = scalar_select %p119, %s120, %s121
      %p125 = pneg %p119
      %p126 = scmp.eq.s32.totalorder %s16, 1
      %p127 = por %p125, %p126
      %p128 = scmp.ne.s32.totalorder %s120, %s123
      %p129 = scmp.eq.s32.totalorder %s16, 0
      %p130 = por %p128, %p129
      %p131 = scmp.ne.s32.totalorder %s120, %s123
      %p132 = scmp.eq.s32.totalorder %s21, 1
      %p133 = por %p131, %p132
      %p134 = scmp.ne.s32.totalorder %s123, %s124
      %p135 = scmp.eq.s32.totalorder %s21, 0
      %p136 = por %p134, %p135
      %p137 = scmp.ne.s32.totalorder %s123, %s124
      %p138 = scmp.eq.s32.totalorder %s22, 1
      %p139 = por %p137, %p138
      %p141 = scmp.ne.s32.totalorder %s124, %s140
      %p142 = scmp.eq.s32.totalorder %s22, 0
      %p143 = por %p141, %p142
      %s144 = ssub.s32 %s16, %s23
      %p145 = scmp.eq.s32.totalorder %s144, 0
      %s147 = sadd.s32 %s146, 1
      %s148 = scalar_select %p145, %s146, %s147
      %p151 = pneg %p145
      %p152 = scmp.eq.s32.totalorder %s16, 1
      %p153 = por %p151, %p152
      %p154 = scmp.ne.s32.totalorder %s146, %s149
      %p155 = scmp.eq.s32.totalorder %s16, 0
      %p156 = por %p154, %p155
      %p157 = scmp.ne.s32.totalorder %s146, %s149
      %p158 = scmp.eq.s32.totalorder %s21, 1
      %p159 = por %p157, %p158
      %p160 = scmp.ne.s32.totalorder %s149, %s150
      %p161 = scmp.eq.s32.totalorder %s21, 0
      %p162 = por %p160, %p161
      %p163 = scmp.ne.s32.totalorder %s149, %s150
      %p164 = scmp.eq.s32.totalorder %s22, 1
      %p165 = por %p163, %p164
      %p167 = scmp.ne.s32.totalorder %s150, %s166
      %p168 = scmp.eq.s32.totalorder %s22, 0
      %p169 = por %p167, %p168
      %s170 = ssub.s32 %s16, %s23
      %p171 = scmp.eq.s32.totalorder %s170, 0
      %s173 = sadd.s32 %s172, 1
      %s174 = scalar_select %p171, %s172, %s173
      %p177 = pneg %p171
      %p178 = scmp.eq.s32.totalorder %s16, 1
      %p179 = por %p177, %p178
      %p180 = scmp.ne.s32.totalorder %s172, %s175
      %p181 = scmp.eq.s32.totalorder %s16, 0
      %p182 = por %p180, %p181
      %p183 = scmp.ne.s32.totalorder %s172, %s175
      %p184 = scmp.eq.s32.totalorder %s21, 1
      %p185 = por %p183, %p184
      %p186 = scmp.ne.s32.totalorder %s175, %s176
      %p187 = scmp.eq.s32.totalorder %s21, 0
      %p188 = por %p186, %p187
      %p189 = scmp.ne.s32.totalorder %s175, %s176
      %p190 = scmp.eq.s32.totalorder %s22, 1
      %p191 = por %p189, %p190
      %p193 = scmp.ne.s32.totalorder %s176, %s192
      %p194 = scmp.eq.s32.totalorder %s22, 0
      %p195 = por %p193, %p194
      %s197 = sadd.s32 %s196, 1
      %p200 = scmp.eq.s32.totalorder %s16, 1
      %p201 = scmp.ne.s32.totalorder %s196, %s198
      %p202 = scmp.eq.s32.totalorder %s16, 0
      %p203 = por %p201, %p202
      %p204 = scmp.ne.s32.totalorder %s196, %s198
      %p205 = scmp.eq.s32.totalorder %s21, 1
      %p206 = por %p204, %p205
      %p207 = scmp.ne.s32.totalorder %s198, %s199
      %p208 = scmp.eq.s32.totalorder %s21, 0
      %p209 = por %p207, %p208
      %p210 = scmp.ne.s32.totalorder %s198, %s199
      %p211 = scmp.eq.s32.totalorder %s22, 1
      %p212 = por %p210, %p211
      %p214 = scmp.ne.s32.totalorder %s199, %s213
      %p215 = scmp.eq.s32.totalorder %s22, 0
      %p216 = por %p214, %p215
      %p217 = scmp.le.s32.totalorder 1, %s16
      %p218 = scmp.lt.s32.totalorder %s16, 3
      %p219 = pnand %p217, %p218
      %p220 = pneg %p219
      // Predicated region
      $region9: #{tpu_custom_call.1} parent=5 // pred_check
        _
      $region10: #{tpu_custom_call.1} parent=5 // pred_check_branch
        %222 = sbr.rel (%p219) target = $region12
      $region11: #{tpu_custom_call.1} parent=5 // pred_region
        %s223 = ssub.s32 %s16, 1
        // Predicated region
        $region13: #{tpu_custom_call.1} parent=11 // pred_check
          %p224 = pneg %p37
        $region14: #{tpu_custom_call.1} parent=11 // pred_check_branch
          %226 = sbr.rel (%p224) target = $region16
        $region15: #{tpu_custom_call.1} parent=11 // pred_region
          %s228 = ssub.s32 256, 256
          %229 = vsyncadd [#allocation4], %s228
          %s230 = sshll.u32 [#allocation3], 4
          %s231 = int_to_ptr.vmem [resolvable:$true] %s230
          %236 = dma.hbm_to_vmem [thread:$0]  %s0, 256, %s231, [#allocation4], 128, 128, 8
        $region16: #{tpu_custom_call.1} parent=11 // pred_fallthru
          _
        // Predicated region
        $region17: #{tpu_custom_call.1} parent=11 // pred_check
          %p237 = pneg %p58
        $region18: #{tpu_custom_call.1} parent=11 // pred_check_branch
          %239 = sbr.rel (%p237) target = $region20
        $region19: #{tpu_custom_call.1} parent=11 // pred_region
          %s241 = ssub.s32 256, 256
          %242 = vsyncadd [#allocation7], %s241
          %s243 = sshll.u32 [#allocation6], 4
          %s244 = int_to_ptr.vmem [resolvable:$true] %s243
          %249 = dma.hbm_to_vmem [thread:$0]  %s1, 256, %s244, [#allocation7], 128, 128, 8
        $region20: #{tpu_custom_call.1} parent=11 // pred_fallthru
          _
      $region12: #{tpu_custom_call.1} parent=5 // pred_fallthru
        _
      %p250 = scmp.lt.s32.totalorder %s16, 2
      // Predicated region
      $region21: #{tpu_custom_call.1} parent=5 // pred_check
        %p251 = pneg %p250
      $region22: #{tpu_custom_call.1} parent=5 // pred_check_branch
        %253 = sbr.rel (%p251) target = $region24
      $region23: #{tpu_custom_call.1} parent=5 // pred_region
        // Predicated region
        $region25: #{tpu_custom_call.1} parent=23 // pred_check
          %p254 = pneg %p78
        $region26: #{tpu_custom_call.1} parent=23 // pred_check_branch
          %256 = sbr.rel (%p254) target = $region28
        $region27: #{tpu_custom_call.1} parent=23 // pred_region
          %p257 = scmp.lt.s32.totalorder %s16, 1
          %s258 = scalar_select %p257, %s16, 1
          %s259 = smul.addr %s258, 2
          %s260 = smul.addr %s259, 8
          %s261 = scalar_lea.vmem %s2, %s260
        $region28: #{tpu_custom_call.1} parent=23 // pred_fallthru
          _
        // Predicated region
        $region29: #{tpu_custom_call.1} parent=23 // pred_check
          %p262 = pneg %p104
        $region30: #{tpu_custom_call.1} parent=23 // pred_check_branch
          %264 = sbr.rel (%p262) target = $region32
        $region31: #{tpu_custom_call.1} parent=23 // pred_region
          %p265 = scmp.lt.s32.totalorder %s16, 1
          %s266 = scalar_select %p265, %s16, 1
          %s267 = smul.addr %s266, 8
          %s268 = smul.addr %s267, 4
          %s269 = scalar_lea.vmem %s3, %s268
        $region32: #{tpu_custom_call.1} parent=23 // pred_fallthru
          _
        // Predicated region
        $region33: #{tpu_custom_call.1} parent=23 // pred_check
          %p270 = pneg %p130
        $region34: #{tpu_custom_call.1} parent=23 // pred_check_branch
          %272 = sbr.rel (%p270) target = $region36
        $region35: #{tpu_custom_call.1} parent=23 // pred_region
          %p273 = scmp.lt.s32.totalorder %s16, 1
          %s274 = scalar_select %p273, %s16, 1
          %s275 = smul.addr %s274, 8
          %s276 = smul.addr %s275, 4
          %s277 = scalar_lea.vmem %s4, %s276
        $region36: #{tpu_custom_call.1} parent=23 // pred_fallthru
          _
        // Predicated region
        $region37: #{tpu_custom_call.1} parent=23 // pred_check
          %p278 = pneg %p156
        $region38: #{tpu_custom_call.1} parent=23 // pred_check_branch
          %280 = sbr.rel (%p278) target = $region40
        $region39: #{tpu_custom_call.1} parent=23 // pred_region
          %s281 = sand.u32 %s16, 1
          %s282 = scalar_lea.sflag [#allocation4], %s281
          %s283 = sand.u32 %s146, 1
          %s284 = smul.addr %s283, 16
          %s285 = scalar_lea.vmem [#allocation8], %s284
          %s287 = ssub.s32 256, 256
          %288 = vsyncadd %s282, %s287
          %s289 = smul.addr %s16, 4
          %s290 = smul.addr %s289, 64
          %s291 = scalar_lea.hbm %s5, %s290
          %s292 = sshll.u32 %s285, 4
          %s293 = int_to_ptr.vmem [resolvable:$true] %s292
          %298 = dma.hbm_to_vmem [thread:$0]  %s291, 256, %s293, %s282, 64, 64, 4
        $region40: #{tpu_custom_call.1} parent=23 // pred_fallthru
          _
        // Predicated region
        $region41: #{tpu_custom_call.1} parent=23 // pred_check
          %p299 = pneg %p182
        $region42: #{tpu_custom_call.1} parent=23 // pred_check_branch
          %301 = sbr.rel (%p299) target = $region44
        $region43: #{tpu_custom_call.1} parent=23 // pred_region
          %p302 = scmp.lt.s32.totalorder %s16, 1
          %s303 = scalar_select %p302, %s16, 1
          %s304 = smul.addr %s303, 8
          %s305 = smul.addr %s304, 4
          %s306 = scalar_lea.vmem %s6, %s305
        $region44: #{tpu_custom_call.1} parent=23 // pred_fallthru
          _
      $region24: #{tpu_custom_call.1} parent=5 // pred_fallthru
        _
      %p307 = scmp.le.s32.totalorder 1, %s16
      %p308 = scmp.lt.s32.totalorder %s16, 3
      %p309 = pnand %p307, %p308
      %p310 = pneg %p309
      // Predicated region
      $region45: #{tpu_custom_call.1} parent=5 // pred_check
        _
      $region46: #{tpu_custom_call.1} parent=5 // pred_check_branch
        %312 = sbr.rel (%p309) target = $region48
      $region47: #{tpu_custom_call.1} parent=5 // pred_region
        %s313 = ssub.s32 %s16, 1
        // Predicated region
        $region49: #{tpu_custom_call.1} parent=47 // pred_check
          %p314 = pneg %p37
        $region50: #{tpu_custom_call.1} parent=47 // pred_check_branch
          %316 = sbr.rel (%p314) target = $region52
        $region51: #{tpu_custom_call.1} parent=47 // pred_region
          %317 = dma.done [#allocation4], 256
        $region52: #{tpu_custom_call.1} parent=47 // pred_fallthru
          _
        // Predicated region
        $region53: #{tpu_custom_call.1} parent=47 // pred_check
          %p318 = pneg %p58
        $region54: #{tpu_custom_call.1} parent=47 // pred_check_branch
          %320 = sbr.rel (%p318) target = $region56
        $region55: #{tpu_custom_call.1} parent=47 // pred_region
          %321 = dma.done [#allocation7], 256
        $region56: #{tpu_custom_call.1} parent=47 // pred_fallthru
          _
        %s322 = sand.u32 %s21, 1
        %s323 = scalar_lea.sflag [#allocation4], %s322
        %s324 = sand.u32 %s149, 1
        %s325 = smul.addr %s324, 16
        %s326 = scalar_lea.vmem [#allocation8], %s325
        // Predicated region
        $region57: #{tpu_custom_call.1} parent=47 // pred_check
          %p327 = pneg %p162
        $region58: #{tpu_custom_call.1} parent=47 // pred_check_branch
          %329 = sbr.rel (%p327) target = $region60
        $region59: #{tpu_custom_call.1} parent=47 // pred_region
          %330 = dma.done %s323, 256
        $region60: #{tpu_custom_call.1} parent=47 // pred_fallthru
          _
        %p331 = pneg %p37
        %p332 = pneg %p34
        %p333 = pneg %p58
        %p334 = pneg %p55
        %p335 = scmp.lt.s32.totalorder %s21, 1
        %s336 = scalar_select %p335, %s21, 1
        %s337 = smul.addr %s336, 2
        %s338 = smul.addr %s337, 8
        %s339 = scalar_lea.vmem %s2, %s338
        %p340 = pneg %p84
        %p341 = pneg %p81
        %p342 = scmp.lt.s32.totalorder %s21, 1
        %s343 = scalar_select %p342, %s21, 1
        %s344 = smul.addr %s343, 8
        %s345 = smul.addr %s344, 4
        %s346 = scalar_lea.vmem %s3, %s345
        %p347 = pneg %p110
        %p348 = pneg %p107
        %p349 = scmp.lt.s32.totalorder %s21, 1
        %s350 = scalar_select %p349, %s21, 1
        %s351 = smul.addr %s350, 8
        %s352 = smul.addr %s351, 4
        %s353 = scalar_lea.vmem %s4, %s352
        %p354 = pneg %p136
        %p355 = pneg %p133
        %s356 = sand.u32 %s21, 1
        %s357 = scalar_lea.sflag [#allocation4], %s356
        %s358 = sand.u32 %s149, 1
        %s359 = smul.addr %s358, 16
        %s360 = scalar_lea.vmem [#allocation8], %s359
        %p361 = pneg %p162
        %p362 = pneg %p159
        %p363 = scmp.lt.s32.totalorder %s21, 1
        %s364 = scalar_select %p363, %s21, 1
        %s365 = smul.addr %s364, 8
        %s366 = smul.addr %s365, 4
        %s367 = scalar_lea.vmem %s6, %s366
        %p368 = pneg %p188
        %p369 = pneg %p185
        %p370 = pneg %p209
        %p371 = pneg %p206
        %p372 = scmp.lt.s32.totalorder %s21, 1
        %s373 = scalar_select %p372, %s21, 1
        %s374 = smul.addr %s373, 2
        %s375 = smul.addr %s374, 8
        %s376 = scalar_lea.vmem %s2, %s375
        %p377 = scmp.lt.s32.totalorder %s21, 1
        %s378 = scalar_select %p377, %s21, 1
        %s379 = smul.addr %s378, 8
        %s380 = smul.addr %s379, 4
        %s381 = scalar_lea.vmem %s3, %s380
        %p382 = scmp.lt.s32.totalorder %s21, 1
        %s383 = scalar_select %p382, %s21, 1
        %s384 = smul.addr %s383, 8
        %s385 = smul.addr %s384, 4
        %s386 = scalar_lea.vmem %s4, %s385
        %p387 = scmp.lt.s32.totalorder %s21, 1
        %s388 = scalar_select %p387, %s21, 1
        %s389 = smul.addr %s388, 8
        %s390 = smul.addr %s389, 4
        %s391 = scalar_lea.vmem %s6, %s390
        %p393 = scmp.eq.s32.totalorder %s21, 0
        // Predicated region
        $region61: #{tpu_custom_call.1} parent=47 // pred_check
          %p394 = pneg %p393
        $region62: #{tpu_custom_call.1} parent=47 // pred_check_branch
          %396 = sbr.rel (%p394) target = $region64
        $region63: #{tpu_custom_call.1} parent=47 // pred_region
          %v397 = vld [vmem:[#allocation3] sm:$0xff]
          %v398 = vld [vmem:[#allocation3 + $0x8] sm:$0xff]
          %vm399 = vcmask 261120
          %400 = vst.msk [vmem:[#allocation9] sm:$0xff] %vm399, %v397
          %401 = vst.msk [vmem:[#allocation9 + $0x8] sm:$0xff] %vm399, %v398
        $region64: #{tpu_custom_call.1} parent=47 // pred_fallthru
          _
        %v402 = vld [vmem:[%s376] sm:$0xff]
        %v403 = vld [vmem:[%s376 + $0x8] sm:$0xf]
        %v404 = vld [vmem:[%s381] sm:$0xf]
        %v405 = vld [vmem:[%s381 + $0x4] sm:$0xf]
        %v406 = vld [vmem:[%s381 + $0x8] sm:$0xf]
        %v407 = vld [vmem:[%s381 + $0xc] sm:$0xf]
        %v408 = vld [vmem:[%s381 + $0x10] sm:$0xf]
        %v409 = vld [vmem:[%s381 + $0x14] sm:$0xf]
        %v410 = vld [vmem:[%s381 + $0x18] sm:$0xf]
        %v411 = vld [vmem:[%s381 + $0x1c] sm:$0xf]
        %v412 = vld [vmem:[%s386] sm:$0xf]
        %v413 = vld [vmem:[%s386 + $0x4] sm:$0xf]
        %v414 = vld [vmem:[%s386 + $0x8] sm:$0xf]
        %v415 = vld [vmem:[%s386 + $0xc] sm:$0xf]
        %v416 = vld [vmem:[%s386 + $0x10] sm:$0xf]
        %v417 = vld [vmem:[%s386 + $0x14] sm:$0xf]
        %v418 = vld [vmem:[%s386 + $0x18] sm:$0xf]
        %v419 = vld [vmem:[%s386 + $0x1c] sm:$0xf]
        %v420 = vld [vmem:[%s326] sm:$0xf]
        %v421 = vld [vmem:[%s326 + $0x4] sm:$0xf]
        %v422 = vld [vmem:[%s326 + $0x8] sm:$0xf]
        %v423 = vld [vmem:[%s326 + $0xc] sm:$0xf]
        %v424 = vld [vmem:[%s391] sm:$0xf]
        %v425 = vld [vmem:[%s391 + $0x4] sm:$0xf]
        %v426 = vld [vmem:[%s391 + $0x8] sm:$0xf]
        %v427 = vld [vmem:[%s391 + $0xc] sm:$0xf]
        %v428 = vld [vmem:[%s391 + $0x10] sm:$0xf]
        %v429 = vld [vmem:[%s391 + $0x14] sm:$0xf]
        %v430 = vld [vmem:[%s391 + $0x18] sm:$0xf]
        %v431 = vld [vmem:[%s391 + $0x1c] sm:$0xf]
        %v432 = vld [vmem:[#allocation9] sm:$0xff]
        %v433 = vld [vmem:[#allocation9 + $0x8] sm:$0xff]
        %v434 = vld [vmem:[#allocation6] sm:$0xff]
        %v435 = vld [vmem:[#allocation6 + $0x8] sm:$0xff]
        %vm436 = vcmask 261120
        %v437 = vsel %vm436, %v432, 0.0
        %438 = vadd.xlane.f32.xlu0 %v437
        %v439 = vpop.xlane.xlu0 %438
        %v440 = vsel %vm436, %v433, 0.0
        %441 = vadd.xlane.f32.xlu0 %v440
        %v442 = vpop.xlane.xlu0 %441
        %v443 = vmul.f32 %v432, %v432
        %v444 = vmul.f32 %v433, %v433
        %v445 = vsel %vm436, %v443, 0.0
        %446 = vadd.xlane.f32.xlu0 %v445
        %v447 = vpop.xlane.xlu0 %446
        %v448 = vsel %vm436, %v444, 0.0
        %449 = vadd.xlane.f32.xlu0 %v448
        %v450 = vpop.xlane.xlu0 %449
        %v451 = vmul.f32 %v439, 0.03125
        %v452 = vmul.f32 %v442, 0.03125
        %v453 = vmul.f32 %v447, 0.03125
        %v454 = vmul.f32 %v450, 0.03125
        %v455 = vmul.f32 %v451, %v451
        %v456 = vmul.f32 %v452, %v452
        %v457 = vsub.f32 %v453, %v455
        %v458 = vsub.f32 %v454, %v456
        %v459 = vsub.f32 %v432, %v451
        %v460 = vsub.f32 %v433, %v452
        %v461 = vadd.f32 %v457, 1e-05
        %v462 = vadd.f32 %v458, 1e-05
        %v463 = vrsqrt.pop %v461
        %v464 = vrsqrt.pop %v462
        %v465 = vmul.f32 %v459, %v463
        %v466 = vmul.f32 %v460, %v464
        %v467 = vlaneseq
        %v468 = vshrl.u32 %v467, 7
        %v469 = vsub.s32 0, %v468
        %v470 = vrot.slane %v402, %v469
        %v471 = vmul.f32 %v465, %v470
        %v472 = vmul.f32 %v466, %v470
        %v473 = vlaneseq
        %v474 = vshrl.u32 %v473, 7
        %v475 = vsub.s32 1, %v474
        %v476 = vrot.slane %v402, %v475
        %v477 = vadd.f32 %v471, %v476
        %v478 = vadd.f32 %v472, %v476
        %v479 = vpack.c.bf16 %v478, %v477
        %v480 = vlaneseq
        %v481 = vshrl.u32 %v480, 7
        %v482 = vsub.s32 6, %v481
        %v483 = vrot.slane %v402, %v482
        %v488 = vunpack.c.l.b16 %v404
        %v489 = vunpack.c.l.b16 %v405
        %v490 = vunpack.c.l.b16 %v406
        %v491 = vunpack.c.l.b16 %v407
        %v492 = vpack.c.b16 %v489, %v488
        %v493 = vpack.c.b16 %v491, %v490
        %v497 = vsel %vm436, %v479, 0
        %499 = vmatprep.subr.bf16.mxu0 0
        %500 = vmatpush1.bf16.msra.mxu0 %v492
        %501 = vmatprep.subr.bf16.mxu0 0
        %502 = vmatpush1.bf16.msra.mxu0 %v493
        %503 = vmatprep.subr.bf16.mxu0 0
        %504 = vmatpush1.bf16.msra.mxu0 0
        %505 = vmatprep.subr.bf16.mxu0 0
        %506 = vmatpush1.bf16.msra.mxu0 0
        %507 = vmatprep.subr.bf16.mxu0 0
        %508 = vmatpush1.bf16.msra.mxu0 0
        %509 = vmatprep.subr.bf16.mxu0 0
        %510 = vmatpush1.bf16.msra.mxu0 0
        %511 = vmatprep.subr.bf16.mxu0 0
        %512 = vmatpush1.bf16.msra.mxu0 0
        %513 = vmatprep.subr.bf16.mxu0 0
        %514 = vmatpush1.bf16.msra.mxu0 0
        %515 = vmatprep.subr.bf16.mxu0 0
        %516 = vmatpush1.bf16.msra.mxu0 0
        %517 = vmatprep.subr.bf16.mxu0 0
        %518 = vmatpush1.bf16.msra.mxu0 0
        %519 = vmatprep.subr.bf16.mxu0 0
        %520 = vmatpush1.bf16.msra.mxu0 0
        %521 = vmatprep.subr.bf16.mxu0 0
        %522 = vmatpush1.bf16.msra.mxu0 0
        %523 = vmatprep.subr.bf16.mxu0 0
        %524 = vmatpush1.bf16.msra.mxu0 0
        %525 = vmatprep.subr.bf16.mxu0 0
        %526 = vmatpush1.bf16.msra.mxu0 0
        %527 = vmatprep.subr.bf16.mxu0 0
        %528 = vmatpush1.bf16.msra.mxu0 0
        %529 = vmatprep.subr.bf16.mxu0 0
        %530 = vmatpush1.bf16.msra.mxu0 0
        %531 = vmatprep.mubr.bf16.mxu0 0
        %532 = vmatmul.mubr.bf16.gmra.mrb[0].mxu0 %v497
        %v533 = vpop.f32.mrb[0].mxu0
        %v534 = vadd.f32 %v483, %v533
        %v535 = vpop.f32.mrb[0].mxu0
        %v536 = vpop.f32.mrb[0].mxu0
        %v537 = vadd.f32 %v483, %v536
        %v538 = vpop.f32.mrb[0].mxu0
        %539 = vdwg.mxu0
        %v540 = vpack.c.bf16 %v534, %v534
        %v541 = vpack.c.bf16 %v537, %v537
        %543 = vrot.lane.b32.xlu0 %v540, 96
        %v544 = vpop.permute.xlu0 %543
        %vm545 = vcmask 64512
        %v547 = vsel %vm545, %v540, 0
        %v550 = vsel %vm545, %v544, 0
        %552 = vmatprep.subr.bf16.mxu0 0
        %553 = vmatpush1.bf16.xpose.msra.mxu0 %v550
        %554 = vmatprep.subr.bf16.mxu0 0
        %555 = vmatpush1.bf16.xpose.msra.mxu0 0
        %556 = vmatprep.subr.bf16.mxu0 0
        %557 = vmatpush1.bf16.xpose.msra.mxu0 0
        %558 = vmatprep.subr.bf16.mxu0 0
        %559 = vmatpush1.bf16.xpose.msra.mxu0 0
        %560 = vmatprep.subr.bf16.mxu0 0
        %561 = vmatpush1.bf16.xpose.msra.mxu0 0
        %562 = vmatprep.subr.bf16.mxu0 0
        %563 = vmatpush1.bf16.xpose.msra.mxu0 0
        %564 = vmatprep.subr.bf16.mxu0 0
        %565 = vmatpush1.bf16.xpose.msra.mxu0 0
        %566 = vmatprep.subr.bf16.mxu0 0
        %567 = vmatpush1.bf16.xpose.msra.mxu0 0
        %568 = vmatprep.subr.bf16.mxu0 0
        %569 = vmatpush1.bf16.xpose.msra.mxu0 0
        %570 = vmatprep.subr.bf16.mxu0 0
        %571 = vmatpush1.bf16.xpose.msra.mxu0 0
        %572 = vmatprep.subr.bf16.mxu0 0
        %573 = vmatpush1.bf16.xpose.msra.mxu0 0
        %574 = vmatprep.subr.bf16.mxu0 0
        %575 = vmatpush1.bf16.xpose.msra.mxu0 0
        %576 = vmatprep.subr.bf16.mxu0 0
        %577 = vmatpush1.bf16.xpose.msra.mxu0 0
        %578 = vmatprep.subr.bf16.mxu0 0
        %579 = vmatpush1.bf16.xpose.msra.mxu0 0
        %580 = vmatprep.subr.bf16.mxu0 0
        %581 = vmatpush1.bf16.xpose.msra.mxu0 0
        %582 = vmatprep.subr.bf16.mxu0 0
        %583 = vmatpush1.bf16.xpose.msra.mxu0 0
        %584 = vmatprep.mubr.bf16.mxu0 0
        %585 = vmatmul.mubr.bf16.gmra.mrb[0].mxu0 %v547
        %v586 = vpop.f32.mrb[0].mxu0
        %v587 = vadd.f32 0.0, %v586
        %v588 = vpop.f32.mrb[0].mxu0
        %v589 = vpop.f32.mrb[0].mxu0
        %v590 = vpop.f32.mrb[0].mxu0
        %591 = vdwg.mxu0
        %593 = vrot.lane.b32.xlu0 %v541, 96
        %v594 = vpop.permute.xlu0 %593
        %v596 = vsel %vm545, %v541, 0
        %v599 = vsel %vm545, %v594, 0
        %601 = vmatprep.subr.bf16.mxu0 0
        %602 = vmatpush1.bf16.xpose.msra.mxu0 %v599
        %603 = vmatprep.subr.bf16.mxu0 0
        %604 = vmatpush1.bf16.xpose.msra.mxu0 0
        %605 = vmatprep.subr.bf16.mxu0 0
        %606 = vmatpush1.bf16.xpose.msra.mxu0 0
        %607 = vmatprep.subr.bf16.mxu0 0
        %608 = vmatpush1.bf16.xpose.msra.mxu0 0
        %609 = vmatprep.subr.bf16.mxu0 0
        %610 = vmatpush1.bf16.xpose.msra.mxu0 0
        %611 = vmatprep.subr.bf16.mxu0 0
        %612 = vmatpush1.bf16.xpose.msra.mxu0 0
        %613 = vmatprep.subr.bf16.mxu0 0
        %614 = vmatpush1.bf16.xpose.msra.mxu0 0
        %615 = vmatprep.subr.bf16.mxu0 0
        %616 = vmatpush1.bf16.xpose.msra.mxu0 0
        %617 = vmatprep.subr.bf16.mxu0 0
        %618 = vmatpush1.bf16.xpose.msra.mxu0 0
        %619 = vmatprep.subr.bf16.mxu0 0
        %620 = vmatpush1.bf16.xpose.msra.mxu0 0
        %621 = vmatprep.subr.bf16.mxu0 0
        %622 = vmatpush1.bf16.xpose.msra.mxu0 0
        %623 = vmatprep.subr.bf16.mxu0 0
        %624 = vmatpush1.bf16.xpose.msra.mxu0 0
        %625 = vmatprep.subr.bf16.mxu0 0
        %626 = vmatpush1.bf16.xpose.msra.mxu0 0
        %627 = vmatprep.subr.bf16.mxu0 0
        %628 = vmatpush1.bf16.xpose.msra.mxu0 0
        %629 = vmatprep.subr.bf16.mxu0 0
        %630 = vmatpush1.bf16.xpose.msra.mxu0 0
        %631 = vmatprep.subr.bf16.mxu0 0
        %632 = vmatpush1.bf16.xpose.msra.mxu0 0
        %633 = vmatprep.mubr.bf16.mxu0 0
        %634 = vmatmul.mubr.bf16.gmra.mrb[0].mxu0 %v596
        %v635 = vpop.f32.mrb[0].mxu0
        %v636 = vadd.f32 0.0, %v635
        %v637 = vpop.f32.mrb[0].mxu0
        %v638 = vpop.f32.mrb[0].mxu0
        %v639 = vpop.f32.mrb[0].mxu0
        %640 = vdwg.mxu0
        %v641 = vsel %vm545, %v587, -inf
        %642 = vmax.xlane.f32.xlu0 %v641
        %v643 = vpop.xlane.xlu0 %642
        %v644 = vsel %vm545, %v636, -inf
        %645 = vmax.xlane.f32.xlu0 %v644
        %v646 = vpop.xlane.xlu0 %645
        %v647 = vsub.f32 %v587, %v643
        %v648 = vsub.f32 %v636, %v646
        %v649 = vmul.f32 %v647, 1.442695
        %v650 = vpow.pop %v649
        %v651 = vmul.f32 %v648, 1.442695
        %v652 = vpow.pop %v651
        %v653 = vsel %vm545, %v650, 0.0
        %654 = vadd.xlane.f32.xlu0 %v653
        %v655 = vpop.xlane.xlu0 %654
        %v656 = vsel %vm545, %v652, 0.0
        %657 = vadd.xlane.f32.xlu0 %v656
        %v658 = vpop.xlane.xlu0 %657
        %v659 = vrcp.pop %v655
        %v660 = vrcp.pop %v658
        %v661 = vmul.f32 %v650, %v659
        %v662 = vmul.f32 %v652, %v660
        %v663 = vpack.c.bf16 %v661, %v661
        %v664 = vpack.c.bf16 %v662, %v662
        %665 = vrot.lane.b32.xlu0 %v540, 64
        %v666 = vpop.permute.xlu0 %665
        %v668 = vsel %vm545, %v663, 0
        %vm670 = vcmask 1043456
        %v672 = vsel %vm670, %v666, 0
        %674 = vmatprep.subr.bf16.mxu0 0
        %675 = vmatpush1.bf16.msra.mxu0 %v672
        %676 = vmatprep.subr.bf16.mxu0 0
        %677 = vmatpush1.bf16.msra.mxu0 0
        %678 = vmatprep.subr.bf16.mxu0 0
        %679 = vmatpush1.bf16.msra.mxu0 0
        %680 = vmatprep.subr.bf16.mxu0 0
        %681 = vmatpush1.bf16.msra.mxu0 0
        %682 = vmatprep.subr.bf16.mxu0 0
        %683 = vmatpush1.bf16.msra.mxu0 0
        %684 = vmatprep.subr.bf16.mxu0 0
        %685 = vmatpush1.bf16.msra.mxu0 0
        %686 = vmatprep.subr.bf16.mxu0 0
        %687 = vmatpush1.bf16.msra.mxu0 0
        %688 = vmatprep.subr.bf16.mxu0 0
        %689 = vmatpush1.bf16.msra.mxu0 0
        %690 = vmatprep.subr.bf16.mxu0 0
        %691 = vmatpush1.bf16.msra.mxu0 0
        %692 = vmatprep.subr.bf16.mxu0 0
        %693 = vmatpush1.bf16.msra.mxu0 0
        %694 = vmatprep.subr.bf16.mxu0 0
        %695 = vmatpush1.bf16.msra.mxu0 0
        %696 = vmatprep.subr.bf16.mxu0 0
        %697 = vmatpush1.bf16.msra.mxu0 0
        %698 = vmatprep.subr.bf16.mxu0 0
        %699 = vmatpush1.bf16.msra.mxu0 0
        %700 = vmatprep.subr.bf16.mxu0 0
        %701 = vmatpush1.bf16.msra.mxu0 0
        %702 = vmatprep.subr.bf16.mxu0 0
        %703 = vmatpush1.bf16.msra.mxu0 0
        %704 = vmatprep.subr.bf16.mxu0 0
        %705 = vmatpush1.bf16.msra.mxu0 0
        %706 = vmatprep.mubr.bf16.mxu0 0
        %707 = vmatmul.mubr.bf16.gmra.mrb[0].mxu0 %v668
        %v708 = vpop.f32.mrb[0].mxu0
        %v709 = vadd.f32 0.0, %v708
        %v710 = vpop.f32.mrb[0].mxu0
        %v711 = vpop.f32.mrb[0].mxu0
        %v712 = vpop.f32.mrb[0].mxu0
        %713 = vdwg.mxu0
        %714 = vrot.lane.b32.xlu0 %v541, 64
        %v715 = vpop.permute.xlu0 %714
        %v717 = vsel %vm545, %v664, 0
        %v720 = vsel %vm670, %v715, 0
        %722 = vmatprep.subr.bf16.mxu0 0
        %723 = vmatpush1.bf16.msra.mxu0 %v720
        %724 = vmatprep.subr.bf16.mxu0 0
        %725 = vmatpush1.bf16.msra.mxu0 0
        %726 = vmatprep.subr.bf16.mxu0 0
        %727 = vmatpush1.bf16.msra.mxu0 0
        %728 = vmatprep.subr.bf16.mxu0 0
        %729 = vmatpush1.bf16.msra.mxu0 0
        %730 = vmatprep.subr.bf16.mxu0 0
        %731 = vmatpush1.bf16.msra.mxu0 0
        %732 = vmatprep.subr.bf16.mxu0 0
        %733 = vmatpush1.bf16.msra.mxu0 0
        %734 = vmatprep.subr.bf16.mxu0 0
        %735 = vmatpush1.bf16.msra.mxu0 0
        %736 = vmatprep.subr.bf16.mxu0 0
        %737 = vmatpush1.bf16.msra.mxu0 0
        %738 = vmatprep.subr.bf16.mxu0 0
        %739 = vmatpush1.bf16.msra.mxu0 0
        %740 = vmatprep.subr.bf16.mxu0 0
        %741 = vmatpush1.bf16.msra.mxu0 0
        %742 = vmatprep.subr.bf16.mxu0 0
        %743 = vmatpush1.bf16.msra.mxu0 0
        %744 = vmatprep.subr.bf16.mxu0 0
        %745 = vmatpush1.bf16.msra.mxu0 0
        %746 = vmatprep.subr.bf16.mxu0 0
        %747 = vmatpush1.bf16.msra.mxu0 0
        %748 = vmatprep.subr.bf16.mxu0 0
        %749 = vmatpush1.bf16.msra.mxu0 0
        %750 = vmatprep.subr.bf16.mxu0 0
        %751 = vmatpush1.bf16.msra.mxu0 0
        %752 = vmatprep.subr.bf16.mxu0 0
        %753 = vmatpush1.bf16.msra.mxu0 0
        %754 = vmatprep.mubr.bf16.mxu0 0
        %755 = vmatmul.mubr.bf16.gmra.mrb[0].mxu0 %v717
        %v756 = vpop.f32.mrb[0].mxu0
        %v757 = vadd.f32 0.0, %v756
        %v758 = vpop.f32.mrb[0].mxu0
        %v759 = vpop.f32.mrb[0].mxu0
        %v760 = vpop.f32.mrb[0].mxu0
        %761 = vdwg.mxu0
        %762 = vst.msk [vmem:[#allocation2] sm:$0xff] %vm545, %v709
        %763 = vst.msk [vmem:[#allocation2 + $0x8] sm:$0xff] %vm545, %v757
        %764 = vrot.lane.b32.xlu0 %v540, 120
        %v765 = vpop.permute.xlu0 %764
        %766 = vrot.lane.b32.xlu0 %v540, 88
        %v767 = vpop.permute.xlu0 %766
        %v769 = vsel %vm545, %v765, 0
        %v772 = vsel %vm545, %v767, 0
        %774 = vmatprep.subr.bf16.mxu0 0
        %775 = vmatpush1.bf16.xpose.msra.mxu0 %v772
        %776 = vmatprep.subr.bf16.mxu0 0
        %777 = vmatpush1.bf16.xpose.msra.mxu0 0
        %778 = vmatprep.subr.bf16.mxu0 0
        %779 = vmatpush1.bf16.xpose.msra.mxu0 0
        %780 = vmatprep.subr.bf16.mxu0 0
        %781 = vmatpush1.bf16.xpose.msra.mxu0 0
        %782 = vmatprep.subr.bf16.mxu0 0
        %783 = vmatpush1.bf16.xpose.msra.mxu0 0
        %784 = vmatprep.subr.bf16.mxu0 0
        %785 = vmatpush1.bf16.xpose.msra.mxu0 0
        %786 = vmatprep.subr.bf16.mxu0 0
        %787 = vmatpush1.bf16.xpose.msra.mxu0 0
        %788 = vmatprep.subr.bf16.mxu0 0
        %789 = vmatpush1.bf16.xpose.msra.mxu0 0
        %790 = vmatprep.subr.bf16.mxu0 0
        %791 = vmatpush1.bf16.xpose.msra.mxu0 0
        %792 = vmatprep.subr.bf16.mxu0 0
        %793 = vmatpush1.bf16.xpose.msra.mxu0 0
        %794 = vmatprep.subr.bf16.mxu0 0
        %795 = vmatpush1.bf16.xpose.msra.mxu0 0
        %796 = vmatprep.subr.bf16.mxu0 0
        %797 = vmatpush1.bf16.xpose.msra.mxu0 0
        %798 = vmatprep.subr.bf16.mxu0 0
        %799 = vmatpush1.bf16.xpose.msra.mxu0 0
        %800 = vmatprep.subr.bf16.mxu0 0
        %801 = vmatpush1.bf16.xpose.msra.mxu0 0
        %802 = vmatprep.subr.bf16.mxu0 0
        %803 = vmatpush1.bf16.xpose.msra.mxu0 0
        %804 = vmatprep.subr.bf16.mxu0 0
        %805 = vmatpush1.bf16.xpose.msra.mxu0 0
        %806 = vmatprep.mubr.bf16.mxu0 0
        %807 = vmatmul.mubr.bf16.gmra.mrb[0].mxu0 %v769
        %v808 = vpop.f32.mrb[0].mxu0
        %v809 = vadd.f32 0.0, %v808
        %v810 = vpop.f32.mrb[0].mxu0
        %v811 = vpop.f32.mrb[0].mxu0
        %v812 = vpop.f32.mrb[0].mxu0
        %813 = vdwg.mxu0
        %814 = vrot.lane.b32.xlu0 %v541, 120
        %v815 = vpop.permute.xlu0 %814
        %816 = vrot.lane.b32.xlu0 %v541, 88
        %v817 = vpop.permute.xlu0 %816
        %v819 = vsel %vm545, %v815, 0
        %v822 = vsel %vm545, %v817, 0
        %824 = vmatprep.subr.bf16.mxu0 0
        %825 = vmatpush1.bf16.xpose.msra.mxu0 %v822
        %826 = vmatprep.subr.bf16.mxu0 0
        %827 = vmatpush1.bf16.xpose.msra.mxu0 0
        %828 = vmatprep.subr.bf16.mxu0 0
        %829 = vmatpush1.bf16.xpose.msra.mxu0 0
        %830 = vmatprep.subr.bf16.mxu0 0
        %831 = vmatpush1.bf16.xpose.msra.mxu0 0
        %832 = vmatprep.subr.bf16.mxu0 0
        %833 = vmatpush1.bf16.xpose.msra.mxu0 0
        %834 = vmatprep.subr.bf16.mxu0 0
        %835 = vmatpush1.bf16.xpose.msra.mxu0 0
        %836 = vmatprep.subr.bf16.mxu0 0
        %837 = vmatpush1.bf16.xpose.msra.mxu0 0
        %838 = vmatprep.subr.bf16.mxu0 0
        %839 = vmatpush1.bf16.xpose.msra.mxu0 0
        %840 = vmatprep.subr.bf16.mxu0 0
        %841 = vmatpush1.bf16.xpose.msra.mxu0 0
        %842 = vmatprep.subr.bf16.mxu0 0
        %843 = vmatpush1.bf16.xpose.msra.mxu0 0
        %844 = vmatprep.subr.bf16.mxu0 0
        %845 = vmatpush1.bf16.xpose.msra.mxu0 0
        %846 = vmatprep.subr.bf16.mxu0 0
        %847 = vmatpush1.bf16.xpose.msra.mxu0 0
        %848 = vmatprep.subr.bf16.mxu0 0
        %849 = vmatpush1.bf16.xpose.msra.mxu0 0
        %850 = vmatprep.subr.bf16.mxu0 0
        %851 = vmatpush1.bf16.xpose.msra.mxu0 0
        %852 = vmatprep.subr.bf16.mxu0 0
        %853 = vmatpush1.bf16.xpose.msra.mxu0 0
        %854 = vmatprep.subr.bf16.mxu0 0
        %855 = vmatpush1.bf16.xpose.msra.mxu0 0
        %856 = vmatprep.mubr.bf16.mxu0 0
        %857 = vmatmul.mubr.bf16.gmra.mrb[0].mxu0 %v819
        %v858 = vpop.f32.mrb[0].mxu0
        %v859 = vadd.f32 0.0, %v858
        %v860 = vpop.f32.mrb[0].mxu0
        %v861 = vpop.f32.mrb[0].mxu0
        %v862 = vpop.f32.mrb[0].mxu0
        %863 = vdwg.mxu0
        %v864 = vsel %vm545, %v809, -inf
        %865 = vmax.xlane.f32.xlu0 %v864
        %v866 = vpop.xlane.xlu0 %865
        %v867 = vsel %vm545, %v859, -inf
        %868 = vmax.xlane.f32.xlu0 %v867
        %v869 = vpop.xlane.xlu0 %868
        %v870 = vsub.f32 %v809, %v866
        %v871 = vsub.f32 %v859, %v869
        %v872 = vmul.f32 %v870, 1.442695
        %v873 = vpow.pop %v872
        %v874 = vmul.f32 %v871, 1.442695
        %v875 = vpow.pop %v874
        %v876 = vsel %vm545, %v873, 0.0
        %877 = vadd.xlane.f32.xlu0 %v876
        %v878 = vpop.xlane.xlu0 %877
        %v879 = vsel %vm545, %v875, 0.0
        %880 = vadd.xlane.f32.xlu0 %v879
        %v881 = vpop.xlane.xlu0 %880
        %v882 = vrcp.pop %v878
        %v883 = vrcp.pop %v881
        %v884 = vmul.f32 %v873, %v882
        %v885 = vmul.f32 %v875, %v883
        %v886 = vpack.c.bf16 %v884, %v884
        %v887 = vpack.c.bf16 %v885, %v885
        %888 = vrot.lane.b32.xlu0 %v540, 56
        %v889 = vpop.permute.xlu0 %888
        %v891 = vsel %vm545, %v886, 0
        %v894 = vsel %vm670, %v889, 0
        %896 = vmatprep.subr.bf16.mxu0 0
        %897 = vmatpush1.bf16.msra.mxu0 %v894
        %898 = vmatprep.subr.bf16.mxu0 0
        %899 = vmatpush1.bf16.msra.mxu0 0
        %900 = vmatprep.subr.bf16.mxu0 0
        %901 = vmatpush1.bf16.msra.mxu0 0
        %902 = vmatprep.subr.bf16.mxu0 0
        %903 = vmatpush1.bf16.msra.mxu0 0
        %904 = vmatprep.subr.bf16.mxu0 0
        %905 = vmatpush1.bf16.msra.mxu0 0
        %906 = vmatprep.subr.bf16.mxu0 0
        %907 = vmatpush1.bf16.msra.mxu0 0
        %908 = vmatprep.subr.bf16.mxu0 0
        %909 = vmatpush1.bf16.msra.mxu0 0
        %910 = vmatprep.subr.bf16.mxu0 0
        %911 = vmatpush1.bf16.msra.mxu0 0
        %912 = vmatprep.subr.bf16.mxu0 0
        %913 = vmatpush1.bf16.msra.mxu0 0
        %914 = vmatprep.subr.bf16.mxu0 0
        %915 = vmatpush1.bf16.msra.mxu0 0
        %916 = vmatprep.subr.bf16.mxu0 0
        %917 = vmatpush1.bf16.msra.mxu0 0
        %918 = vmatprep.subr.bf16.mxu0 0
        %919 = vmatpush1.bf16.msra.mxu0 0
        %920 = vmatprep.subr.bf16.mxu0 0
        %921 = vmatpush1.bf16.msra.mxu0 0
        %922 = vmatprep.subr.bf16.mxu0 0
        %923 = vmatpush1.bf16.msra.mxu0 0
        %924 = vmatprep.subr.bf16.mxu0 0
        %925 = vmatpush1.bf16.msra.mxu0 0
        %926 = vmatprep.subr.bf16.mxu0 0
        %927 = vmatpush1.bf16.msra.mxu0 0
        %928 = vmatprep.mubr.bf16.mxu0 0
        %929 = vmatmul.mubr.bf16.gmra.mrb[0].mxu0 %v891
        %v930 = vpop.f32.mrb[0].mxu0
        %v931 = vadd.f32 0.0, %v930
        %v932 = vpop.f32.mrb[0].mxu0
        %v933 = vpop.f32.mrb[0].mxu0
        %v934 = vpop.f32.mrb[0].mxu0
        %935 = vdwg.mxu0
        %936 = vrot.lane.b32.xlu0 %v541, 56
        %v937 = vpop.permute.xlu0 %936
        %v939 = vsel %vm545, %v887, 0
        %v942 = vsel %vm670, %v937, 0
        %944 = vmatprep.subr.bf16.mxu0 0
        %945 = vmatpush1.bf16.msra.mxu0 %v942
        %946 = vmatprep.subr.bf16.mxu0 0
        %947 = vmatpush1.bf16.msra.mxu0 0
        %948 = vmatprep.subr.bf16.mxu0 0
        %949 = vmatpush1.bf16.msra.mxu0 0
        %950 = vmatprep.subr.bf16.mxu0 0
        %951 = vmatpush1.bf16.msra.mxu0 0
        %952 = vmatprep.subr.bf16.mxu0 0
        %953 = vmatpush1.bf16.msra.mxu0 0
        %954 = vmatprep.subr.bf16.mxu0 0
        %955 = vmatpush1.bf16.msra.mxu0 0
        %956 = vmatprep.subr.bf16.mxu0 0
        %957 = vmatpush1.bf16.msra.mxu0 0
        %958 = vmatprep.subr.bf16.mxu0 0
        %959 = vmatpush1.bf16.msra.mxu0 0
        %960 = vmatprep.subr.bf16.mxu0 0
        %961 = vmatpush1.bf16.msra.mxu0 0
        %962 = vmatprep.subr.bf16.mxu0 0
        %963 = vmatpush1.bf16.msra.mxu0 0
        %964 = vmatprep.subr.bf16.mxu0 0
        %965 = vmatpush1.bf16.msra.mxu0 0
        %966 = vmatprep.subr.bf16.mxu0 0
        %967 = vmatpush1.bf16.msra.mxu0 0
        %968 = vmatprep.subr.bf16.mxu0 0
        %969 = vmatpush1.bf16.msra.mxu0 0
        %970 = vmatprep.subr.bf16.mxu0 0
        %971 = vmatpush1.bf16.msra.mxu0 0
        %972 = vmatprep.subr.bf16.mxu0 0
        %973 = vmatpush1.bf16.msra.mxu0 0
        %974 = vmatprep.subr.bf16.mxu0 0
        %975 = vmatpush1.bf16.msra.mxu0 0
        %976 = vmatprep.mubr.bf16.mxu0 0
        %977 = vmatmul.mubr.bf16.gmra.mrb[0].mxu0 %v939
        %v978 = vpop.f32.mrb[0].mxu0
        %v979 = vadd.f32 0.0, %v978
        %v980 = vpop.f32.mrb[0].mxu0
        %v981 = vpop.f32.mrb[0].mxu0
        %v982 = vpop.f32.mrb[0].mxu0
        %983 = vdwg.mxu0
        %986 = vrot.lane.b32.xlu0 %v931, 8
        %v987 = vpop.permute.xlu0 %986
        %988 = vrot.lane.b32.xlu0 %v979, 8
        %v989 = vpop.permute.xlu0 %988
        %vm992 = vcmask 130112
        %993 = vst.msk [vmem:[#allocation2] sm:$0xff] %vm992, %v987
        %994 = vst.msk [vmem:[#allocation2 + $0x8] sm:$0xff] %vm992, %v989
        %995 = vrot.lane.b32.xlu0 %v540, 112
        %v996 = vpop.permute.xlu0 %995
        %997 = vrot.lane.b32.xlu0 %v540, 80
        %v998 = vpop.permute.xlu0 %997
        %v1000 = vsel %vm545, %v996, 0
        %v1003 = vsel %vm545, %v998, 0
        %1005 = vmatprep.subr.bf16.mxu0 0
        %1006 = vmatpush1.bf16.xpose.msra.mxu0 %v1003
        %1007 = vmatprep.subr.bf16.mxu0 0
        %1008 = vmatpush1.bf16.xpose.msra.mxu0 0
        %1009 = vmatprep.subr.bf16.mxu0 0
        %1010 = vmatpush1.bf16.xpose.msra.mxu0 0
        %1011 = vmatprep.subr.bf16.mxu0 0
        %1012 = vmatpush1.bf16.xpose.msra.mxu0 0
        %1013 = vmatprep.subr.bf16.mxu0 0
        %1014 = vmatpush1.bf16.xpose.msra.mxu0 0
        %1015 = vmatprep.subr.bf16.mxu0 0
        %1016 = vmatpush1.bf16.xpose.msra.mxu0 0
        %1017 = vmatprep.subr.bf16.mxu0 0
        %1018 = vmatpush1.bf16.xpose.msra.mxu0 0
        %1019 = vmatprep.subr.bf16.mxu0 0
        %1020 = vmatpush1.bf16.xpose.msra.mxu0 0
        %1021 = vmatprep.subr.bf16.mxu0 0
        %1022 = vmatpush1.bf16.xpose.msra.mxu0 0
        %1023 = vmatprep.subr.bf16.mxu0 0
        %1024 = vmatpush1.bf16.xpose.msra.mxu0 0
        %1025 = vmatprep.subr.bf16.mxu0 0
        %1026 = vmatpush1.bf16.xpose.msra.mxu0 0
        %1027 = vmatprep.subr.bf16.mxu0 0
        %1028 = vmatpush1.bf16.xpose.msra.mxu0 0
        %1029 = vmatprep.subr.bf16.mxu0 0
        %1030 = vmatpush1.bf16.xpose.msra.mxu0 0
        %1031 = vmatprep.subr.bf16.mxu0 0
        %1032 = vmatpush1.bf16.xpose.msra.mxu0 0
        %1033 = vmatprep.subr.bf16.mxu0 0
        %1034 = vmatpush1.bf16.xpose.msra.mxu0 0
        %1035 = vmatprep.subr.bf16.mxu0 0
        %1036 = vmatpush1.bf16.xpose.msra.mxu0 0
        %1037 = vmatprep.mubr.bf16.mxu0 0
        %1038 = vmatmul.mubr.bf16.gmra.mrb[0].mxu0 %v1000
        %v1039 = vpop.f32.mrb[0].mxu0
        %v1040 = vadd.f32 0.0, %v1039
        %v1041 = vpop.f32.mrb[0].mxu0
        %v1042 = vpop.f32.mrb[0].mxu0
        %v1043 = vpop.f32.mrb[0].mxu0
        %1044 = vdwg.mxu0
        %1045 = vrot.lane.b32.xlu0 %v541, 112
        %v1046 = vpop.permute.xlu0 %1045
        %1047 = vrot.lane.b32.xlu0 %v541, 80
        %v1048 = vpop.permute.xlu0 %1047
        %v1050 = vsel %vm545, %v1046, 0
        %v1053 = vsel %vm545, %v1048, 0
        %1055 = vmatprep.subr.bf16.mxu0 0
        %1056 = vmatpush1.bf16.xpose.msra.mxu0 %v1053
        %1057 = vmatprep.subr.bf16.mxu0 0
        %1058 = vmatpush1.bf16.xpose.msra.mxu0 0
        %1059 = vmatprep.subr.bf16.mxu0 0
        %1060 = vmatpush1.bf16.xpose.msra.mxu0 0
        %1061 = vmatprep.subr.bf16.mxu0 0
        %1062 = vmatpush1.bf16.xpose.msra.mxu0 0
        %1063 = vmatprep.subr.bf16.mxu0 0
        %1064 = vmatpush1.bf16.xpose.msra.mxu0 0
        %1065 = vmatprep.subr.bf16.mxu0 0
        %1066 = vmatpush1.bf16.xpose.msra.mxu0 0
        %1067 = vmatprep.subr.bf16.mxu0 0
        %1068 = vmatpush1.bf16.xpose.msra.mxu0 0
        %1069 = vmatprep.subr.bf16.mxu0 0
        %1070 = vmatpush1.bf16.xpose.msra.mxu0 0
        %1071 = vmatprep.subr.bf16.mxu0 0
        %1072 = vmatpush1.bf16.xpose.msra.mxu0 0
        %1073 = vmatprep.subr.bf16.mxu0 0
        %1074 = vmatpush1.bf16.xpose.msra.mxu0 0
        %1075 = vmatprep.subr.bf16.mxu0 0
        %1076 = vmatpush1.bf16.xpose.msra.mxu0 0
        %1077 = vmatprep.subr.bf16.mxu0 0
        %1078 = vmatpush1.bf16.xpose.msra.mxu0 0
        %1079 = vmatprep.subr.bf16.mxu0 0
        %1080 = vmatpush1.bf16.xpose.msra.mxu0 0
        %1081 = vmatprep.subr.bf16.mxu0 0
        %1082 = vmatpush1.bf16.xpose.msra.mxu0 0
        %1083 = vmatprep.subr.bf16.mxu0 0
        %1084 = vmatpush1.bf16.xpose.msra.mxu0 0
        %1085 = vmatprep.subr.bf16.mxu0 0
        %1086 = vmatpush1.bf16.xpose.msra.mxu0 0
        %1087 = vmatprep.mubr.bf16.mxu0 0
        %1088 = vmatmul.mubr.bf16.gmra.mrb[0].mxu0 %v1050
        %v1089 = vpop.f32.mrb[0].mxu0
        %v1090 = vadd.f32 0.0, %v1089
        %v1091 = vpop.f32.mrb[0].mxu0
        %v1092 = vpop.f32.mrb[0].mxu0
        %v1093 = vpop.f32.mrb[0].mxu0
        %1094 = vdwg.mxu0
        %v1095 = vsel %vm545, %v1040, -inf
        %1096 = vmax.xlane.f32.xlu0 %v1095
        %v1097 = vpop.xlane.xlu0 %1096
        %v1098 = vsel %vm545, %v1090, -inf
        %1099 = vmax.xlane.f32.xlu0 %v1098
        %v1100 = vpop.xlane.xlu0 %1099
        %v1101 = vsub.f32 %v1040, %v1097
        %v1102 = vsub.f32 %v1090, %v1100
        %v1103 = vmul.f32 %v1101, 1.442695
        %v1104 = vpow.pop %v1103
        %v1105 = vmul.f32 %v1102, 1.442695
        %v1106 = vpow.pop %v1105
        %v1107 = vsel %vm545, %v1104, 0.0
        %1108 = vadd.xlane.f32.xlu0 %v1107
        %v1109 = vpop.xlane.xlu0 %1108
        %v1110 = vsel %vm545, %v1106, 0.0
        %1111 = vadd.xlane.f32.xlu0 %v1110
        %v1112 = vpop.xlane.xlu0 %1111
        %v1113 = vrcp.pop %v1109
        %v1114 = vrcp.pop %v1112
        %v1115 = vmul.f32 %v1104, %v1113
        %v1116 = vmul.f32 %v1106, %v1114
        %v1117 = vpack.c.bf16 %v1115, %v1115
        %v1118 = vpack.c.bf16 %v1116, %v1116
        %1119 = vrot.lane.b32.xlu0 %v540, 48
        %v1120 = vpop.permute.xlu0 %1119
        %v1122 = vsel %vm545, %v1117, 0
        %v1125 = vsel %vm670, %v1120, 0
        %1127 = vmatprep.subr.bf16.mxu0 0
        %1128 = vmatpush1.bf16.msra.mxu0 %v1125
        %1129 = vmatprep.subr.bf16.mxu0 0
        %1130 = vmatpush1.bf16.msra.mxu0 0
        %1131 = vmatprep.subr.bf16.mxu0 0
        %1132 = vmatpush1.bf16.msra.mxu0 0
        %1133 = vmatprep.subr.bf16.mxu0 0
        %1134 = vmatpush1.bf16.msra.mxu0 0
        %1135 = vmatprep.subr.bf16.mxu0 0
        %1136 = vmatpush1.bf16.msra.mxu0 0
        %1137 = vmatprep.subr.bf16.mxu0 0
        %1138 = vmatpush1.bf16.msra.mxu0 0
        %1139 = vmatprep.subr.bf16.mxu0 0
        %1140 = vmatpush1.bf16.msra.mxu0 0
        %1141 = vmatprep.subr.bf16.mxu0 0
        %1142 = vmatpush1.bf16.msra.mxu0 0
        %1143 = vmatprep.subr.bf16.mxu0 0
        %1144 = vmatpush1.bf16.msra.mxu0 0
        %1145 = vmatprep.subr.bf16.mxu0 0
        %1146 = vmatpush1.bf16.msra.mxu0 0
        %1147 = vmatprep.subr.bf16.mxu0 0
        %1148 = vmatpush1.bf16.msra.mxu0 0
        %1149 = vmatprep.subr.bf16.mxu0 0
        %1150 = vmatpush1.bf16.msra.mxu0 0
        %1151 = vmatprep.subr.bf16.mxu0 0
        %1152 = vmatpush1.bf16.msra.mxu0 0
        %1153 = vmatprep.subr.bf16.mxu0 0
        %1154 = vmatpush1.bf16.msra.mxu0 0
        %1155 = vmatprep.subr.bf16.mxu0 0
        %1156 = vmatpush1.bf16.msra.mxu0 0
        %1157 = vmatprep.subr.bf16.mxu0 0
        %1158 = vmatpush1.bf16.msra.mxu0 0
        %1159 = vmatprep.mubr.bf16.mxu0 0
        %1160 = vmatmul.mubr.bf16.gmra.mrb[0].mxu0 %v1122
        %v1161 = vpop.f32.mrb[0].mxu0
        %v1162 = vadd.f32 0.0, %v1161
        %v1163 = vpop.f32.mrb[0].mxu0
        %v1164 = vpop.f32.mrb[0].mxu0
        %v1165 = vpop.f32.mrb[0].mxu0
        %1166 = vdwg.mxu0
        %1167 = vrot.lane.b32.xlu0 %v541, 48
        %v1168 = vpop.permute.xlu0 %1167
        %v1170 = vsel %vm545, %v1118, 0
        %v1173 = vsel %vm670, %v1168, 0
        %1175 = vmatprep.subr.bf16.mxu0 0
        %1176 = vmatpush1.bf16.msra.mxu0 %v1173
        %1177 = vmatprep.subr.bf16.mxu0 0
        %1178 = vmatpush1.bf16.msra.mxu0 0
        %1179 = vmatprep.subr.bf16.mxu0 0
        %1180 = vmatpush1.bf16.msra.mxu0 0
        %1181 = vmatprep.subr.bf16.mxu0 0
        %1182 = vmatpush1.bf16.msra.mxu0 0
        %1183 = vmatprep.subr.bf16.mxu0 0
        %1184 = vmatpush1.bf16.msra.mxu0 0
        %1185 = vmatprep.subr.bf16.mxu0 0
        %1186 = vmatpush1.bf16.msra.mxu0 0
        %1187 = vmatprep.subr.bf16.mxu0 0
        %1188 = vmatpush1.bf16.msra.mxu0 0
        %1189 = vmatprep.subr.bf16.mxu0 0
        %1190 = vmatpush1.bf16.msra.mxu0 0
        %1191 = vmatprep.subr.bf16.mxu0 0
        %1192 = vmatpush1.bf16.msra.mxu0 0
        %1193 = vmatprep.subr.bf16.mxu0 0
        %1194 = vmatpush1.bf16.msra.mxu0 0
        %1195 = vmatprep.subr.bf16.mxu0 0
        %1196 = vmatpush1.bf16.msra.mxu0 0
        %1197 = vmatprep.subr.bf16.mxu0 0
        %1198 = vmatpush1.bf16.msra.mxu0 0
        %1199 = vmatprep.subr.bf16.mxu0 0
        %1200 = vmatpush1.bf16.msra.mxu0 0
        %1201 = vmatprep.subr.bf16.mxu0 0
        %1202 = vmatpush1.bf16.msra.mxu0 0
        %1203 = vmatprep.subr.bf16.mxu0 0
        %1204 = vmatpush1.bf16.msra.mxu0 0
        %1205 = vmatprep.subr.bf16.mxu0 0
        %1206 = vmatpush1.bf16.msra.mxu0 0
        %1207 = vmatprep.mubr.bf16.mxu0 0
        %1208 = vmatmul.mubr.bf16.gmra.mrb[0].mxu0 %v1170
        %v1209 = vpop.f32.mrb[0].mxu0
        %v1210 = vadd.f32 0.0, %v1209
        %v1211 = vpop.f32.mrb[0].mxu0
        %v1212 = vpop.f32.mrb[0].mxu0
        %v1213 = vpop.f32.mrb[0].mxu0
        %1214 = vdwg.mxu0
        %1217 = vrot.lane.b32.xlu0 %v1162, 16
        %v1218 = vpop.permute.xlu0 %1217
        %1219 = vrot.lane.b32.xlu0 %v1210, 16
        %v1220 = vpop.permute.xlu0 %1219
        %vm1223 = vcmask 195712
        %1224 = vst.msk [vmem:[#allocation2] sm:$0xff] %vm1223, %v1218
        %1225 = vst.msk [vmem:[#allocation2 + $0x8] sm:$0xff] %vm1223, %v1220
        %1226 = vrot.lane.b32.xlu0 %v540, 104
        %v1227 = vpop.permute.xlu0 %1226
        %1228 = vrot.lane.b32.xlu0 %v540, 72
        %v1229 = vpop.permute.xlu0 %1228
        %v1231 = vsel %vm545, %v1227, 0
        %v1234 = vsel %vm545, %v1229, 0
        %1236 = vmatprep.subr.bf16.mxu0 0
        %1237 = vmatpush1.bf16.xpose.msra.mxu0 %v1234
        %1238 = vmatprep.subr.bf16.mxu0 0
        %1239 = vmatpush1.bf16.xpose.msra.mxu0 0
        %1240 = vmatprep.subr.bf16.mxu0 0
        %1241 = vmatpush1.bf16.xpose.msra.mxu0 0
        %1242 = vmatprep.subr.bf16.mxu0 0
        %1243 = vmatpush1.bf16.xpose.msra.mxu0 0
        %1244 = vmatprep.subr.bf16.mxu0 0
        %1245 = vmatpush1.bf16.xpose.msra.mxu0 0
        %1246 = vmatprep.subr.bf16.mxu0 0
        %1247 = vmatpush1.bf16.xpose.msra.mxu0 0
        %1248 = vmatprep.subr.bf16.mxu0 0
        %1249 = vmatpush1.bf16.xpose.msra.mxu0 0
        %1250 = vmatprep.subr.bf16.mxu0 0
        %1251 = vmatpush1.bf16.xpose.msra.mxu0 0
        %1252 = vmatprep.subr.bf16.mxu0 0
        %1253 = vmatpush1.bf16.xpose.msra.mxu0 0
        %1254 = vmatprep.subr.bf16.mxu0 0
        %1255 = vmatpush1.bf16.xpose.msra.mxu0 0
        %1256 = vmatprep.subr.bf16.mxu0 0
        %1257 = vmatpush1.bf16.xpose.msra.mxu0 0
        %1258 = vmatprep.subr.bf16.mxu0 0
        %1259 = vmatpush1.bf16.xpose.msra.mxu0 0
        %1260 = vmatprep.subr.bf16.mxu0 0
        %1261 = vmatpush1.bf16.xpose.msra.mxu0 0
        %1262 = vmatprep.subr.bf16.mxu0 0
        %1263 = vmatpush1.bf16.xpose.msra.mxu0 0
        %1264 = vmatprep.subr.bf16.mxu0 0
        %1265 = vmatpush1.bf16.xpose.msra.mxu0 0
        %1266 = vmatprep.subr.bf16.mxu0 0
        %1267 = vmatpush1.bf16.xpose.msra.mxu0 0
        %1268 = vmatprep.mubr.bf16.mxu0 0
        %1269 = vmatmul.mubr.bf16.gmra.mrb[0].mxu0 %v1231
        %v1270 = vpop.f32.mrb[0].mxu0
        %v1271 = vadd.f32 0.0, %v1270
        %v1272 = vpop.f32.mrb[0].mxu0
        %v1273 = vpop.f32.mrb[0].mxu0
        %v1274 = vpop.f32.mrb[0].mxu0
        %1275 = vdwg.mxu0
        %1276 = vrot.lane.b32.xlu0 %v541, 104
        %v1277 = vpop.permute.xlu0 %1276
        %1278 = vrot.lane.b32.xlu0 %v541, 72
        %v1279 = vpop.permute.xlu0 %1278
        %v1281 = vsel %vm545, %v1277, 0
        %v1284 = vsel %vm545, %v1279, 0
        %1286 = vmatprep.subr.bf16.mxu0 0
        %1287 = vmatpush1.bf16.xpose.msra.mxu0 %v1284
        %1288 = vmatprep.subr.bf16.mxu0 0
        %1289 = vmatpush1.bf16.xpose.msra.mxu0 0
        %1290 = vmatprep.subr.bf16.mxu0 0
        %1291 = vmatpush1.bf16.xpose.msra.mxu0 0
        %1292 = vmatprep.subr.bf16.mxu0 0
        %1293 = vmatpush1.bf16.xpose.msra.mxu0 0
        %1294 = vmatprep.subr.bf16.mxu0 0
        %1295 = vmatpush1.bf16.xpose.msra.mxu0 0
        %1296 = vmatprep.subr.bf16.mxu0 0
        %1297 = vmatpush1.bf16.xpose.msra.mxu0 0
        %1298 = vmatprep.subr.bf16.mxu0 0
        %1299 = vmatpush1.bf16.xpose.msra.mxu0 0
        %1300 = vmatprep.subr.bf16.mxu0 0
        %1301 = vmatpush1.bf16.xpose.msra.mxu0 0
        %1302 = vmatprep.subr.bf16.mxu0 0
        %1303 = vmatpush1.bf16.xpose.msra.mxu0 0
        %1304 = vmatprep.subr.bf16.mxu0 0
        %1305 = vmatpush1.bf16.xpose.msra.mxu0 0
        %1306 = vmatprep.subr.bf16.mxu0 0
        %1307 = vmatpush1.bf16.xpose.msra.mxu0 0
        %1308 = vmatprep.subr.bf16.mxu0 0
        %1309 = vmatpush1.bf16.xpose.msra.mxu0 0
        %1310 = vmatprep.subr.bf16.mxu0 0
        %1311 = vmatpush1.bf16.xpose.msra.mxu0 0
        %1312 = vmatprep.subr.bf16.mxu0 0
        %1313 = vmatpush1.bf16.xpose.msra.mxu0 0
        %1314 = vmatprep.subr.bf16.mxu0 0
        %1315 = vmatpush1.bf16.xpose.msra.mxu0 0
        %1316 = vmatprep.subr.bf16.mxu0 0
        %1317 = vmatpush1.bf16.xpose.msra.mxu0 0
        %1318 = vmatprep.mubr.bf16.mxu0 0
        %1319 = vmatmul.mubr.bf16.gmra.mrb[0].mxu0 %v1281
        %v1320 = vpop.f32.mrb[0].mxu0
        %v1321 = vadd.f32 0.0, %v1320
        %v1322 = vpop.f32.mrb[0].mxu0
        %v1323 = vpop.f32.mrb[0].mxu0
        %v1324 = vpop.f32.mrb[0].mxu0
        %1325 = vdwg.mxu0
        %v1326 = vsel %vm545, %v1271, -inf
        %1327 = vmax.xlane.f32.xlu0 %v1326
        %v1328 = vpop.xlane.xlu0 %1327
        %v1329 = vsel %vm545, %v1321, -inf
        %1330 = vmax.xlane.f32.xlu0 %v1329
        %v1331 = vpop.xlane.xlu0 %1330
        %v1332 = vsub.f32 %v1271, %v1328
        %v1333 = vsub.f32 %v1321, %v1331
        %v1334 = vmul.f32 %v1332, 1.442695
        %v1335 = vpow.pop %v1334
        %v1336 = vmul.f32 %v1333, 1.442695
        %v1337 = vpow.pop %v1336
        %v1338 = vsel %vm545, %v1335, 0.0
        %1339 = vadd.xlane.f32.xlu0 %v1338
        %v1340 = vpop.xlane.xlu0 %1339
        %v1341 = vsel %vm545, %v1337, 0.0
        %1342 = vadd.xlane.f32.xlu0 %v1341
        %v1343 = vpop.xlane.xlu0 %1342
        %v1344 = vrcp.pop %v1340
        %v1345 = vrcp.pop %v1343
        %v1346 = vmul.f32 %v1335, %v1344
        %v1347 = vmul.f32 %v1337, %v1345
        %v1348 = vpack.c.bf16 %v1346, %v1346
        %v1349 = vpack.c.bf16 %v1347, %v1347
        %1350 = vrot.lane.b32.xlu0 %v540, 40
        %v1351 = vpop.permute.xlu0 %1350
        %v1353 = vsel %vm545, %v1348, 0
        %v1356 = vsel %vm670, %v1351, 0
        %1358 = vmatprep.subr.bf16.mxu0 0
        %1359 = vmatpush1.bf16.msra.mxu0 %v1356
        %1360 = vmatprep.subr.bf16.mxu0 0
        %1361 = vmatpush1.bf16.msra.mxu0 0
        %1362 = vmatprep.subr.bf16.mxu0 0
        %1363 = vmatpush1.bf16.msra.mxu0 0
        %1364 = vmatprep.subr.bf16.mxu0 0
        %1365 = vmatpush1.bf16.msra.mxu0 0
        %1366 = vmatprep.subr.bf16.mxu0 0
        %1367 = vmatpush1.bf16.msra.mxu0 0
        %1368 = vmatprep.subr.bf16.mxu0 0
        %1369 = vmatpush1.bf16.msra.mxu0 0
        %1370 = vmatprep.subr.bf16.mxu0 0
        %1371 = vmatpush1.bf16.msra.mxu0 0
        %1372 = vmatprep.subr.bf16.mxu0 0
        %1373 = vmatpush1.bf16.msra.mxu0 0
        %1374 = vmatprep.subr.bf16.mxu0 0
        %1375 = vmatpush1.bf16.msra.mxu0 0
        %1376 = vmatprep.subr.bf16.mxu0 0
        %1377 = vmatpush1.bf16.msra.mxu0 0
        %1378 = vmatprep.subr.bf16.mxu0 0
        %1379 = vmatpush1.bf16.msra.mxu0 0
        %1380 = vmatprep.subr.bf16.mxu0 0
        %1381 = vmatpush1.bf16.msra.mxu0 0
        %1382 = vmatprep.subr.bf16.mxu0 0
        %1383 = vmatpush1.bf16.msra.mxu0 0
        %1384 = vmatprep.subr.bf16.mxu0 0
        %1385 = vmatpush1.bf16.msra.mxu0 0
        %1386 = vmatprep.subr.bf16.mxu0 0
        %1387 = vmatpush1.bf16.msra.mxu0 0
        %1388 = vmatprep.subr.bf16.mxu0 0
        %1389 = vmatpush1.bf16.msra.mxu0 0
        %1390 = vmatprep.mubr.bf16.mxu0 0
        %1391 = vmatmul.mubr.bf16.gmra.mrb[0].mxu0 %v1353
        %v1392 = vpop.f32.mrb[0].mxu0
        %v1393 = vadd.f32 0.0, %v1392
        %v1394 = vpop.f32.mrb[0].mxu0
        %v1395 = vpop.f32.mrb[0].mxu0
        %v1396 = vpop.f32.mrb[0].mxu0
        %1397 = vdwg.mxu0
        %1398 = vrot.lane.b32.xlu0 %v541, 40
        %v1399 = vpop.permute.xlu0 %1398
        %v1401 = vsel %vm545, %v1349, 0
        %v1404 = vsel %vm670, %v1399, 0
        %1406 = vmatprep.subr.bf16.mxu0 0
        %1407 = vmatpush1.bf16.msra.mxu0 %v1404
        %1408 = vmatprep.subr.bf16.mxu0 0
        %1409 = vmatpush1.bf16.msra.mxu0 0
        %1410 = vmatprep.subr.bf16.mxu0 0
        %1411 = vmatpush1.bf16.msra.mxu0 0
        %1412 = vmatprep.subr.bf16.mxu0 0
        %1413 = vmatpush1.bf16.msra.mxu0 0
        %1414 = vmatprep.subr.bf16.mxu0 0
        %1415 = vmatpush1.bf16.msra.mxu0 0
        %1416 = vmatprep.subr.bf16.mxu0 0
        %1417 = vmatpush1.bf16.msra.mxu0 0
        %1418 = vmatprep.subr.bf16.mxu0 0
        %1419 = vmatpush1.bf16.msra.mxu0 0
        %1420 = vmatprep.subr.bf16.mxu0 0
        %1421 = vmatpush1.bf16.msra.mxu0 0
        %1422 = vmatprep.subr.bf16.mxu0 0
        %1423 = vmatpush1.bf16.msra.mxu0 0
        %1424 = vmatprep.subr.bf16.mxu0 0
        %1425 = vmatpush1.bf16.msra.mxu0 0
        %1426 = vmatprep.subr.bf16.mxu0 0
        %1427 = vmatpush1.bf16.msra.mxu0 0
        %1428 = vmatprep.subr.bf16.mxu0 0
        %1429 = vmatpush1.bf16.msra.mxu0 0
        %1430 = vmatprep.subr.bf16.mxu0 0
        %1431 = vmatpush1.bf16.msra.mxu0 0
        %1432 = vmatprep.subr.bf16.mxu0 0
        %1433 = vmatpush1.bf16.msra.mxu0 0
        %1434 = vmatprep.subr.bf16.mxu0 0
        %1435 = vmatpush1.bf16.msra.mxu0 0
        %1436 = vmatprep.subr.bf16.mxu0 0
        %1437 = vmatpush1.bf16.msra.mxu0 0
        %1438 = vmatprep.mubr.bf16.mxu0 0
        %1439 = vmatmul.mubr.bf16.gmra.mrb[0].mxu0 %v1401
        %v1440 = vpop.f32.mrb[0].mxu0
        %v1441 = vadd.f32 0.0, %v1440
        %v1442 = vpop.f32.mrb[0].mxu0
        %v1443 = vpop.f32.mrb[0].mxu0
        %v1444 = vpop.f32.mrb[0].mxu0
        %1445 = vdwg.mxu0
        %1448 = vrot.lane.b32.xlu0 %v1393, 24
        %v1449 = vpop.permute.xlu0 %1448
        %1450 = vrot.lane.b32.xlu0 %v1441, 24
        %v1451 = vpop.permute.xlu0 %1450
        %vm1454 = vcmask 261312
        %1455 = vst.msk [vmem:[#allocation2] sm:$0xff] %vm1454, %v1449
        %1456 = vst.msk [vmem:[#allocation2 + $0x8] sm:$0xff] %vm1454, %v1451
        %v1457 = vld [vmem:[#allocation2] sm:$0xff]
        %v1458 = vld [vmem:[#allocation2 + $0x8] sm:$0xff]
        %v1459 = vpack.c.bf16 %v1458, %v1457
        %v1460 = vlaneseq
        %v1461 = vshrl.u32 %v1460, 7
        %v1462 = vsub.s32 0, %v1461
        %v1463 = vrot.slane %v403, %v1462
        %v1468 = vunpack.c.l.b16 %v412
        %v1469 = vunpack.c.l.b16 %v413
        %v1470 = vunpack.c.l.b16 %v414
        %v1471 = vunpack.c.l.b16 %v415
        %v1472 = vpack.c.b16 %v1469, %v1468
        %v1473 = vpack.c.b16 %v1471, %v1470
        %v1477 = vsel %vm436, %v1459, 0
        %1479 = vmatprep.subr.bf16.mxu0 0
        %1480 = vmatpush1.bf16.msra.mxu0 %v1472
        %1481 = vmatprep.subr.bf16.mxu0 0
        %1482 = vmatpush1.bf16.msra.mxu0 %v1473
        %1483 = vmatprep.subr.bf16.mxu0 0
        %1484 = vmatpush1.bf16.msra.mxu0 0
        %1485 = vmatprep.subr.bf16.mxu0 0
        %1486 = vmatpush1.bf16.msra.mxu0 0
        %1487 = vmatprep.subr.bf16.mxu0 0
        %1488 = vmatpush1.bf16.msra.mxu0 0
        %1489 = vmatprep.subr.bf16.mxu0 0
        %1490 = vmatpush1.bf16.msra.mxu0 0
        %1491 = vmatprep.subr.bf16.mxu0 0
        %1492 = vmatpush1.bf16.msra.mxu0 0
        %1493 = vmatprep.subr.bf16.mxu0 0
        %1494 = vmatpush1.bf16.msra.mxu0 0
        %1495 = vmatprep.subr.bf16.mxu0 0
        %1496 = vmatpush1.bf16.msra.mxu0 0
        %1497 = vmatprep.subr.bf16.mxu0 0
        %1498 = vmatpush1.bf16.msra.mxu0 0
        %1499 = vmatprep.subr.bf16.mxu0 0
        %1500 = vmatpush1.bf16.msra.mxu0 0
        %1501 = vmatprep.subr.bf16.mxu0 0
        %1502 = vmatpush1.bf16.msra.mxu0 0
        %1503 = vmatprep.subr.bf16.mxu0 0
        %1504 = vmatpush1.bf16.msra.mxu0 0
        %1505 = vmatprep.subr.bf16.mxu0 0
        %1506 = vmatpush1.bf16.msra.mxu0 0
        %1507 = vmatprep.subr.bf16.mxu0 0
        %1508 = vmatpush1.bf16.msra.mxu0 0
        %1509 = vmatprep.subr.bf16.mxu0 0
        %1510 = vmatpush1.bf16.msra.mxu0 0
        %1511 = vmatprep.mubr.bf16.mxu0 0
        %1512 = vmatmul.mubr.bf16.gmra.mrb[0].mxu0 %v1477
        %v1513 = vpop.f32.mrb[0].mxu0
        %v1514 = vadd.f32 %v1463, %v1513
        %v1515 = vpop.f32.mrb[0].mxu0
        %v1516 = vpop.f32.mrb[0].mxu0
        %v1517 = vadd.f32 %v1463, %v1516
        %v1518 = vpop.f32.mrb[0].mxu0
        %1519 = vdwg.mxu0
        %v1520 = vadd.f32 %v432, %v1514
        %v1521 = vadd.f32 %v433, %v1517
        %v1522 = vsel %vm436, %v1520, 0.0
        %1523 = vadd.xlane.f32.xlu0 %v1522
        %v1524 = vpop.xlane.xlu0 %1523
        %v1525 = vsel %vm436, %v1521, 0.0
        %1526 = vadd.xlane.f32.xlu0 %v1525
        %v1527 = vpop.xlane.xlu0 %1526
        %v1528 = vmul.f32 %v1520, %v1520
        %v1529 = vmul.f32 %v1521, %v1521
        %v1530 = vsel %vm436, %v1528, 0.0
        %1531 = vadd.xlane.f32.xlu0 %v1530
        %v1532 = vpop.xlane.xlu0 %1531
        %v1533 = vsel %vm436, %v1529, 0.0
        %1534 = vadd.xlane.f32.xlu0 %v1533
        %v1535 = vpop.xlane.xlu0 %1534
        %v1536 = vmul.f32 %v1524, 0.03125
        %v1537 = vmul.f32 %v1527, 0.03125
        %v1538 = vmul.f32 %v1532, 0.03125
        %v1539 = vmul.f32 %v1535, 0.03125
        %v1540 = vmul.f32 %v1536, %v1536
        %v1541 = vmul.f32 %v1537, %v1537
        %v1542 = vsub.f32 %v1538, %v1540
        %v1543 = vsub.f32 %v1539, %v1541
        %v1544 = vsub.f32 %v1520, %v1536
        %v1545 = vsub.f32 %v1521, %v1537
        %v1546 = vadd.f32 %v1542, 1e-05
        %v1547 = vadd.f32 %v1543, 1e-05
        %v1548 = vrsqrt.pop %v1546
        %v1549 = vrsqrt.pop %v1547
        %v1550 = vmul.f32 %v1544, %v1548
        %v1551 = vmul.f32 %v1545, %v1549
        %v1552 = vlaneseq
        %v1553 = vshrl.u32 %v1552, 7
        %v1554 = vsub.s32 2, %v1553
        %v1555 = vrot.slane %v402, %v1554
        %v1556 = vmul.f32 %v1550, %v1555
        %v1557 = vmul.f32 %v1551, %v1555
        %v1558 = vlaneseq
        %v1559 = vshrl.u32 %v1558, 7
        %v1560 = vsub.s32 3, %v1559
        %v1561 = vrot.slane %v402, %v1560
        %v1562 = vadd.f32 %v1556, %v1561
        %v1563 = vadd.f32 %v1557, %v1561
        %v1564 = vpack.c.bf16 %v1563, %v1562
        %v1565 = vlaneseq
        %v1566 = vshrl.u32 %v1565, 7
        %v1567 = vsub.s32 7, %v1566
        %v1568 = vrot.slane %v402, %v1567
        %v1573 = vunpack.c.l.b16 %v408
        %v1574 = vunpack.c.l.b16 %v409
        %v1575 = vunpack.c.l.b16 %v410
        %v1576 = vunpack.c.l.b16 %v411
        %v1577 = vpack.c.b16 %v1574, %v1573
        %v1578 = vpack.c.b16 %v1576, %v1575
        %v1582 = vsel %vm436, %v1564, 0
        %1584 = vmatprep.subr.bf16.mxu0 0
        %1585 = vmatpush1.bf16.msra.mxu0 %v1577
        %1586 = vmatprep.subr.bf16.mxu0 0
        %1587 = vmatpush1.bf16.msra.mxu0 %v1578
        %1588 = vmatprep.subr.bf16.mxu0 0
        %1589 = vmatpush1.bf16.msra.mxu0 0
        %1590 = vmatprep.subr.bf16.mxu0 0
        %1591 = vmatpush1.bf16.msra.mxu0 0
        %1592 = vmatprep.subr.bf16.mxu0 0
        %1593 = vmatpush1.bf16.msra.mxu0 0
        %1594 = vmatprep.subr.bf16.mxu0 0
        %1595 = vmatpush1.bf16.msra.mxu0 0
        %1596 = vmatprep.subr.bf16.mxu0 0
        %1597 = vmatpush1.bf16.msra.mxu0 0
        %1598 = vmatprep.subr.bf16.mxu0 0
        %1599 = vmatpush1.bf16.msra.mxu0 0
        %1600 = vmatprep.subr.bf16.mxu0 0
        %1601 = vmatpush1.bf16.msra.mxu0 0
        %1602 = vmatprep.subr.bf16.mxu0 0
        %1603 = vmatpush1.bf16.msra.mxu0 0
        %1604 = vmatprep.subr.bf16.mxu0 0
        %1605 = vmatpush1.bf16.msra.mxu0 0
        %1606 = vmatprep.subr.bf16.mxu0 0
        %1607 = vmatpush1.bf16.msra.mxu0 0
        %1608 = vmatprep.subr.bf16.mxu0 0
        %1609 = vmatpush1.bf16.msra.mxu0 0
        %1610 = vmatprep.subr.bf16.mxu0 0
        %1611 = vmatpush1.bf16.msra.mxu0 0
        %1612 = vmatprep.subr.bf16.mxu0 0
        %1613 = vmatpush1.bf16.msra.mxu0 0
        %1614 = vmatprep.subr.bf16.mxu0 0
        %1615 = vmatpush1.bf16.msra.mxu0 0
        %1616 = vmatprep.mubr.bf16.mxu0 0
        %1617 = vmatmul.mubr.bf16.gmra.mrb[0].mxu0 %v1582
        %v1618 = vpop.f32.mrb[0].mxu0
        %v1619 = vadd.f32 %v1568, %v1618
        %v1620 = vpop.f32.mrb[0].mxu0
        %v1621 = vpop.f32.mrb[0].mxu0
        %v1622 = vadd.f32 %v1568, %v1621
        %v1623 = vpop.f32.mrb[0].mxu0
        %1624 = vdwg.mxu0
        %v1625 = vpack.c.bf16 %v435, %v434
        %1626 = vrot.lane.b32.xlu0 %v1577, 96
        %v1627 = vpop.permute.xlu0 %1626
        %1628 = vrot.lane.b32.xlu0 %v1578, 96
        %v1629 = vpop.permute.xlu0 %1628
        %1633 = vrot.lane.b32.xlu0 %v1568, 96
        %v1634 = vpop.permute.xlu0 %1633
        %v1637 = vsel %vm436, %v1625, 0
        %1639 = vmatprep.subr.bf16.mxu0 0
        %1640 = vmatpush1.bf16.msra.mxu0 %v1627
        %1641 = vmatprep.subr.bf16.mxu0 0
        %1642 = vmatpush1.bf16.msra.mxu0 %v1629
        %1643 = vmatprep.subr.bf16.mxu0 0
        %1644 = vmatpush1.bf16.msra.mxu0 0
        %1645 = vmatprep.subr.bf16.mxu0 0
        %1646 = vmatpush1.bf16.msra.mxu0 0
        %1647 = vmatprep.subr.bf16.mxu0 0
        %1648 = vmatpush1.bf16.msra.mxu0 0
        %1649 = vmatprep.subr.bf16.mxu0 0
        %1650 = vmatpush1.bf16.msra.mxu0 0
        %1651 = vmatprep.subr.bf16.mxu0 0
        %1652 = vmatpush1.bf16.msra.mxu0 0
        %1653 = vmatprep.subr.bf16.mxu0 0
        %1654 = vmatpush1.bf16.msra.mxu0 0
        %1655 = vmatprep.subr.bf16.mxu0 0
        %1656 = vmatpush1.bf16.msra.mxu0 0
        %1657 = vmatprep.subr.bf16.mxu0 0
        %1658 = vmatpush1.bf16.msra.mxu0 0
        %1659 = vmatprep.subr.bf16.mxu0 0
        %1660 = vmatpush1.bf16.msra.mxu0 0
        %1661 = vmatprep.subr.bf16.mxu0 0
        %1662 = vmatpush1.bf16.msra.mxu0 0
        %1663 = vmatprep.subr.bf16.mxu0 0
        %1664 = vmatpush1.bf16.msra.mxu0 0
        %1665 = vmatprep.subr.bf16.mxu0 0
        %1666 = vmatpush1.bf16.msra.mxu0 0
        %1667 = vmatprep.subr.bf16.mxu0 0
        %1668 = vmatpush1.bf16.msra.mxu0 0
        %1669 = vmatprep.subr.bf16.mxu0 0
        %1670 = vmatpush1.bf16.msra.mxu0 0
        %1671 = vmatprep.mubr.bf16.mxu0 0
        %1672 = vmatmul.mubr.bf16.gmra.mrb[0].mxu0 %v1637
        %v1673 = vpop.f32.mrb[0].mxu0
        %v1674 = vadd.f32 %v1634, %v1673
        %v1675 = vpop.f32.mrb[0].mxu0
        %v1676 = vpop.f32.mrb[0].mxu0
        %v1677 = vadd.f32 %v1634, %v1676
        %v1678 = vpop.f32.mrb[0].mxu0
        %1679 = vdwg.mxu0
        %v1680 = vpack.c.bf16 %v1619, %v1619
        %v1681 = vpack.c.bf16 %v1622, %v1622
        %v1682 = vpack.c.bf16 %v1674, %v1674
        %v1683 = vpack.c.bf16 %v1677, %v1677
        %v1685 = vsel %vm545, %v1680, 0
        %v1688 = vsel %vm545, %v1682, 0
        %1690 = vmatprep.subr.bf16.mxu0 0
        %1691 = vmatpush1.bf16.xpose.msra.mxu0 %v1688
        %1692 = vmatprep.subr.bf16.mxu0 0
        %1693 = vmatpush1.bf16.xpose.msra.mxu0 0
        %1694 = vmatprep.subr.bf16.mxu0 0
        %1695 = vmatpush1.bf16.xpose.msra.mxu0 0
        %1696 = vmatprep.subr.bf16.mxu0 0
        %1697 = vmatpush1.bf16.xpose.msra.mxu0 0
        %1698 = vmatprep.subr.bf16.mxu0 0
        %1699 = vmatpush1.bf16.xpose.msra.mxu0 0
        %1700 = vmatprep.subr.bf16.mxu0 0
        %1701 = vmatpush1.bf16.xpose.msra.mxu0 0
        %1702 = vmatprep.subr.bf16.mxu0 0
        %1703 = vmatpush1.bf16.xpose.msra.mxu0 0
        %1704 = vmatprep.subr.bf16.mxu0 0
        %1705 = vmatpush1.bf16.xpose.msra.mxu0 0
        %1706 = vmatprep.subr.bf16.mxu0 0
        %1707 = vmatpush1.bf16.xpose.msra.mxu0 0
        %1708 = vmatprep.subr.bf16.mxu0 0
        %1709 = vmatpush1.bf16.xpose.msra.mxu0 0
        %1710 = vmatprep.subr.bf16.mxu0 0
        %1711 = vmatpush1.bf16.xpose.msra.mxu0 0
        %1712 = vmatprep.subr.bf16.mxu0 0
        %1713 = vmatpush1.bf16.xpose.msra.mxu0 0
        %1714 = vmatprep.subr.bf16.mxu0 0
        %1715 = vmatpush1.bf16.xpose.msra.mxu0 0
        %1716 = vmatprep.subr.bf16.mxu0 0
        %1717 = vmatpush1.bf16.xpose.msra.mxu0 0
        %1718 = vmatprep.subr.bf16.mxu0 0
        %1719 = vmatpush1.bf16.xpose.msra.mxu0 0
        %1720 = vmatprep.subr.bf16.mxu0 0
        %1721 = vmatpush1.bf16.xpose.msra.mxu0 0
        %1722 = vmatprep.mubr.bf16.mxu0 0
        %1723 = vmatmul.mubr.bf16.gmra.mrb[0].mxu0 %v1685
        %v1724 = vpop.f32.mrb[0].mxu0
        %v1725 = vadd.f32 0.0, %v1724
        %v1726 = vpop.f32.mrb[0].mxu0
        %v1727 = vpop.f32.mrb[0].mxu0
        %v1728 = vpop.f32.mrb[0].mxu0
        %1729 = vdwg.mxu0
        %v1731 = vsel %vm545, %v1681, 0
        %v1734 = vsel %vm545, %v1683, 0
        %1736 = vmatprep.subr.bf16.mxu0 0
        %1737 = vmatpush1.bf16.xpose.msra.mxu0 %v1734
        %1738 = vmatprep.subr.bf16.mxu0 0
        %1739 = vmatpush1.bf16.xpose.msra.mxu0 0
        %1740 = vmatprep.subr.bf16.mxu0 0
        %1741 = vmatpush1.bf16.xpose.msra.mxu0 0
        %1742 = vmatprep.subr.bf16.mxu0 0
        %1743 = vmatpush1.bf16.xpose.msra.mxu0 0
        %1744 = vmatprep.subr.bf16.mxu0 0
        %1745 = vmatpush1.bf16.xpose.msra.mxu0 0
        %1746 = vmatprep.subr.bf16.mxu0 0
        %1747 = vmatpush1.bf16.xpose.msra.mxu0 0
        %1748 = vmatprep.subr.bf16.mxu0 0
        %1749 = vmatpush1.bf16.xpose.msra.mxu0 0
        %1750 = vmatprep.subr.bf16.mxu0 0
        %1751 = vmatpush1.bf16.xpose.msra.mxu0 0
        %1752 = vmatprep.subr.bf16.mxu0 0
        %1753 = vmatpush1.bf16.xpose.msra.mxu0 0
        %1754 = vmatprep.subr.bf16.mxu0 0
        %1755 = vmatpush1.bf16.xpose.msra.mxu0 0
        %1756 = vmatprep.subr.bf16.mxu0 0
        %1757 = vmatpush1.bf16.xpose.msra.mxu0 0
        %1758 = vmatprep.subr.bf16.mxu0 0
        %1759 = vmatpush1.bf16.xpose.msra.mxu0 0
        %1760 = vmatprep.subr.bf16.mxu0 0
        %1761 = vmatpush1.bf16.xpose.msra.mxu0 0
        %1762 = vmatprep.subr.bf16.mxu0 0
        %1763 = vmatpush1.bf16.xpose.msra.mxu0 0
        %1764 = vmatprep.subr.bf16.mxu0 0
        %1765 = vmatpush1.bf16.xpose.msra.mxu0 0
        %1766 = vmatprep.subr.bf16.mxu0 0
        %1767 = vmatpush1.bf16.xpose.msra.mxu0 0
        %1768 = vmatprep.mubr.bf16.mxu0 0
        %1769 = vmatmul.mubr.bf16.gmra.mrb[0].mxu0 %v1731
        %v1770 = vpop.f32.mrb[0].mxu0
        %v1771 = vadd.f32 0.0, %v1770
        %v1772 = vpop.f32.mrb[0].mxu0
        %v1773 = vpop.f32.mrb[0].mxu0
        %v1774 = vpop.f32.mrb[0].mxu0
        %1775 = vdwg.mxu0
        %v1776 = vsel %vm545, %v1725, -inf
        %1777 = vmax.xlane.f32.xlu0 %v1776
        %v1778 = vpop.xlane.xlu0 %1777
        %v1779 = vsel %vm545, %v1771, -inf
        %1780 = vmax.xlane.f32.xlu0 %v1779
        %v1781 = vpop.xlane.xlu0 %1780
        %v1782 = vsub.f32 %v1725, %v1778
        %v1783 = vsub.f32 %v1771, %v1781
        %v1784 = vmul.f32 %v1782, 1.442695
        %v1785 = vpow.pop %v1784
        %v1786 = vmul.f32 %v1783, 1.442695
        %v1787 = vpow.pop %v1786
        %v1788 = vsel %vm545, %v1785, 0.0
        %1789 = vadd.xlane.f32.xlu0 %v1788
        %v1790 = vpop.xlane.xlu0 %1789
        %v1791 = vsel %vm545, %v1787, 0.0
        %1792 = vadd.xlane.f32.xlu0 %v1791
        %v1793 = vpop.xlane.xlu0 %1792
        %v1794 = vrcp.pop %v1790
        %v1795 = vrcp.pop %v1793
        %v1796 = vmul.f32 %v1785, %v1794
        %v1797 = vmul.f32 %v1787, %v1795
        %v1798 = vpack.c.bf16 %v1796, %v1796
        %v1799 = vpack.c.bf16 %v1797, %v1797
        %1801 = vrot.lane.b32.xlu0 %v1682, 96
        %v1802 = vpop.permute.xlu0 %1801
        %v1804 = vsel %vm545, %v1798, 0
        %v1807 = vsel %vm670, %v1802, 0
        %1809 = vmatprep.subr.bf16.mxu0 0
        %1810 = vmatpush1.bf16.msra.mxu0 %v1807
        %1811 = vmatprep.subr.bf16.mxu0 0
        %1812 = vmatpush1.bf16.msra.mxu0 0
        %1813 = vmatprep.subr.bf16.mxu0 0
        %1814 = vmatpush1.bf16.msra.mxu0 0
        %1815 = vmatprep.subr.bf16.mxu0 0
        %1816 = vmatpush1.bf16.msra.mxu0 0
        %1817 = vmatprep.subr.bf16.mxu0 0
        %1818 = vmatpush1.bf16.msra.mxu0 0
        %1819 = vmatprep.subr.bf16.mxu0 0
        %1820 = vmatpush1.bf16.msra.mxu0 0
        %1821 = vmatprep.subr.bf16.mxu0 0
        %1822 = vmatpush1.bf16.msra.mxu0 0
        %1823 = vmatprep.subr.bf16.mxu0 0
        %1824 = vmatpush1.bf16.msra.mxu0 0
        %1825 = vmatprep.subr.bf16.mxu0 0
        %1826 = vmatpush1.bf16.msra.mxu0 0
        %1827 = vmatprep.subr.bf16.mxu0 0
        %1828 = vmatpush1.bf16.msra.mxu0 0
        %1829 = vmatprep.subr.bf16.mxu0 0
        %1830 = vmatpush1.bf16.msra.mxu0 0
        %1831 = vmatprep.subr.bf16.mxu0 0
        %1832 = vmatpush1.bf16.msra.mxu0 0
        %1833 = vmatprep.subr.bf16.mxu0 0
        %1834 = vmatpush1.bf16.msra.mxu0 0
        %1835 = vmatprep.subr.bf16.mxu0 0
        %1836 = vmatpush1.bf16.msra.mxu0 0
        %1837 = vmatprep.subr.bf16.mxu0 0
        %1838 = vmatpush1.bf16.msra.mxu0 0
        %1839 = vmatprep.subr.bf16.mxu0 0
        %1840 = vmatpush1.bf16.msra.mxu0 0
        %1841 = vmatprep.mubr.bf16.mxu0 0
        %1842 = vmatmul.mubr.bf16.gmra.mrb[0].mxu0 %v1804
        %v1843 = vpop.f32.mrb[0].mxu0
        %v1844 = vadd.f32 0.0, %v1843
        %v1845 = vpop.f32.mrb[0].mxu0
        %v1846 = vpop.f32.mrb[0].mxu0
        %v1847 = vpop.f32.mrb[0].mxu0
        %1848 = vdwg.mxu0
        %1850 = vrot.lane.b32.xlu0 %v1683, 96
        %v1851 = vpop.permute.xlu0 %1850
        %v1853 = vsel %vm545, %v1799, 0
        %v1856 = vsel %vm670, %v1851, 0
        %1858 = vmatprep.subr.bf16.mxu0 0
        %1859 = vmatpush1.bf16.msra.mxu0 %v1856
        %1860 = vmatprep.subr.bf16.mxu0 0
        %1861 = vmatpush1.bf16.msra.mxu0 0
        %1862 = vmatprep.subr.bf16.mxu0 0
        %1863 = vmatpush1.bf16.msra.mxu0 0
        %1864 = vmatprep.subr.bf16.mxu0 0
        %1865 = vmatpush1.bf16.msra.mxu0 0
        %1866 = vmatprep.subr.bf16.mxu0 0
        %1867 = vmatpush1.bf16.msra.mxu0 0
        %1868 = vmatprep.subr.bf16.mxu0 0
        %1869 = vmatpush1.bf16.msra.mxu0 0
        %1870 = vmatprep.subr.bf16.mxu0 0
        %1871 = vmatpush1.bf16.msra.mxu0 0
        %1872 = vmatprep.subr.bf16.mxu0 0
        %1873 = vmatpush1.bf16.msra.mxu0 0
        %1874 = vmatprep.subr.bf16.mxu0 0
        %1875 = vmatpush1.bf16.msra.mxu0 0
        %1876 = vmatprep.subr.bf16.mxu0 0
        %1877 = vmatpush1.bf16.msra.mxu0 0
        %1878 = vmatprep.subr.bf16.mxu0 0
        %1879 = vmatpush1.bf16.msra.mxu0 0
        %1880 = vmatprep.subr.bf16.mxu0 0
        %1881 = vmatpush1.bf16.msra.mxu0 0
        %1882 = vmatprep.subr.bf16.mxu0 0
        %1883 = vmatpush1.bf16.msra.mxu0 0
        %1884 = vmatprep.subr.bf16.mxu0 0
        %1885 = vmatpush1.bf16.msra.mxu0 0
        %1886 = vmatprep.subr.bf16.mxu0 0
        %1887 = vmatpush1.bf16.msra.mxu0 0
        %1888 = vmatprep.subr.bf16.mxu0 0
        %1889 = vmatpush1.bf16.msra.mxu0 0
        %1890 = vmatprep.mubr.bf16.mxu0 0
        %1891 = vmatmul.mubr.bf16.gmra.mrb[0].mxu0 %v1853
        %v1892 = vpop.f32.mrb[0].mxu0
        %v1893 = vadd.f32 0.0, %v1892
        %v1894 = vpop.f32.mrb[0].mxu0
        %v1895 = vpop.f32.mrb[0].mxu0
        %v1896 = vpop.f32.mrb[0].mxu0
        %1897 = vdwg.mxu0
        %1898 = vst.msk [vmem:[#allocation2] sm:$0xff] %vm545, %v1844
        %1899 = vst.msk [vmem:[#allocation2 + $0x8] sm:$0xff] %vm545, %v1893
        %1901 = vrot.lane.b32.xlu0 %v1680, 120
        %v1902 = vpop.permute.xlu0 %1901
        %1903 = vrot.lane.b32.xlu0 %v1682, 120
        %v1904 = vpop.permute.xlu0 %1903
        %v1906 = vsel %vm545, %v1902, 0
        %v1909 = vsel %vm545, %v1904, 0
        %1911 = vmatprep.subr.bf16.mxu0 0
        %1912 = vmatpush1.bf16.xpose.msra.mxu0 %v1909
        %1913 = vmatprep.subr.bf16.mxu0 0
        %1914 = vmatpush1.bf16.xpose.msra.mxu0 0
        %1915 = vmatprep.subr.bf16.mxu0 0
        %1916 = vmatpush1.bf16.xpose.msra.mxu0 0
        %1917 = vmatprep.subr.bf16.mxu0 0
        %1918 = vmatpush1.bf16.xpose.msra.mxu0 0
        %1919 = vmatprep.subr.bf16.mxu0 0
        %1920 = vmatpush1.bf16.xpose.msra.mxu0 0
        %1921 = vmatprep.subr.bf16.mxu0 0
        %1922 = vmatpush1.bf16.xpose.msra.mxu0 0
        %1923 = vmatprep.subr.bf16.mxu0 0
        %1924 = vmatpush1.bf16.xpose.msra.mxu0 0
        %1925 = vmatprep.subr.bf16.mxu0 0
        %1926 = vmatpush1.bf16.xpose.msra.mxu0 0
        %1927 = vmatprep.subr.bf16.mxu0 0
        %1928 = vmatpush1.bf16.xpose.msra.mxu0 0
        %1929 = vmatprep.subr.bf16.mxu0 0
        %1930 = vmatpush1.bf16.xpose.msra.mxu0 0
        %1931 = vmatprep.subr.bf16.mxu0 0
        %1932 = vmatpush1.bf16.xpose.msra.mxu0 0
        %1933 = vmatprep.subr.bf16.mxu0 0
        %1934 = vmatpush1.bf16.xpose.msra.mxu0 0
        %1935 = vmatprep.subr.bf16.mxu0 0
        %1936 = vmatpush1.bf16.xpose.msra.mxu0 0
        %1937 = vmatprep.subr.bf16.mxu0 0
        %1938 = vmatpush1.bf16.xpose.msra.mxu0 0
        %1939 = vmatprep.subr.bf16.mxu0 0
        %1940 = vmatpush1.bf16.xpose.msra.mxu0 0
        %1941 = vmatprep.subr.bf16.mxu0 0
        %1942 = vmatpush1.bf16.xpose.msra.mxu0 0
        %1943 = vmatprep.mubr.bf16.mxu0 0
        %1944 = vmatmul.mubr.bf16.gmra.mrb[0].mxu0 %v1906
        %v1945 = vpop.f32.mrb[0].mxu0
        %v1946 = vadd.f32 0.0, %v1945
        %v1947 = vpop.f32.mrb[0].mxu0
        %v1948 = vpop.f32.mrb[0].mxu0
        %v1949 = vpop.f32.mrb[0].mxu0
        %1950 = vdwg.mxu0
        %1952 = vrot.lane.b32.xlu0 %v1681, 120
        %v1953 = vpop.permute.xlu0 %1952
        %1954 = vrot.lane.b32.xlu0 %v1683, 120
        %v1955 = vpop.permute.xlu0 %1954
        %v1957 = vsel %vm545, %v1953, 0
        %v1960 = vsel %vm545, %v1955, 0
        %1962 = vmatprep.subr.bf16.mxu0 0
        %1963 = vmatpush1.bf16.xpose.msra.mxu0 %v1960
        %1964 = vmatprep.subr.bf16.mxu0 0
        %1965 = vmatpush1.bf16.xpose.msra.mxu0 0
        %1966 = vmatprep.subr.bf16.mxu0 0
        %1967 = vmatpush1.bf16.xpose.msra.mxu0 0
        %1968 = vmatprep.subr.bf16.mxu0 0
        %1969 = vmatpush1.bf16.xpose.msra.mxu0 0
        %1970 = vmatprep.subr.bf16.mxu0 0
        %1971 = vmatpush1.bf16.xpose.msra.mxu0 0
        %1972 = vmatprep.subr.bf16.mxu0 0
        %1973 = vmatpush1.bf16.xpose.msra.mxu0 0
        %1974 = vmatprep.subr.bf16.mxu0 0
        %1975 = vmatpush1.bf16.xpose.msra.mxu0 0
        %1976 = vmatprep.subr.bf16.mxu0 0
        %1977 = vmatpush1.bf16.xpose.msra.mxu0 0
        %1978 = vmatprep.subr.bf16.mxu0 0
        %1979 = vmatpush1.bf16.xpose.msra.mxu0 0
        %1980 = vmatprep.subr.bf16.mxu0 0
        %1981 = vmatpush1.bf16.xpose.msra.mxu0 0
        %1982 = vmatprep.subr.bf16.mxu0 0
        %1983 = vmatpush1.bf16.xpose.msra.mxu0 0
        %1984 = vmatprep.subr.bf16.mxu0 0
        %1985 = vmatpush1.bf16.xpose.msra.mxu0 0
        %1986 = vmatprep.subr.bf16.mxu0 0
        %1987 = vmatpush1.bf16.xpose.msra.mxu0 0
        %1988 = vmatprep.subr.bf16.mxu0 0
        %1989 = vmatpush1.bf16.xpose.msra.mxu0 0
        %1990 = vmatprep.subr.bf16.mxu0 0
        %1991 = vmatpush1.bf16.xpose.msra.mxu0 0
        %1992 = vmatprep.subr.bf16.mxu0 0
        %1993 = vmatpush1.bf16.xpose.msra.mxu0 0
        %1994 = vmatprep.mubr.bf16.mxu0 0
        %1995 = vmatmul.mubr.bf16.gmra.mrb[0].mxu0 %v1957
        %v1996 = vpop.f32.mrb[0].mxu0
        %v1997 = vadd.f32 0.0, %v1996
        %v1998 = vpop.f32.mrb[0].mxu0
        %v1999 = vpop.f32.mrb[0].mxu0
        %v2000 = vpop.f32.mrb[0].mxu0
        %2001 = vdwg.mxu0
        %v2002 = vsel %vm545, %v1946, -inf
        %2003 = vmax.xlane.f32.xlu0 %v2002
        %v2004 = vpop.xlane.xlu0 %2003
        %v2005 = vsel %vm545, %v1997, -inf
        %2006 = vmax.xlane.f32.xlu0 %v2005
        %v2007 = vpop.xlane.xlu0 %2006
        %v2008 = vsub.f32 %v1946, %v2004
        %v2009 = vsub.f32 %v1997, %v2007
        %v2010 = vmul.f32 %v2008, 1.442695
        %v2011 = vpow.pop %v2010
        %v2012 = vmul.f32 %v2009, 1.442695
        %v2013 = vpow.pop %v2012
        %v2014 = vsel %vm545, %v2011, 0.0
        %2015 = vadd.xlane.f32.xlu0 %v2014
        %v2016 = vpop.xlane.xlu0 %2015
        %v2017 = vsel %vm545, %v2013, 0.0
        %2018 = vadd.xlane.f32.xlu0 %v2017
        %v2019 = vpop.xlane.xlu0 %2018
        %v2020 = vrcp.pop %v2016
        %v2021 = vrcp.pop %v2019
        %v2022 = vmul.f32 %v2011, %v2020
        %v2023 = vmul.f32 %v2013, %v2021
        %v2024 = vpack.c.bf16 %v2022, %v2022
        %v2025 = vpack.c.bf16 %v2023, %v2023
        %2026 = vrot.lane.b32.xlu0 %v1682, 88
        %v2027 = vpop.permute.xlu0 %2026
        %v2029 = vsel %vm545, %v2024, 0
        %v2032 = vsel %vm670, %v2027, 0
        %2034 = vmatprep.subr.bf16.mxu0 0
        %2035 = vmatpush1.bf16.msra.mxu0 %v2032
        %2036 = vmatprep.subr.bf16.mxu0 0
        %2037 = vmatpush1.bf16.msra.mxu0 0
        %2038 = vmatprep.subr.bf16.mxu0 0
        %2039 = vmatpush1.bf16.msra.mxu0 0
        %2040 = vmatprep.subr.bf16.mxu0 0
        %2041 = vmatpush1.bf16.msra.mxu0 0
        %2042 = vmatprep.subr.bf16.mxu0 0
        %2043 = vmatpush1.bf16.msra.mxu0 0
        %2044 = vmatprep.subr.bf16.mxu0 0
        %2045 = vmatpush1.bf16.msra.mxu0 0
        %2046 = vmatprep.subr.bf16.mxu0 0
        %2047 = vmatpush1.bf16.msra.mxu0 0
        %2048 = vmatprep.subr.bf16.mxu0 0
        %2049 = vmatpush1.bf16.msra.mxu0 0
        %2050 = vmatprep.subr.bf16.mxu0 0
        %2051 = vmatpush1.bf16.msra.mxu0 0
        %2052 = vmatprep.subr.bf16.mxu0 0
        %2053 = vmatpush1.bf16.msra.mxu0 0
        %2054 = vmatprep.subr.bf16.mxu0 0
        %2055 = vmatpush1.bf16.msra.mxu0 0
        %2056 = vmatprep.subr.bf16.mxu0 0
        %2057 = vmatpush1.bf16.msra.mxu0 0
        %2058 = vmatprep.subr.bf16.mxu0 0
        %2059 = vmatpush1.bf16.msra.mxu0 0
        %2060 = vmatprep.subr.bf16.mxu0 0
        %2061 = vmatpush1.bf16.msra.mxu0 0
        %2062 = vmatprep.subr.bf16.mxu0 0
        %2063 = vmatpush1.bf16.msra.mxu0 0
        %2064 = vmatprep.subr.bf16.mxu0 0
        %2065 = vmatpush1.bf16.msra.mxu0 0
        %2066 = vmatprep.mubr.bf16.mxu0 0
        %2067 = vmatmul.mubr.bf16.gmra.mrb[0].mxu0 %v2029
        %v2068 = vpop.f32.mrb[0].mxu0
        %v2069 = vadd.f32 0.0, %v2068
        %v2070 = vpop.f32.mrb[0].mxu0
        %v2071 = vpop.f32.mrb[0].mxu0
        %v2072 = vpop.f32.mrb[0].mxu0
        %2073 = vdwg.mxu0
        %2074 = vrot.lane.b32.xlu0 %v1683, 88
        %v2075 = vpop.permute.xlu0 %2074
        %v2077 = vsel %vm545, %v2025, 0
        %v2080 = vsel %vm670, %v2075, 0
        %2082 = vmatprep.subr.bf16.mxu0 0
        %2083 = vmatpush1.bf16.msra.mxu0 %v2080
        %2084 = vmatprep.subr.bf16.mxu0 0
        %2085 = vmatpush1.bf16.msra.mxu0 0
        %2086 = vmatprep.subr.bf16.mxu0 0
        %2087 = vmatpush1.bf16.msra.mxu0 0
        %2088 = vmatprep.subr.bf16.mxu0 0
        %2089 = vmatpush1.bf16.msra.mxu0 0
        %2090 = vmatprep.subr.bf16.mxu0 0
        %2091 = vmatpush1.bf16.msra.mxu0 0
        %2092 = vmatprep.subr.bf16.mxu0 0
        %2093 = vmatpush1.bf16.msra.mxu0 0
        %2094 = vmatprep.subr.bf16.mxu0 0
        %2095 = vmatpush1.bf16.msra.mxu0 0
        %2096 = vmatprep.subr.bf16.mxu0 0
        %2097 = vmatpush1.bf16.msra.mxu0 0
        %2098 = vmatprep.subr.bf16.mxu0 0
        %2099 = vmatpush1.bf16.msra.mxu0 0
        %2100 = vmatprep.subr.bf16.mxu0 0
        %2101 = vmatpush1.bf16.msra.mxu0 0
        %2102 = vmatprep.subr.bf16.mxu0 0
        %2103 = vmatpush1.bf16.msra.mxu0 0
        %2104 = vmatprep.subr.bf16.mxu0 0
        %2105 = vmatpush1.bf16.msra.mxu0 0
        %2106 = vmatprep.subr.bf16.mxu0 0
        %2107 = vmatpush1.bf16.msra.mxu0 0
        %2108 = vmatprep.subr.bf16.mxu0 0
        %2109 = vmatpush1.bf16.msra.mxu0 0
        %2110 = vmatprep.subr.bf16.mxu0 0
        %2111 = vmatpush1.bf16.msra.mxu0 0
        %2112 = vmatprep.subr.bf16.mxu0 0
        %2113 = vmatpush1.bf16.msra.mxu0 0
        %2114 = vmatprep.mubr.bf16.mxu0 0
        %2115 = vmatmul.mubr.bf16.gmra.mrb[0].mxu0 %v2077
        %v2116 = vpop.f32.mrb[0].mxu0
        %v2117 = vadd.f32 0.0, %v2116
        %v2118 = vpop.f32.mrb[0].mxu0
        %v2119 = vpop.f32.mrb[0].mxu0
        %v2120 = vpop.f32.mrb[0].mxu0
        %2121 = vdwg.mxu0
        %2124 = vrot.lane.b32.xlu0 %v2069, 8
        %v2125 = vpop.permute.xlu0 %2124
        %2126 = vrot.lane.b32.xlu0 %v2117, 8
        %v2127 = vpop.permute.xlu0 %2126
        %2130 = vst.msk [vmem:[#allocation2] sm:$0xff] %vm992, %v2125
        %2131 = vst.msk [vmem:[#allocation2 + $0x8] sm:$0xff] %vm992, %v2127
        %2132 = vrot.lane.b32.xlu0 %v1680, 112
        %v2133 = vpop.permute.xlu0 %2132
        %2134 = vrot.lane.b32.xlu0 %v1682, 112
        %v2135 = vpop.permute.xlu0 %2134
        %v2137 = vsel %vm545, %v2133, 0
        %v2140 = vsel %vm545, %v2135, 0
        %2142 = vmatprep.subr.bf16.mxu0 0
        %2143 = vmatpush1.bf16.xpose.msra.mxu0 %v2140
        %2144 = vmatprep.subr.bf16.mxu0 0
        %2145 = vmatpush1.bf16.xpose.msra.mxu0 0
        %2146 = vmatprep.subr.bf16.mxu0 0
        %2147 = vmatpush1.bf16.xpose.msra.mxu0 0
        %2148 = vmatprep.subr.bf16.mxu0 0
        %2149 = vmatpush1.bf16.xpose.msra.mxu0 0
        %2150 = vmatprep.subr.bf16.mxu0 0
        %2151 = vmatpush1.bf16.xpose.msra.mxu0 0
        %2152 = vmatprep.subr.bf16.mxu0 0
        %2153 = vmatpush1.bf16.xpose.msra.mxu0 0
        %2154 = vmatprep.subr.bf16.mxu0 0
        %2155 = vmatpush1.bf16.xpose.msra.mxu0 0
        %2156 = vmatprep.subr.bf16.mxu0 0
        %2157 = vmatpush1.bf16.xpose.msra.mxu0 0
        %2158 = vmatprep.subr.bf16.mxu0 0
        %2159 = vmatpush1.bf16.xpose.msra.mxu0 0
        %2160 = vmatprep.subr.bf16.mxu0 0
        %2161 = vmatpush1.bf16.xpose.msra.mxu0 0
        %2162 = vmatprep.subr.bf16.mxu0 0
        %2163 = vmatpush1.bf16.xpose.msra.mxu0 0
        %2164 = vmatprep.subr.bf16.mxu0 0
        %2165 = vmatpush1.bf16.xpose.msra.mxu0 0
        %2166 = vmatprep.subr.bf16.mxu0 0
        %2167 = vmatpush1.bf16.xpose.msra.mxu0 0
        %2168 = vmatprep.subr.bf16.mxu0 0
        %2169 = vmatpush1.bf16.xpose.msra.mxu0 0
        %2170 = vmatprep.subr.bf16.mxu0 0
        %2171 = vmatpush1.bf16.xpose.msra.mxu0 0
        %2172 = vmatprep.subr.bf16.mxu0 0
        %2173 = vmatpush1.bf16.xpose.msra.mxu0 0
        %2174 = vmatprep.mubr.bf16.mxu0 0
        %2175 = vmatmul.mubr.bf16.gmra.mrb[0].mxu0 %v2137
        %v2176 = vpop.f32.mrb[0].mxu0
        %v2177 = vadd.f32 0.0, %v2176
        %v2178 = vpop.f32.mrb[0].mxu0
        %v2179 = vpop.f32.mrb[0].mxu0
        %v2180 = vpop.f32.mrb[0].mxu0
        %2181 = vdwg.mxu0
        %2182 = vrot.lane.b32.xlu0 %v1681, 112
        %v2183 = vpop.permute.xlu0 %2182
        %2184 = vrot.lane.b32.xlu0 %v1683, 112
        %v2185 = vpop.permute.xlu0 %2184
        %v2187 = vsel %vm545, %v2183, 0
        %v2190 = vsel %vm545, %v2185, 0
        %2192 = vmatprep.subr.bf16.mxu0 0
        %2193 = vmatpush1.bf16.xpose.msra.mxu0 %v2190
        %2194 = vmatprep.subr.bf16.mxu0 0
        %2195 = vmatpush1.bf16.xpose.msra.mxu0 0
        %2196 = vmatprep.subr.bf16.mxu0 0
        %2197 = vmatpush1.bf16.xpose.msra.mxu0 0
        %2198 = vmatprep.subr.bf16.mxu0 0
        %2199 = vmatpush1.bf16.xpose.msra.mxu0 0
        %2200 = vmatprep.subr.bf16.mxu0 0
        %2201 = vmatpush1.bf16.xpose.msra.mxu0 0
        %2202 = vmatprep.subr.bf16.mxu0 0
        %2203 = vmatpush1.bf16.xpose.msra.mxu0 0
        %2204 = vmatprep.subr.bf16.mxu0 0
        %2205 = vmatpush1.bf16.xpose.msra.mxu0 0
        %2206 = vmatprep.subr.bf16.mxu0 0
        %2207 = vmatpush1.bf16.xpose.msra.mxu0 0
        %2208 = vmatprep.subr.bf16.mxu0 0
        %2209 = vmatpush1.bf16.xpose.msra.mxu0 0
        %2210 = vmatprep.subr.bf16.mxu0 0
        %2211 = vmatpush1.bf16.xpose.msra.mxu0 0
        %2212 = vmatprep.subr.bf16.mxu0 0
        %2213 = vmatpush1.bf16.xpose.msra.mxu0 0
        %2214 = vmatprep.subr.bf16.mxu0 0
        %2215 = vmatpush1.bf16.xpose.msra.mxu0 0
        %2216 = vmatprep.subr.bf16.mxu0 0
        %2217 = vmatpush1.bf16.xpose.msra.mxu0 0
        %2218 = vmatprep.subr.bf16.mxu0 0
        %2219 = vmatpush1.bf16.xpose.msra.mxu0 0
        %2220 = vmatprep.subr.bf16.mxu0 0
        %2221 = vmatpush1.bf16.xpose.msra.mxu0 0
        %2222 = vmatprep.subr.bf16.mxu0 0
        %2223 = vmatpush1.bf16.xpose.msra.mxu0 0
        %2224 = vmatprep.mubr.bf16.mxu0 0
        %2225 = vmatmul.mubr.bf16.gmra.mrb[0].mxu0 %v2187
        %v2226 = vpop.f32.mrb[0].mxu0
        %v2227 = vadd.f32 0.0, %v2226
        %v2228 = vpop.f32.mrb[0].mxu0
        %v2229 = vpop.f32.mrb[0].mxu0
        %v2230 = vpop.f32.mrb[0].mxu0
        %2231 = vdwg.mxu0
        %v2232 = vsel %vm545, %v2177, -inf
        %2233 = vmax.xlane.f32.xlu0 %v2232
        %v2234 = vpop.xlane.xlu0 %2233
        %v2235 = vsel %vm545, %v2227, -inf
        %2236 = vmax.xlane.f32.xlu0 %v2235
        %v2237 = vpop.xlane.xlu0 %2236
        %v2238 = vsub.f32 %v2177, %v2234
        %v2239 = vsub.f32 %v2227, %v2237
        %v2240 = vmul.f32 %v2238, 1.442695
        %v2241 = vpow.pop %v2240
        %v2242 = vmul.f32 %v2239, 1.442695
        %v2243 = vpow.pop %v2242
        %v2244 = vsel %vm545, %v2241, 0.0
        %2245 = vadd.xlane.f32.xlu0 %v2244
        %v2246 = vpop.xlane.xlu0 %2245
        %v2247 = vsel %vm545, %v2243, 0.0
        %2248 = vadd.xlane.f32.xlu0 %v2247
        %v2249 = vpop.xlane.xlu0 %2248
        %v2250 = vrcp.pop %v2246
        %v2251 = vrcp.pop %v2249
        %v2252 = vmul.f32 %v2241, %v2250
        %v2253 = vmul.f32 %v2243, %v2251
        %v2254 = vpack.c.bf16 %v2252, %v2252
        %v2255 = vpack.c.bf16 %v2253, %v2253
        %2256 = vrot.lane.b32.xlu0 %v1682, 80
        %v2257 = vpop.permute.xlu0 %2256
        %v2259 = vsel %vm545, %v2254, 0
        %v2262 = vsel %vm670, %v2257, 0
        %2264 = vmatprep.subr.bf16.mxu0 0
        %2265 = vmatpush1.bf16.msra.mxu0 %v2262
        %2266 = vmatprep.subr.bf16.mxu0 0
        %2267 = vmatpush1.bf16.msra.mxu0 0
        %2268 = vmatprep.subr.bf16.mxu0 0
        %2269 = vmatpush1.bf16.msra.mxu0 0
        %2270 = vmatprep.subr.bf16.mxu0 0
        %2271 = vmatpush1.bf16.msra.mxu0 0
        %2272 = vmatprep.subr.bf16.mxu0 0
        %2273 = vmatpush1.bf16.msra.mxu0 0
        %2274 = vmatprep.subr.bf16.mxu0 0
        %2275 = vmatpush1.bf16.msra.mxu0 0
        %2276 = vmatprep.subr.bf16.mxu0 0
        %2277 = vmatpush1.bf16.msra.mxu0 0
        %2278 = vmatprep.subr.bf16.mxu0 0
        %2279 = vmatpush1.bf16.msra.mxu0 0
        %2280 = vmatprep.subr.bf16.mxu0 0
        %2281 = vmatpush1.bf16.msra.mxu0 0
        %2282 = vmatprep.subr.bf16.mxu0 0
        %2283 = vmatpush1.bf16.msra.mxu0 0
        %2284 = vmatprep.subr.bf16.mxu0 0
        %2285 = vmatpush1.bf16.msra.mxu0 0
        %2286 = vmatprep.subr.bf16.mxu0 0
        %2287 = vmatpush1.bf16.msra.mxu0 0
        %2288 = vmatprep.subr.bf16.mxu0 0
        %2289 = vmatpush1.bf16.msra.mxu0 0
        %2290 = vmatprep.subr.bf16.mxu0 0
        %2291 = vmatpush1.bf16.msra.mxu0 0
        %2292 = vmatprep.subr.bf16.mxu0 0
        %2293 = vmatpush1.bf16.msra.mxu0 0
        %2294 = vmatprep.subr.bf16.mxu0 0
        %2295 = vmatpush1.bf16.msra.mxu0 0
        %2296 = vmatprep.mubr.bf16.mxu0 0
        %2297 = vmatmul.mubr.bf16.gmra.mrb[0].mxu0 %v2259
        %v2298 = vpop.f32.mrb[0].mxu0
        %v2299 = vadd.f32 0.0, %v2298
        %v2300 = vpop.f32.mrb[0].mxu0
        %v2301 = vpop.f32.mrb[0].mxu0
        %v2302 = vpop.f32.mrb[0].mxu0
        %2303 = vdwg.mxu0
        %2304 = vrot.lane.b32.xlu0 %v1683, 80
        %v2305 = vpop.permute.xlu0 %2304
        %v2307 = vsel %vm545, %v2255, 0
        %v2310 = vsel %vm670, %v2305, 0
        %2312 = vmatprep.subr.bf16.mxu0 0
        %2313 = vmatpush1.bf16.msra.mxu0 %v2310
        %2314 = vmatprep.subr.bf16.mxu0 0
        %2315 = vmatpush1.bf16.msra.mxu0 0
        %2316 = vmatprep.subr.bf16.mxu0 0
        %2317 = vmatpush1.bf16.msra.mxu0 0
        %2318 = vmatprep.subr.bf16.mxu0 0
        %2319 = vmatpush1.bf16.msra.mxu0 0
        %2320 = vmatprep.subr.bf16.mxu0 0
        %2321 = vmatpush1.bf16.msra.mxu0 0
        %2322 = vmatprep.subr.bf16.mxu0 0
        %2323 = vmatpush1.bf16.msra.mxu0 0
        %2324 = vmatprep.subr.bf16.mxu0 0
        %2325 = vmatpush1.bf16.msra.mxu0 0
        %2326 = vmatprep.subr.bf16.mxu0 0
        %2327 = vmatpush1.bf16.msra.mxu0 0
        %2328 = vmatprep.subr.bf16.mxu0 0
        %2329 = vmatpush1.bf16.msra.mxu0 0
        %2330 = vmatprep.subr.bf16.mxu0 0
        %2331 = vmatpush1.bf16.msra.mxu0 0
        %2332 = vmatprep.subr.bf16.mxu0 0
        %2333 = vmatpush1.bf16.msra.mxu0 0
        %2334 = vmatprep.subr.bf16.mxu0 0
        %2335 = vmatpush1.bf16.msra.mxu0 0
        %2336 = vmatprep.subr.bf16.mxu0 0
        %2337 = vmatpush1.bf16.msra.mxu0 0
        %2338 = vmatprep.subr.bf16.mxu0 0
        %2339 = vmatpush1.bf16.msra.mxu0 0
        %2340 = vmatprep.subr.bf16.mxu0 0
        %2341 = vmatpush1.bf16.msra.mxu0 0
        %2342 = vmatprep.subr.bf16.mxu0 0
        %2343 = vmatpush1.bf16.msra.mxu0 0
        %2344 = vmatprep.mubr.bf16.mxu0 0
        %2345 = vmatmul.mubr.bf16.gmra.mrb[0].mxu0 %v2307
        %v2346 = vpop.f32.mrb[0].mxu0
        %v2347 = vadd.f32 0.0, %v2346
        %v2348 = vpop.f32.mrb[0].mxu0
        %v2349 = vpop.f32.mrb[0].mxu0
        %v2350 = vpop.f32.mrb[0].mxu0
        %2351 = vdwg.mxu0
        %2354 = vrot.lane.b32.xlu0 %v2299, 16
        %v2355 = vpop.permute.xlu0 %2354
        %2356 = vrot.lane.b32.xlu0 %v2347, 16
        %v2357 = vpop.permute.xlu0 %2356
        %2360 = vst.msk [vmem:[#allocation2] sm:$0xff] %vm1223, %v2355
        %2361 = vst.msk [vmem:[#allocation2 + $0x8] sm:$0xff] %vm1223, %v2357
        %2362 = vrot.lane.b32.xlu0 %v1680, 104
        %v2363 = vpop.permute.xlu0 %2362
        %2364 = vrot.lane.b32.xlu0 %v1682, 104
        %v2365 = vpop.permute.xlu0 %2364
        %v2367 = vsel %vm545, %v2363, 0
        %v2370 = vsel %vm545, %v2365, 0
        %2372 = vmatprep.subr.bf16.mxu0 0
        %2373 = vmatpush1.bf16.xpose.msra.mxu0 %v2370
        %2374 = vmatprep.subr.bf16.mxu0 0
        %2375 = vmatpush1.bf16.xpose.msra.mxu0 0
        %2376 = vmatprep.subr.bf16.mxu0 0
        %2377 = vmatpush1.bf16.xpose.msra.mxu0 0
        %2378 = vmatprep.subr.bf16.mxu0 0
        %2379 = vmatpush1.bf16.xpose.msra.mxu0 0
        %2380 = vmatprep.subr.bf16.mxu0 0
        %2381 = vmatpush1.bf16.xpose.msra.mxu0 0
        %2382 = vmatprep.subr.bf16.mxu0 0
        %2383 = vmatpush1.bf16.xpose.msra.mxu0 0
        %2384 = vmatprep.subr.bf16.mxu0 0
        %2385 = vmatpush1.bf16.xpose.msra.mxu0 0
        %2386 = vmatprep.subr.bf16.mxu0 0
        %2387 = vmatpush1.bf16.xpose.msra.mxu0 0
        %2388 = vmatprep.subr.bf16.mxu0 0
        %2389 = vmatpush1.bf16.xpose.msra.mxu0 0
        %2390 = vmatprep.subr.bf16.mxu0 0
        %2391 = vmatpush1.bf16.xpose.msra.mxu0 0
        %2392 = vmatprep.subr.bf16.mxu0 0
        %2393 = vmatpush1.bf16.xpose.msra.mxu0 0
        %2394 = vmatprep.subr.bf16.mxu0 0
        %2395 = vmatpush1.bf16.xpose.msra.mxu0 0
        %2396 = vmatprep.subr.bf16.mxu0 0
        %2397 = vmatpush1.bf16.xpose.msra.mxu0 0
        %2398 = vmatprep.subr.bf16.mxu0 0
        %2399 = vmatpush1.bf16.xpose.msra.mxu0 0
        %2400 = vmatprep.subr.bf16.mxu0 0
        %2401 = vmatpush1.bf16.xpose.msra.mxu0 0
        %2402 = vmatprep.subr.bf16.mxu0 0
        %2403 = vmatpush1.bf16.xpose.msra.mxu0 0
        %2404 = vmatprep.mubr.bf16.mxu0 0
        %2405 = vmatmul.mubr.bf16.gmra.mrb[0].mxu0 %v2367
        %v2406 = vpop.f32.mrb[0].mxu0
        %v2407 = vadd.f32 0.0, %v2406
        %v2408 = vpop.f32.mrb[0].mxu0
        %v2409 = vpop.f32.mrb[0].mxu0
        %v2410 = vpop.f32.mrb[0].mxu0
        %2411 = vdwg.mxu0
        %2412 = vrot.lane.b32.xlu0 %v1681, 104
        %v2413 = vpop.permute.xlu0 %2412
        %2414 = vrot.lane.b32.xlu0 %v1683, 104
        %v2415 = vpop.permute.xlu0 %2414
        %v2417 = vsel %vm545, %v2413, 0
        %v2420 = vsel %vm545, %v2415, 0
        %2422 = vmatprep.subr.bf16.mxu0 0
        %2423 = vmatpush1.bf16.xpose.msra.mxu0 %v2420
        %2424 = vmatprep.subr.bf16.mxu0 0
        %2425 = vmatpush1.bf16.xpose.msra.mxu0 0
        %2426 = vmatprep.subr.bf16.mxu0 0
        %2427 = vmatpush1.bf16.xpose.msra.mxu0 0
        %2428 = vmatprep.subr.bf16.mxu0 0
        %2429 = vmatpush1.bf16.xpose.msra.mxu0 0
        %2430 = vmatprep.subr.bf16.mxu0 0
        %2431 = vmatpush1.bf16.xpose.msra.mxu0 0
        %2432 = vmatprep.subr.bf16.mxu0 0
        %2433 = vmatpush1.bf16.xpose.msra.mxu0 0
        %2434 = vmatprep.subr.bf16.mxu0 0
        %2435 = vmatpush1.bf16.xpose.msra.mxu0 0
        %2436 = vmatprep.subr.bf16.mxu0 0
        %2437 = vmatpush1.bf16.xpose.msra.mxu0 0
        %2438 = vmatprep.subr.bf16.mxu0 0
        %2439 = vmatpush1.bf16.xpose.msra.mxu0 0
        %2440 = vmatprep.subr.bf16.mxu0 0
        %2441 = vmatpush1.bf16.xpose.msra.mxu0 0
        %2442 = vmatprep.subr.bf16.mxu0 0
        %2443 = vmatpush1.bf16.xpose.msra.mxu0 0
        %2444 = vmatprep.subr.bf16.mxu0 0
        %2445 = vmatpush1.bf16.xpose.msra.mxu0 0
        %2446 = vmatprep.subr.bf16.mxu0 0
        %2447 = vmatpush1.bf16.xpose.msra.mxu0 0
        %2448 = vmatprep.subr.bf16.mxu0 0
        %2449 = vmatpush1.bf16.xpose.msra.mxu0 0
        %2450 = vmatprep.subr.bf16.mxu0 0
        %2451 = vmatpush1.bf16.xpose.msra.mxu0 0
        %2452 = vmatprep.subr.bf16.mxu0 0
        %2453 = vmatpush1.bf16.xpose.msra.mxu0 0
        %2454 = vmatprep.mubr.bf16.mxu0 0
        %2455 = vmatmul.mubr.bf16.gmra.mrb[0].mxu0 %v2417
        %v2456 = vpop.f32.mrb[0].mxu0
        %v2457 = vadd.f32 0.0, %v2456
        %v2458 = vpop.f32.mrb[0].mxu0
        %v2459 = vpop.f32.mrb[0].mxu0
        %v2460 = vpop.f32.mrb[0].mxu0
        %2461 = vdwg.mxu0
        %v2462 = vsel %vm545, %v2407, -inf
        %2463 = vmax.xlane.f32.xlu0 %v2462
        %v2464 = vpop.xlane.xlu0 %2463
        %v2465 = vsel %vm545, %v2457, -inf
        %2466 = vmax.xlane.f32.xlu0 %v2465
        %v2467 = vpop.xlane.xlu0 %2466
        %v2468 = vsub.f32 %v2407, %v2464
        %v2469 = vsub.f32 %v2457, %v2467
        %v2470 = vmul.f32 %v2468, 1.442695
        %v2471 = vpow.pop %v2470
        %v2472 = vmul.f32 %v2469, 1.442695
        %v2473 = vpow.pop %v2472
        %v2474 = vsel %vm545, %v2471, 0.0
        %2475 = vadd.xlane.f32.xlu0 %v2474
        %v2476 = vpop.xlane.xlu0 %2475
        %v2477 = vsel %vm545, %v2473, 0.0
        %2478 = vadd.xlane.f32.xlu0 %v2477
        %v2479 = vpop.xlane.xlu0 %2478
        %v2480 = vrcp.pop %v2476
        %v2481 = vrcp.pop %v2479
        %v2482 = vmul.f32 %v2471, %v2480
        %v2483 = vmul.f32 %v2473, %v2481
        %v2484 = vpack.c.bf16 %v2482, %v2482
        %v2485 = vpack.c.bf16 %v2483, %v2483
        %2486 = vrot.lane.b32.xlu0 %v1682, 72
        %v2487 = vpop.permute.xlu0 %2486
        %v2489 = vsel %vm545, %v2484, 0
        %v2492 = vsel %vm670, %v2487, 0
        %2494 = vmatprep.subr.bf16.mxu0 0
        %2495 = vmatpush1.bf16.msra.mxu0 %v2492
        %2496 = vmatprep.subr.bf16.mxu0 0
        %2497 = vmatpush1.bf16.msra.mxu0 0
        %2498 = vmatprep.subr.bf16.mxu0 0
        %2499 = vmatpush1.bf16.msra.mxu0 0
        %2500 = vmatprep.subr.bf16.mxu0 0
        %2501 = vmatpush1.bf16.msra.mxu0 0
        %2502 = vmatprep.subr.bf16.mxu0 0
        %2503 = vmatpush1.bf16.msra.mxu0 0
        %2504 = vmatprep.subr.bf16.mxu0 0
        %2505 = vmatpush1.bf16.msra.mxu0 0
        %2506 = vmatprep.subr.bf16.mxu0 0
        %2507 = vmatpush1.bf16.msra.mxu0 0
        %2508 = vmatprep.subr.bf16.mxu0 0
        %2509 = vmatpush1.bf16.msra.mxu0 0
        %2510 = vmatprep.subr.bf16.mxu0 0
        %2511 = vmatpush1.bf16.msra.mxu0 0
        %2512 = vmatprep.subr.bf16.mxu0 0
        %2513 = vmatpush1.bf16.msra.mxu0 0
        %2514 = vmatprep.subr.bf16.mxu0 0
        %2515 = vmatpush1.bf16.msra.mxu0 0
        %2516 = vmatprep.subr.bf16.mxu0 0
        %2517 = vmatpush1.bf16.msra.mxu0 0
        %2518 = vmatprep.subr.bf16.mxu0 0
        %2519 = vmatpush1.bf16.msra.mxu0 0
        %2520 = vmatprep.subr.bf16.mxu0 0
        %2521 = vmatpush1.bf16.msra.mxu0 0
        %2522 = vmatprep.subr.bf16.mxu0 0
        %2523 = vmatpush1.bf16.msra.mxu0 0
        %2524 = vmatprep.subr.bf16.mxu0 0
        %2525 = vmatpush1.bf16.msra.mxu0 0
        %2526 = vmatprep.mubr.bf16.mxu0 0
        %2527 = vmatmul.mubr.bf16.gmra.mrb[0].mxu0 %v2489
        %v2528 = vpop.f32.mrb[0].mxu0
        %v2529 = vadd.f32 0.0, %v2528
        %v2530 = vpop.f32.mrb[0].mxu0
        %v2531 = vpop.f32.mrb[0].mxu0
        %v2532 = vpop.f32.mrb[0].mxu0
        %2533 = vdwg.mxu0
        %2534 = vrot.lane.b32.xlu0 %v1683, 72
        %v2535 = vpop.permute.xlu0 %2534
        %v2537 = vsel %vm545, %v2485, 0
        %v2540 = vsel %vm670, %v2535, 0
        %2542 = vmatprep.subr.bf16.mxu0 0
        %2543 = vmatpush1.bf16.msra.mxu0 %v2540
        %2544 = vmatprep.subr.bf16.mxu0 0
        %2545 = vmatpush1.bf16.msra.mxu0 0
        %2546 = vmatprep.subr.bf16.mxu0 0
        %2547 = vmatpush1.bf16.msra.mxu0 0
        %2548 = vmatprep.subr.bf16.mxu0 0
        %2549 = vmatpush1.bf16.msra.mxu0 0
        %2550 = vmatprep.subr.bf16.mxu0 0
        %2551 = vmatpush1.bf16.msra.mxu0 0
        %2552 = vmatprep.subr.bf16.mxu0 0
        %2553 = vmatpush1.bf16.msra.mxu0 0
        %2554 = vmatprep.subr.bf16.mxu0 0
        %2555 = vmatpush1.bf16.msra.mxu0 0
        %2556 = vmatprep.subr.bf16.mxu0 0
        %2557 = vmatpush1.bf16.msra.mxu0 0
        %2558 = vmatprep.subr.bf16.mxu0 0
        %2559 = vmatpush1.bf16.msra.mxu0 0
        %2560 = vmatprep.subr.bf16.mxu0 0
        %2561 = vmatpush1.bf16.msra.mxu0 0
        %2562 = vmatprep.subr.bf16.mxu0 0
        %2563 = vmatpush1.bf16.msra.mxu0 0
        %2564 = vmatprep.subr.bf16.mxu0 0
        %2565 = vmatpush1.bf16.msra.mxu0 0
        %2566 = vmatprep.subr.bf16.mxu0 0
        %2567 = vmatpush1.bf16.msra.mxu0 0
        %2568 = vmatprep.subr.bf16.mxu0 0
        %2569 = vmatpush1.bf16.msra.mxu0 0
        %2570 = vmatprep.subr.bf16.mxu0 0
        %2571 = vmatpush1.bf16.msra.mxu0 0
        %2572 = vmatprep.subr.bf16.mxu0 0
        %2573 = vmatpush1.bf16.msra.mxu0 0
        %2574 = vmatprep.mubr.bf16.mxu0 0
        %2575 = vmatmul.mubr.bf16.gmra.mrb[0].mxu0 %v2537
        %v2576 = vpop.f32.mrb[0].mxu0
        %v2577 = vadd.f32 0.0, %v2576
        %v2578 = vpop.f32.mrb[0].mxu0
        %v2579 = vpop.f32.mrb[0].mxu0
        %v2580 = vpop.f32.mrb[0].mxu0
        %2581 = vdwg.mxu0
        %2584 = vrot.lane.b32.xlu0 %v2529, 24
        %v2585 = vpop.permute.xlu0 %2584
        %2586 = vrot.lane.b32.xlu0 %v2577, 24
        %v2587 = vpop.permute.xlu0 %2586
        %2590 = vst.msk [vmem:[#allocation2] sm:$0xff] %vm1454, %v2585
        %2591 = vst.msk [vmem:[#allocation2 + $0x8] sm:$0xff] %vm1454, %v2587
        %v2592 = vld [vmem:[#allocation2] sm:$0xff]
        %v2593 = vld [vmem:[#allocation2 + $0x8] sm:$0xff]
        %v2594 = vpack.c.bf16 %v2593, %v2592
        %v2595 = vlaneseq
        %v2596 = vshrl.u32 %v2595, 7
        %v2597 = vsub.s32 1, %v2596
        %v2598 = vrot.slane %v403, %v2597
        %v2603 = vunpack.c.l.b16 %v416
        %v2604 = vunpack.c.l.b16 %v417
        %v2605 = vunpack.c.l.b16 %v418
        %v2606 = vunpack.c.l.b16 %v419
        %v2607 = vpack.c.b16 %v2604, %v2603
        %v2608 = vpack.c.b16 %v2606, %v2605
        %v2612 = vsel %vm436, %v2594, 0
        %2614 = vmatprep.subr.bf16.mxu0 0
        %2615 = vmatpush1.bf16.msra.mxu0 %v2607
        %2616 = vmatprep.subr.bf16.mxu0 0
        %2617 = vmatpush1.bf16.msra.mxu0 %v2608
        %2618 = vmatprep.subr.bf16.mxu0 0
        %2619 = vmatpush1.bf16.msra.mxu0 0
        %2620 = vmatprep.subr.bf16.mxu0 0
        %2621 = vmatpush1.bf16.msra.mxu0 0
        %2622 = vmatprep.subr.bf16.mxu0 0
        %2623 = vmatpush1.bf16.msra.mxu0 0
        %2624 = vmatprep.subr.bf16.mxu0 0
        %2625 = vmatpush1.bf16.msra.mxu0 0
        %2626 = vmatprep.subr.bf16.mxu0 0
        %2627 = vmatpush1.bf16.msra.mxu0 0
        %2628 = vmatprep.subr.bf16.mxu0 0
        %2629 = vmatpush1.bf16.msra.mxu0 0
        %2630 = vmatprep.subr.bf16.mxu0 0
        %2631 = vmatpush1.bf16.msra.mxu0 0
        %2632 = vmatprep.subr.bf16.mxu0 0
        %2633 = vmatpush1.bf16.msra.mxu0 0
        %2634 = vmatprep.subr.bf16.mxu0 0
        %2635 = vmatpush1.bf16.msra.mxu0 0
        %2636 = vmatprep.subr.bf16.mxu0 0
        %2637 = vmatpush1.bf16.msra.mxu0 0
        %2638 = vmatprep.subr.bf16.mxu0 0
        %2639 = vmatpush1.bf16.msra.mxu0 0
        %2640 = vmatprep.subr.bf16.mxu0 0
        %2641 = vmatpush1.bf16.msra.mxu0 0
        %2642 = vmatprep.subr.bf16.mxu0 0
        %2643 = vmatpush1.bf16.msra.mxu0 0
        %2644 = vmatprep.subr.bf16.mxu0 0
        %2645 = vmatpush1.bf16.msra.mxu0 0
        %2646 = vmatprep.mubr.bf16.mxu0 0
        %2647 = vmatmul.mubr.bf16.gmra.mrb[0].mxu0 %v2612
        %v2648 = vpop.f32.mrb[0].mxu0
        %v2649 = vadd.f32 %v2598, %v2648
        %v2650 = vpop.f32.mrb[0].mxu0
        %v2651 = vpop.f32.mrb[0].mxu0
        %v2652 = vadd.f32 %v2598, %v2651
        %v2653 = vpop.f32.mrb[0].mxu0
        %2654 = vdwg.mxu0
        %v2655 = vadd.f32 %v1520, %v2649
        %v2656 = vadd.f32 %v1521, %v2652
        %v2657 = vsel %vm436, %v2655, 0.0
        %2658 = vadd.xlane.f32.xlu0 %v2657
        %v2659 = vpop.xlane.xlu0 %2658
        %v2660 = vsel %vm436, %v2656, 0.0
        %2661 = vadd.xlane.f32.xlu0 %v2660
        %v2662 = vpop.xlane.xlu0 %2661
        %v2663 = vmul.f32 %v2655, %v2655
        %v2664 = vmul.f32 %v2656, %v2656
        %v2665 = vsel %vm436, %v2663, 0.0
        %2666 = vadd.xlane.f32.xlu0 %v2665
        %v2667 = vpop.xlane.xlu0 %2666
        %v2668 = vsel %vm436, %v2664, 0.0
        %2669 = vadd.xlane.f32.xlu0 %v2668
        %v2670 = vpop.xlane.xlu0 %2669
        %v2671 = vmul.f32 %v2659, 0.03125
        %v2672 = vmul.f32 %v2662, 0.03125
        %v2673 = vmul.f32 %v2667, 0.03125
        %v2674 = vmul.f32 %v2670, 0.03125
        %v2675 = vmul.f32 %v2671, %v2671
        %v2676 = vmul.f32 %v2672, %v2672
        %v2677 = vsub.f32 %v2673, %v2675
        %v2678 = vsub.f32 %v2674, %v2676
        %v2679 = vsub.f32 %v2655, %v2671
        %v2680 = vsub.f32 %v2656, %v2672
        %v2681 = vadd.f32 %v2677, 1e-05
        %v2682 = vadd.f32 %v2678, 1e-05
        %v2683 = vrsqrt.pop %v2681
        %v2684 = vrsqrt.pop %v2682
        %v2685 = vmul.f32 %v2679, %v2683
        %v2686 = vmul.f32 %v2680, %v2684
        %v2687 = vlaneseq
        %v2688 = vshrl.u32 %v2687, 7
        %v2689 = vsub.s32 4, %v2688
        %v2690 = vrot.slane %v402, %v2689
        %v2691 = vmul.f32 %v2685, %v2690
        %v2692 = vmul.f32 %v2686, %v2690
        %v2693 = vlaneseq
        %v2694 = vshrl.u32 %v2693, 7
        %v2695 = vsub.s32 5, %v2694
        %v2696 = vrot.slane %v402, %v2695
        %v2697 = vadd.f32 %v2691, %v2696
        %v2698 = vadd.f32 %v2692, %v2696
        %v2699 = vpack.c.bf16 %v2698, %v2697
        %v2700 = vlaneseq
        %v2701 = vshrl.u32 %v2700, 7
        %v2702 = vsub.s32 2, %v2701
        %v2703 = vrot.slane %v403, %v2702
        %v2708 = vunpack.c.l.b16 %v420
        %v2709 = vunpack.c.l.b16 %v421
        %v2710 = vunpack.c.l.b16 %v422
        %v2711 = vunpack.c.l.b16 %v423
        %v2712 = vpack.c.b16 %v2709, %v2708
        %v2713 = vpack.c.b16 %v2711, %v2710
        %v2717 = vsel %vm436, %v2699, 0
        %2719 = vmatprep.subr.bf16.mxu0 0
        %2720 = vmatpush1.bf16.msra.mxu0 %v2712
        %2721 = vmatprep.subr.bf16.mxu0 0
        %2722 = vmatpush1.bf16.msra.mxu0 %v2713
        %2723 = vmatprep.subr.bf16.mxu0 0
        %2724 = vmatpush1.bf16.msra.mxu0 0
        %2725 = vmatprep.subr.bf16.mxu0 0
        %2726 = vmatpush1.bf16.msra.mxu0 0
        %2727 = vmatprep.subr.bf16.mxu0 0
        %2728 = vmatpush1.bf16.msra.mxu0 0
        %2729 = vmatprep.subr.bf16.mxu0 0
        %2730 = vmatpush1.bf16.msra.mxu0 0
        %2731 = vmatprep.subr.bf16.mxu0 0
        %2732 = vmatpush1.bf16.msra.mxu0 0
        %2733 = vmatprep.subr.bf16.mxu0 0
        %2734 = vmatpush1.bf16.msra.mxu0 0
        %2735 = vmatprep.subr.bf16.mxu0 0
        %2736 = vmatpush1.bf16.msra.mxu0 0
        %2737 = vmatprep.subr.bf16.mxu0 0
        %2738 = vmatpush1.bf16.msra.mxu0 0
        %2739 = vmatprep.subr.bf16.mxu0 0
        %2740 = vmatpush1.bf16.msra.mxu0 0
        %2741 = vmatprep.subr.bf16.mxu0 0
        %2742 = vmatpush1.bf16.msra.mxu0 0
        %2743 = vmatprep.subr.bf16.mxu0 0
        %2744 = vmatpush1.bf16.msra.mxu0 0
        %2745 = vmatprep.subr.bf16.mxu0 0
        %2746 = vmatpush1.bf16.msra.mxu0 0
        %2747 = vmatprep.subr.bf16.mxu0 0
        %2748 = vmatpush1.bf16.msra.mxu0 0
        %2749 = vmatprep.subr.bf16.mxu0 0
        %2750 = vmatpush1.bf16.msra.mxu0 0
        %2751 = vmatprep.mubr.bf16.mxu0 0
        %2752 = vmatmul.mubr.bf16.gmra.mrb[0].mxu0 %v2717
        %v2753 = vpop.f32.mrb[0].mxu0
        %v2754 = vadd.f32 %v2703, %v2753
        %v2755 = vpop.f32.mrb[0].mxu0
        %v2756 = vpop.f32.mrb[0].mxu0
        %v2757 = vadd.f32 %v2703, %v2756
        %v2758 = vpop.f32.mrb[0].mxu0
        %2759 = vdwg.mxu0
        %v2760 = vmul.f32 %v2754, 0.5
        %v2761 = vmul.f32 %v2757, 0.5
        %v2762 = vmul.f32 %v2754, 0.044715
        %v2763 = vmul.f32 %v2757, 0.044715
        %v2764 = vmul.f32 %v2762, %v2754
        %v2765 = vmul.f32 %v2763, %v2757
        %v2766 = vmul.f32 %v2764, %v2754
        %v2767 = vmul.f32 %v2765, %v2757
        %v2768 = vadd.f32 %v2754, %v2766
        %v2769 = vadd.f32 %v2757, %v2767
        %v2770 = vmul.f32 %v2768, 0.7978846
        %v2771 = vmul.f32 %v2769, 0.7978846
        %v2772 = vtanh.pop %v2770
        %v2773 = vtanh.pop %v2771
        %v2774 = vadd.f32 %v2772, 1.0
        %v2775 = vadd.f32 %v2773, 1.0
        %v2776 = vmul.f32 %v2760, %v2774
        %v2777 = vmul.f32 %v2761, %v2775
        %v2778 = vpack.c.bf16 %v2777, %v2776
        %v2787 = vunpack.c.l.b16 %v424
        %v2788 = vunpack.c.l.b16 %v425
        %v2789 = vunpack.c.l.b16 %v426
        %v2790 = vunpack.c.l.b16 %v427
        %v2791 = vunpack.c.l.b16 %v428
        %v2792 = vunpack.c.l.b16 %v429
        %v2793 = vunpack.c.l.b16 %v430
        %v2794 = vunpack.c.l.b16 %v431
        %v2795 = vpack.c.b16 %v2788, %v2787
        %v2796 = vpack.c.b16 %v2790, %v2789
        %v2797 = vpack.c.b16 %v2792, %v2791
        %v2798 = vpack.c.b16 %v2794, %v2793
        %vm2803 = vcmask 523264
        %v2805 = vsel %vm2803, %v2778, 0
        %2807 = vmatprep.subr.bf16.mxu0 0
        %2808 = vmatpush1.bf16.msra.mxu0 %v2795
        %2809 = vmatprep.subr.bf16.mxu0 0
        %2810 = vmatpush1.bf16.msra.mxu0 %v2796
        %2811 = vmatprep.subr.bf16.mxu0 0
        %2812 = vmatpush1.bf16.msra.mxu0 %v2797
        %2813 = vmatprep.subr.bf16.mxu0 0
        %2814 = vmatpush1.bf16.msra.mxu0 %v2798
        %2815 = vmatprep.subr.bf16.mxu0 0
        %2816 = vmatpush1.bf16.msra.mxu0 0
        %2817 = vmatprep.subr.bf16.mxu0 0
        %2818 = vmatpush1.bf16.msra.mxu0 0
        %2819 = vmatprep.subr.bf16.mxu0 0
        %2820 = vmatpush1.bf16.msra.mxu0 0
        %2821 = vmatprep.subr.bf16.mxu0 0
        %2822 = vmatpush1.bf16.msra.mxu0 0
        %2823 = vmatprep.subr.bf16.mxu0 0
        %2824 = vmatpush1.bf16.msra.mxu0 0
        %2825 = vmatprep.subr.bf16.mxu0 0
        %2826 = vmatpush1.bf16.msra.mxu0 0
        %2827 = vmatprep.subr.bf16.mxu0 0
        %2828 = vmatpush1.bf16.msra.mxu0 0
        %2829 = vmatprep.subr.bf16.mxu0 0
        %2830 = vmatpush1.bf16.msra.mxu0 0
        %2831 = vmatprep.subr.bf16.mxu0 0
        %2832 = vmatpush1.bf16.msra.mxu0 0
        %2833 = vmatprep.subr.bf16.mxu0 0
        %2834 = vmatpush1.bf16.msra.mxu0 0
        %2835 = vmatprep.subr.bf16.mxu0 0
        %2836 = vmatpush1.bf16.msra.mxu0 0
        %2837 = vmatprep.subr.bf16.mxu0 0
        %2838 = vmatpush1.bf16.msra.mxu0 0
        %2839 = vmatprep.mubr.bf16.mxu0 0
        %2840 = vmatmul.mubr.bf16.gmra.mrb[0].mxu0 %v2805
        %v2841 = vpop.f32.mrb[0].mxu0
        %v2842 = vadd.f32 0.0, %v2841
        %v2843 = vpop.f32.mrb[0].mxu0
        %v2844 = vpop.f32.mrb[0].mxu0
        %v2845 = vadd.f32 0.0, %v2844
        %v2846 = vpop.f32.mrb[0].mxu0
        %2847 = vdwg.mxu0
        %v2848 = vadd.f32 %v2655, %v2842
        %v2849 = vadd.f32 %v2656, %v2845
        %v2850 = vlaneseq
        %v2851 = vshrl.u32 %v2850, 7
        %v2852 = vsub.s32 3, %v2851
        %v2853 = vrot.slane %v403, %v2852
        %v2854 = vadd.f32 %v2848, %v2853
        %v2855 = vadd.f32 %v2849, %v2853
        %2856 = vst.msk [vmem:[#allocation9] sm:$0xff] %vm436, %v2854
        %2857 = vst.msk [vmem:[#allocation9 + $0x8] sm:$0xff] %vm436, %v2855
        // Predicated region
        $region65: #{tpu_custom_call.1} parent=47 // pred_check
          %p2858 = pneg %p206
        $region66: #{tpu_custom_call.1} parent=47 // pred_check_branch
          %2860 = sbr.rel (%p2858) target = $region68
        $region67: #{tpu_custom_call.1} parent=47 // pred_region
          %s2862 = ssub.s32 256, 256
          %2863 = vsyncadd [#allocation5], %s2862
          %s2864 = sshll.u32 [#allocation9], 4
          %s2865 = int_to_ptr.vmem [resolvable:$true] %s2864
          %2870 = dma.vmem_to_hbm [thread:$0]  %s2865, 256, %s7, [#allocation5], 128, 128, 8
        $region68: #{tpu_custom_call.1} parent=47 // pred_fallthru
          _
        // Predicated region
        $region69: #{tpu_custom_call.1} parent=47 // pred_check
          %p2871 = pneg %p206
        $region70: #{tpu_custom_call.1} parent=47 // pred_check_branch
          %2873 = sbr.rel (%p2871) target = $region72
        $region71: #{tpu_custom_call.1} parent=47 // pred_region
          %2874 = dma.done [#allocation5], 256
        $region72: #{tpu_custom_call.1} parent=47 // pred_fallthru
          _
      $region48: #{tpu_custom_call.1} parent=5 // pred_fallthru
        _
      %p2875 = scmp.le.s32.totalorder 2, %s16
      // Predicated region
      $region73: #{tpu_custom_call.1} parent=5 // pred_check
        %p2876 = pneg %p2875
      $region74: #{tpu_custom_call.1} parent=5 // pred_check_branch
        %2878 = sbr.rel (%p2876) target = $region76
      $region75: #{tpu_custom_call.1} parent=5 // pred_region
        %s2879 = ssub.s32 %s16, 2
      $region76: #{tpu_custom_call.1} parent=5 // pred_fallthru
        _
    $region6: #{tpu_custom_call.1} parent=1 // loop_footer
      %s20 = sadd.s32 1, %s16
    $region7: #{tpu_custom_call.1} parent=1 // loop_footer_branch
      %15 = sbr.rel target = $region3
    $region8: #{tpu_custom_call.1} parent=1 // loop_exit
      _
    %2880 = vsyncpa [#allocation4], 1
    %s2881 = scalar_lea.sflag [#allocation4], 1
    %2882 = vsyncpa %s2881, 1
    %2883 = vsyncpa [#allocation7], 1
    %2884 = vsyncpa [#allocation5], 1
    %s2885 = scalar_lea.sflag [#allocation5], 1
    %2886 = vsyncpa %s2885, 1

</llo_original>
